<compile_context>
chip_gen: v7x
topology: tpu7x:2x2x1
jax: 0.10.0
libtpu: 0.0.40
codegen_flags: <defaults>
</compile_context>

<pallas_src>
import jax
import jax.numpy as jnp
from jax.experimental import pallas as pl
from jax.experimental.pallas import tpu as pltpu


# ---------------------------------------------------------------------------
# Kernel
# ---------------------------------------------------------------------------
def ner_kernel(xpad_ref, w12_ref, b12_ref, w3_ref, b3_ref, wl_ref, bl_ref,
               out_ref, hp_ref):
    """One block of `Bb` batch elements per grid step.

    xpad_ref : (Bb, T+4, E)    embedded input, zero-padded by 2 on each side of T
    w12_ref  : (5, E, 2H)      conv1 taps 0..4 (+ conv2 at taps 1..3) fused weights
    b12_ref  : (1, 2H)         [b1 | b2]                   (f32)
    w3_ref   : (5, 2H, 2H)     conv3 per-tap weights
    b3_ref   : (1, 2H)                                     (f32)
    wl_ref   : (2H, Lp)        final linear, lane-padded to Lp (mult of 128)
    bl_ref   : (1, Lp)                                     (f32)
    out_ref  : (Bb, T, Lp)     lane-padded logits
    hp_ref   : (Bb, T+10, 2H)  VMEM scratch: conv3 padded activation, rows [8, T+8)
    """
    Bb, Tp4, E = xpad_ref.shape
    T = Tp4 - 4
    H2 = w3_ref.shape[2]
    Lp = out_ref.shape[2]
    M = Bb * T

    x = xpad_ref[...]                                          # (Bb, T+4, E)

    # --- conv1 + conv2 fused, 5 accumulating per-tap MXU matmuls -------------
    h = jnp.dot(x[:, 0:T, :].reshape(M, E), w12_ref[0],
                preferred_element_type=jnp.float32)
    for k in range(1, 5):
        h = h + jnp.dot(x[:, k:k + T, :].reshape(M, E), w12_ref[k],
                        preferred_element_type=jnp.float32)
    h = jnp.maximum(h + b12_ref[...], 0.0)                     # (M, 2H) f32
    # dropout = identity (eval)

    # --- conv3 (2H -> 2H), padded activation in aligned VMEM scratch ---------
    # Activation rows start at sublane offset 8 -> unmasked vst for the big
    # store.  Zero pad rows sit at [6,8) and [T+8,T+10); tap k reads rows
    # [6+k, 6+k+T).  Pad rows are rewritten every step (cheap) so correctness
    # holds if the parallel batch axis is sharded across TensorCores.
    zrow = jnp.zeros((Bb, 2, H2), hp_ref.dtype)
    hp_ref[:, 6:8, :] = zrow
    hp_ref[:, T + 8:T + 10, :] = zrow
    hp_ref[:, 8:T + 8, :] = h.reshape(Bb, T, H2).astype(hp_ref.dtype)
    hp = hp_ref[...]                                           # (Bb, T+10, 2H)

    rep = jnp.dot(hp[:, 6:6 + T, :].reshape(M, H2), w3_ref[0],
                  preferred_element_type=jnp.float32)
    for k in range(1, 5):
        rep = rep + jnp.dot(hp[:, 6 + k:6 + k + T, :].reshape(M, H2), w3_ref[k],
                            preferred_element_type=jnp.float32)
    rep = jnp.maximum(rep + b3_ref[...], 0.0)                  # (M, 2H) f32
    # dropout = identity (eval)

    # --- final linear, lane-dense logits --------------------------------------
    logits = jnp.dot(rep.astype(wl_ref.dtype), wl_ref[...],
                     preferred_element_type=jnp.float32) + bl_ref[...]
    out_ref[...] = logits.reshape(Bb, T, Lp).astype(out_ref.dtype)


# ---------------------------------------------------------------------------
# One-time weight plumbing (cache the result alongside params; NOT per-call)
# ---------------------------------------------------------------------------
def prepare_params(params, *, compute_dtype=jnp.bfloat16):
    """Tap-fuse conv1/conv2, lane-pad the linear, extend the embedding table.

    Returns a tuple of arrays only (jit-friendly):
      (emb_ext, w12, b12, w3, b3, wl_pad, bl_pad)
    """
    emb, w1, b1, w2, b2, w3, b3, wl, bl = params
    E, H = w1.shape[1], w1.shape[2]
    H2 = w3.shape[1]
    assert H2 == 2 * H and w3.shape[2] == H2, (w3.shape, H)
    L = wl.shape[1]
    Lp = ((L + 127) // 128) * 128

    # conv2 (k=3,p=1) occupies global taps 1..3 of the 5-tap window.
    w12 = jnp.zeros((5, E, 2 * H), jnp.float32)
    w12 = w12.at[:, :, :H].set(w1)
    w12 = w12.at[1:4, :, H:].set(w2)
    w12 = w12.astype(compute_dtype)
    b12 = jnp.concatenate([b1, b2], axis=-1).astype(jnp.float32)      # (1, 2H)

    w3c = w3.astype(compute_dtype)                                    # (5, 2H, 2H)
    b3c = b3.astype(jnp.float32)

    wlp = jnp.zeros((H2, Lp), jnp.float32).at[:, :L].set(wl).astype(compute_dtype)
    blp = jnp.zeros((1, Lp), jnp.float32).at[:, :L].set(bl)           # f32

    # Extended table with one all-zero row (index V) -> embedding gather and
    # sequence padding fuse into a single XLA gather on padded ids.
    emb_ext = jnp.concatenate(
        [emb, jnp.zeros((1, E), emb.dtype)], axis=0).astype(compute_dtype)
    return (emb_ext, w12, b12, w3c, b3c, wlp, blp)


# ---------------------------------------------------------------------------
# Block / VMEM sizing
# ---------------------------------------------------------------------------
def _pick_block_b(B, T, *, target_m=512, min_steps=2):
    """Largest divisor of B with block_b*T <= target_m and >= min_steps grid
    steps (so a v7x megacore can split the parallel batch axis)."""
    best = 1
    for cand in range(1, B + 1):
        if B % cand == 0 and cand * T <= target_m and B // cand >= min(min_steps, B):
            best = cand
    return best


def _vmem_cap_bytes():
    cap = 100 << 20                       # generous on 128 MiB parts (v5e/v6e)
    try:
        info = pltpu.get_tpu_info()
        phys = getattr(info, "vmem_capacity_bytes", None)
        if phys:
            cap = min(cap, int(phys) * 3 // 4)   # ~48 MiB on v7x (64 MiB VMEM)
    except Exception:
        pass
    return cap


# ---------------------------------------------------------------------------
# Forward
# ---------------------------------------------------------------------------
def ner_forward(input_ids, prepped, *, block_b=None, out_dtype=jnp.bfloat16):
    """Returns lane-padded logits (B, T, Lp); use logits[..., :num_labels]."""
    emb_ext, w12, b12, w3, b3, wl, bl = prepped
    V = emb_ext.shape[0] - 1              # pad id -> all-zero embedding row
    E = emb_ext.shape[1]
    H2 = w3.shape[2]
    Lp = wl.shape[1]
    B, T = input_ids.shape
    compute_dtype = emb_ext.dtype

    auto_block = block_b is None
    if auto_block:
        block_b = _pick_block_b(B, T)
    assert B % block_b == 0, (B, block_b)

    csize = jnp.dtype(compute_dtype).itemsize
    osize = jnp.dtype(out_dtype).itemsize
    weight_bytes = ((w12.size + w3.size + wl.size) * csize
                    + (b12.size + b3.size + bl.size) * 4)

    def footprint(bb):
        # double-buffered x/out blocks + resident weights (x2 safety) +
        # persistent conv3 scratch, with ~25% headroom for compiler temps.
        return int(1.25 * (2 * bb * (T + 4) * E * csize
                           + 2 * bb * T * Lp * osize
                           + bb * (T + 10) * H2 * csize
                           + 2 * weight_bytes)) + (4 << 20)

    cap = _vmem_cap_bytes()
    if auto_block:
        while block_b > 1 and footprint(block_b) > cap:
            block_b = max(d for d in range(1, block_b) if B % d == 0)
    vmem_limit = max(32 << 20, min(footprint(block_b), cap))

    # Fused embedding gather + sequence pad (single XLA gather, zero row = pad).
    ids_pad = jnp.pad(input_ids, ((0, 0), (2, 2)), constant_values=V)
    xpad = jnp.take(emb_ext, ids_pad, axis=0)                  # (B, T+4, E)

    full = lambda a: pl.BlockSpec(a.shape, lambda b: (0,) * a.ndim)

    out = pl.pallas_call(
        ner_kernel,
        out_shape=jax.ShapeDtypeStruct((B, T, Lp), out_dtype),
        grid_spec=pltpu.PrefetchScalarGridSpec(
            num_scalar_prefetch=0,
            grid=(B // block_b,),
            in_specs=[
                pl.BlockSpec((block_b, T + 4, E), lambda b: (b, 0, 0)),
                full(w12), full(b12), full(w3), full(b3), full(wl), full(bl),
            ],
            out_specs=pl.BlockSpec((block_b, T, Lp), lambda b: (b, 0, 0)),
            scratch_shapes=[pltpu.VMEM((block_b, T + 10, H2), compute_dtype)],
        ),
        compiler_params=pltpu.CompilerParams(
            dimension_semantics=("parallel",),
            vmem_limit_bytes=vmem_limit),
    )(xpad, w12, b12, w3, b3, wl, bl)
    return out   # lane-padded; no wrapper-side slice (extra HBM pass)


# ---------------------------------------------------------------------------
# Pure-JAX reference (tap-sum cross-correlation = PyTorch Conv1d)
# ---------------------------------------------------------------------------
def ner_reference(input_ids, params, compute_dtype=jnp.float32):
    emb, w1, b1, w2, b2, w3, b3, wl, bl = params
    x = jnp.take(emb, input_ids, axis=0).astype(compute_dtype)
    T = x.shape[1]
    hi = jax.lax.Precision.HIGHEST

    def conv1d(xp, w, b, off):
        acc = jnp.zeros((xp.shape[0], T, w.shape[2]), jnp.float32) + b
        for k in range(w.shape[0]):
            acc = acc + jnp.einsum(
                'btc,co->bto', xp[:, off + k:off + k + T, :],
                w[k].astype(compute_dtype),
                preferred_element_type=jnp.float32, precision=hi)
        return acc

    xpad = jnp.pad(x, ((0, 0), (2, 2), (0, 0)))
    h1 = conv1d(xpad, w1, b1, off=0)                       # kernel 5, pad 2
    h2 = conv1d(xpad, w2, b2, off=1)                       # kernel 3, pad 1
    h = jnp.maximum(jnp.concatenate([h1, h2], axis=-1), 0.0).astype(compute_dtype)
    hpad = jnp.pad(h, ((0, 0), (2, 2), (0, 0)))
    rep = jnp.maximum(conv1d(hpad, w3, b3, off=0), 0.0).astype(compute_dtype)
    return jnp.einsum('bth,hl->btl', rep, wl.astype(compute_dtype),
                      preferred_element_type=jnp.float32, precision=hi) + bl


def make_params(key, vocab_size, emb_dim, hidden_dim, num_labels):
    ks = jax.random.split(key, 9)
    s = 0.1
    emb = jax.random.normal(ks[0], (vocab_size, emb_dim), jnp.float32) * s
    w1 = jax.random.normal(ks[1], (5, emb_dim, hidden_dim), jnp.float32) * s
    b1 = jax.random.normal(ks[2], (1, hidden_dim), jnp.float32) * s
    w2 = jax.random.normal(ks[3], (3, emb_dim, hidden_dim), jnp.float32) * s
    b2 = jax.random.normal(ks[4], (1, hidden_dim), jnp.float32) * s
    w3 = jax.random.normal(ks[5], (5, 2 * hidden_dim, 2 * hidden_dim),
                           jnp.float32) * s
    b3 = jax.random.normal(ks[6], (1, 2 * hidden_dim), jnp.float32) * s
    wl = jax.random.normal(ks[7], (2 * hidden_dim, num_labels), jnp.float32) * s
    bl = jax.random.normal(ks[8], (1, num_labels), jnp.float32) * s
    return (emb, w1, b1, w2, b2, w3, b3, wl, bl)


if __name__ == "__main__":
    # Small but lane-friendly config: vocab=100, E=128, H=64 (2H=128), L=9,
    # batch=8, seq=32 -> block_b=4 (M=128, grid=2 so both v7x TCs get work).
    VOCAB, E, H, L = 100, 128, 64, 9
    B, T = 8, 32

    key = jax.random.PRNGKey(0)
    k_ids, k_par = jax.random.split(key)
    input_ids = jax.random.randint(k_ids, (B, T), 1, VOCAB, dtype=jnp.int32)
    params = make_params(k_par, VOCAB, E, H, L)

    fwd = jax.jit(ner_forward, static_argnames=("block_b", "out_dtype"))
    Lp = ((L + 127) // 128) * 128

    # f32 operands / f32 output (tight check).
    prepped_f32 = prepare_params(params, compute_dtype=jnp.float32)
    logits_pad = jax.block_until_ready(
        fwd(input_ids, prepped_f32, out_dtype=jnp.float32))
    assert logits_pad.shape == (B, T, Lp), logits_pad.shape
    ref = jax.block_until_ready(ner_reference(input_ids, params))
    err = float(jnp.max(jnp.abs(logits_pad[:, :, :L] - ref)))
    assert err < 5e-3, err

    # bf16 operands / bf16 lane-padded output (default path; self-consistency
    # check against a bf16 reference — intermediates are rounded to bf16
    # between layers in both).
    prepped_bf = prepare_params(params)            # compute_dtype=bf16 default
    logits_bf_pad = jax.block_until_ready(fwd(input_ids, prepped_bf))
    ref_bf = jax.block_until_ready(
        ner_reference(input_ids, params, compute_dtype=jnp.bfloat16))
    err_bf = float(jnp.max(jnp.abs(
        logits_bf_pad[:, :, :L].astype(jnp.float32) - ref_bf)))
    assert err_bf < 5e-2, err_bf

    print("KERNEL_OK")
</pallas_src>

<mosaic_0001>
module attributes {stable_mosaic.version = 11 : i64} {
  func.func @ner_kernel(%arg0: i32, %arg1: memref<4x36x128xf32, #tpu.memory_space<vmem>>, %arg2: memref<5x128x128xf32, #tpu.memory_space<vmem>>, %arg3: memref<1x128xf32, #tpu.memory_space<vmem>>, %arg4: memref<5x128x128xf32, #tpu.memory_space<vmem>>, %arg5: memref<1x128xf32, #tpu.memory_space<vmem>>, %arg6: memref<128x128xf32, #tpu.memory_space<vmem>>, %arg7: memref<1x128xf32, #tpu.memory_space<vmem>>, %arg8: memref<4x32x128xf32, #tpu.memory_space<vmem>>, %arg9: memref<4x42x128xf32, #tpu.memory_space<vmem>>) attributes {dimension_semantics = [#tpu.dimension_semantics<parallel>], iteration_bounds = array<i64: 2>, scalar_prefetch = 0 : i64, scratch_operands = 1 : i64, tpu.core_type = #tpu.core_type<tc>, window_params = [{transform_indices = @transform_0, window_bounds = array<i64: 4, 36, 128>}, {pipeline_mode = #tpu.pipeline_mode<synchronous>, transform_indices = @transform_1, window_bounds = array<i64: 5, 128, 128>}, {pipeline_mode = #tpu.pipeline_mode<synchronous>, transform_indices = @transform_2, window_bounds = array<i64: 1, 128>}, {pipeline_mode = #tpu.pipeline_mode<synchronous>, transform_indices = @transform_3, window_bounds = array<i64: 5, 128, 128>}, {pipeline_mode = #tpu.pipeline_mode<synchronous>, transform_indices = @transform_4, window_bounds = array<i64: 1, 128>}, {pipeline_mode = #tpu.pipeline_mode<synchronous>, transform_indices = @transform_5, window_bounds = array<i64: 128, 128>}, {pipeline_mode = #tpu.pipeline_mode<synchronous>, transform_indices = @transform_6, window_bounds = array<i64: 1, 128>}, {transform_indices = @transform_7, window_bounds = array<i64: 4, 32, 128>}]} {
    %c0 = arith.constant 0 : index
    %c0_0 = arith.constant 0 : index
    %c0_1 = arith.constant 0 : index
    %0 = vector.load %arg1[%c0, %c0_0, %c0_1] : memref<4x36x128xf32, #tpu.memory_space<vmem>>, vector<4x36x128xf32>
    %1 = vector.extract_strided_slice %0 {offsets = [0, 0, 0], sizes = [4, 32, 128], strides = [1, 1, 1]} : vector<4x36x128xf32> to vector<4x32x128xf32>
    %2 = vector.shape_cast %1 : vector<4x32x128xf32> to vector<128x128xf32>
    %c0_2 = arith.constant 0 : index
    %c0_3 = arith.constant 0 : index
    %c0_4 = arith.constant 0 : index
    %3 = vector.load %arg2[%c0_2, %c0_3, %c0_4] : memref<5x128x128xf32, #tpu.memory_space<vmem>>, vector<1x128x128xf32>
    %4 = vector.shape_cast %3 : vector<1x128x128xf32> to vector<128x128xf32>
    %cst = arith.constant dense<0.000000e+00> : vector<128x128xf32>
    %5 = tpu.matmul %2, %4, %cst {dimension_numbers = #tpu.dot_dimension_numbers<[1], [0], [0], [1], [0, 0, 1, 1], [], []>} : vector<128x128xf32>, vector<128x128xf32>, vector<128x128xf32> -> vector<128x128xf32>
    %6 = vector.extract_strided_slice %0 {offsets = [0, 1, 0], sizes = [4, 32, 128], strides = [1, 1, 1]} : vector<4x36x128xf32> to vector<4x32x128xf32>
    %7 = vector.shape_cast %6 : vector<4x32x128xf32> to vector<128x128xf32>
    %c1 = arith.constant 1 : index
    %c0_5 = arith.constant 0 : index
    %c0_6 = arith.constant 0 : index
    %8 = vector.load %arg2[%c1, %c0_5, %c0_6] : memref<5x128x128xf32, #tpu.memory_space<vmem>>, vector<1x128x128xf32>
    %9 = vector.shape_cast %8 : vector<1x128x128xf32> to vector<128x128xf32>
    %cst_7 = arith.constant dense<0.000000e+00> : vector<128x128xf32>
    %10 = tpu.matmul %7, %9, %cst_7 {dimension_numbers = #tpu.dot_dimension_numbers<[1], [0], [0], [1], [0, 0, 1, 1], [], []>} : vector<128x128xf32>, vector<128x128xf32>, vector<128x128xf32> -> vector<128x128xf32>
    %11 = arith.addf %5, %10 : vector<128x128xf32>
    %12 = vector.extract_strided_slice %0 {offsets = [0, 2, 0], sizes = [4, 32, 128], strides = [1, 1, 1]} : vector<4x36x128xf32> to vector<4x32x128xf32>
    %13 = vector.shape_cast %12 : vector<4x32x128xf32> to vector<128x128xf32>
    %c2 = arith.constant 2 : index
    %c0_8 = arith.constant 0 : index
    %c0_9 = arith.constant 0 : index
    %14 = vector.load %arg2[%c2, %c0_8, %c0_9] : memref<5x128x128xf32, #tpu.memory_space<vmem>>, vector<1x128x128xf32>
    %15 = vector.shape_cast %14 : vector<1x128x128xf32> to vector<128x128xf32>
    %cst_10 = arith.constant dense<0.000000e+00> : vector<128x128xf32>
    %16 = tpu.matmul %13, %15, %cst_10 {dimension_numbers = #tpu.dot_dimension_numbers<[1], [0], [0], [1], [0, 0, 1, 1], [], []>} : vector<128x128xf32>, vector<128x128xf32>, vector<128x128xf32> -> vector<128x128xf32>
    %17 = arith.addf %11, %16 : vector<128x128xf32>
    %18 = vector.extract_strided_slice %0 {offsets = [0, 3, 0], sizes = [4, 32, 128], strides = [1, 1, 1]} : vector<4x36x128xf32> to vector<4x32x128xf32>
    %19 = vector.shape_cast %18 : vector<4x32x128xf32> to vector<128x128xf32>
    %c3 = arith.constant 3 : index
    %c0_11 = arith.constant 0 : index
    %c0_12 = arith.constant 0 : index
    %20 = vector.load %arg2[%c3, %c0_11, %c0_12] : memref<5x128x128xf32, #tpu.memory_space<vmem>>, vector<1x128x128xf32>
    %21 = vector.shape_cast %20 : vector<1x128x128xf32> to vector<128x128xf32>
    %cst_13 = arith.constant dense<0.000000e+00> : vector<128x128xf32>
    %22 = tpu.matmul %19, %21, %cst_13 {dimension_numbers = #tpu.dot_dimension_numbers<[1], [0], [0], [1], [0, 0, 1, 1], [], []>} : vector<128x128xf32>, vector<128x128xf32>, vector<128x128xf32> -> vector<128x128xf32>
    %23 = arith.addf %17, %22 : vector<128x128xf32>
    %24 = vector.extract_strided_slice %0 {offsets = [0, 4, 0], sizes = [4, 32, 128], strides = [1, 1, 1]} : vector<4x36x128xf32> to vector<4x32x128xf32>
    %25 = vector.shape_cast %24 : vector<4x32x128xf32> to vector<128x128xf32>
    %c4 = arith.constant 4 : index
    %c0_14 = arith.constant 0 : index
    %c0_15 = arith.constant 0 : index
    %26 = vector.load %arg2[%c4, %c0_14, %c0_15] : memref<5x128x128xf32, #tpu.memory_space<vmem>>, vector<1x128x128xf32>
    %27 = vector.shape_cast %26 : vector<1x128x128xf32> to vector<128x128xf32>
    %cst_16 = arith.constant dense<0.000000e+00> : vector<128x128xf32>
    %28 = tpu.matmul %25, %27, %cst_16 {dimension_numbers = #tpu.dot_dimension_numbers<[1], [0], [0], [1], [0, 0, 1, 1], [], []>} : vector<128x128xf32>, vector<128x128xf32>, vector<128x128xf32> -> vector<128x128xf32>
    %29 = arith.addf %23, %28 : vector<128x128xf32>
    %c0_17 = arith.constant 0 : index
    %c0_18 = arith.constant 0 : index
    %30 = vector.load %arg3[%c0_17, %c0_18] : memref<1x128xf32, #tpu.memory_space<vmem>>, vector<1x128xf32>
    %31 = vector.broadcast %30 : vector<1x128xf32> to vector<128x128xf32>
    %32 = arith.addf %29, %31 : vector<128x128xf32>
    %cst_19 = arith.constant 0.000000e+00 : f32
    %33 = vector.broadcast %cst_19 : f32 to vector<128x128xf32>
    %34 = arith.maximumf %32, %33 : vector<128x128xf32>
    %cst_20 = arith.constant 0.000000e+00 : f32
    %35 = vector.broadcast %cst_20 : f32 to vector<4x2x128xf32>
    %c0_21 = arith.constant 0 : index
    %c6 = arith.constant 6 : index
    %c0_22 = arith.constant 0 : index
    %36 = vector.load %arg9[%c0_21, %c6, %c0_22] : memref<4x42x128xf32, #tpu.memory_space<vmem>>, vector<4x2x128xf32>
    tpu.vector_store %arg9[%c0_21, %c6, %c0_22], %35 {strides = array<i32>} : memref<4x42x128xf32, #tpu.memory_space<vmem>>, vector<4x2x128xf32>,
    %c0_23 = arith.constant 0 : index
    %c40 = arith.constant 40 : index
    %c0_24 = arith.constant 0 : index
    %37 = vector.load %arg9[%c0_23, %c40, %c0_24] : memref<4x42x128xf32, #tpu.memory_space<vmem>>, vector<4x2x128xf32>
    tpu.vector_store %arg9[%c0_23, %c40, %c0_24], %35 {strides = array<i32>} : memref<4x42x128xf32, #tpu.memory_space<vmem>>, vector<4x2x128xf32>,
    %38 = vector.shape_cast %34 : vector<128x128xf32> to vector<4x32x128xf32>
    %c0_25 = arith.constant 0 : index
    %c8 = arith.constant 8 : index
    %c0_26 = arith.constant 0 : index
    %39 = vector.load %arg9[%c0_25, %c8, %c0_26] : memref<4x42x128xf32, #tpu.memory_space<vmem>>, vector<4x32x128xf32>
    tpu.vector_store %arg9[%c0_25, %c8, %c0_26], %38 {strides = array<i32>} : memref<4x42x128xf32, #tpu.memory_space<vmem>>, vector<4x32x128xf32>,
    %c0_27 = arith.constant 0 : index
    %c0_28 = arith.constant 0 : index
    %c0_29 = arith.constant 0 : index
    %40 = vector.load %arg9[%c0_27, %c0_28, %c0_29] : memref<4x42x128xf32, #tpu.memory_space<vmem>>, vector<4x42x128xf32>
    %41 = vector.extract_strided_slice %40 {offsets = [0, 6, 0], sizes = [4, 32, 128], strides = [1, 1, 1]} : vector<4x42x128xf32> to vector<4x32x128xf32>
    %42 = vector.shape_cast %41 : vector<4x32x128xf32> to vector<128x128xf32>
    %c0_30 = arith.constant 0 : index
    %c0_31 = arith.constant 0 : index
    %c0_32 = arith.constant 0 : index
    %43 = vector.load %arg4[%c0_30, %c0_31, %c0_32] : memref<5x128x128xf32, #tpu.memory_space<vmem>>, vector<1x128x128xf32>
    %44 = vector.shape_cast %43 : vector<1x128x128xf32> to vector<128x128xf32>
    %cst_33 = arith.constant dense<0.000000e+00> : vector<128x128xf32>
    %45 = tpu.matmul %42, %44, %cst_33 {dimension_numbers = #tpu.dot_dimension_numbers<[1], [0], [0], [1], [0, 0, 1, 1], [], []>} : vector<128x128xf32>, vector<128x128xf32>, vector<128x128xf32> -> vector<128x128xf32>
    %46 = vector.extract_strided_slice %40 {offsets = [0, 7, 0], sizes = [4, 32, 128], strides = [1, 1, 1]} : vector<4x42x128xf32> to vector<4x32x128xf32>
    %47 = vector.shape_cast %46 : vector<4x32x128xf32> to vector<128x128xf32>
    %c1_34 = arith.constant 1 : index
    %c0_35 = arith.constant 0 : index
    %c0_36 = arith.constant 0 : index
    %48 = vector.load %arg4[%c1_34, %c0_35, %c0_36] : memref<5x128x128xf32, #tpu.memory_space<vmem>>, vector<1x128x128xf32>
    %49 = vector.shape_cast %48 : vector<1x128x128xf32> to vector<128x128xf32>
    %cst_37 = arith.constant dense<0.000000e+00> : vector<128x128xf32>
    %50 = tpu.matmul %47, %49, %cst_37 {dimension_numbers = #tpu.dot_dimension_numbers<[1], [0], [0], [1], [0, 0, 1, 1], [], []>} : vector<128x128xf32>, vector<128x128xf32>, vector<128x128xf32> -> vector<128x128xf32>
    %51 = arith.addf %45, %50 : vector<128x128xf32>
    %52 = vector.extract_strided_slice %40 {offsets = [0, 8, 0], sizes = [4, 32, 128], strides = [1, 1, 1]} : vector<4x42x128xf32> to vector<4x32x128xf32>
    %53 = vector.shape_cast %52 : vector<4x32x128xf32> to vector<128x128xf32>
    %c2_38 = arith.constant 2 : index
    %c0_39 = arith.constant 0 : index
    %c0_40 = arith.constant 0 : index
    %54 = vector.load %arg4[%c2_38, %c0_39, %c0_40] : memref<5x128x128xf32, #tpu.memory_space<vmem>>, vector<1x128x128xf32>
    %55 = vector.shape_cast %54 : vector<1x128x128xf32> to vector<128x128xf32>
    %cst_41 = arith.constant dense<0.000000e+00> : vector<128x128xf32>
    %56 = tpu.matmul %53, %55, %cst_41 {dimension_numbers = #tpu.dot_dimension_numbers<[1], [0], [0], [1], [0, 0, 1, 1], [], []>} : vector<128x128xf32>, vector<128x128xf32>, vector<128x128xf32> -> vector<128x128xf32>
    %57 = arith.addf %51, %56 : vector<128x128xf32>
    %58 = vector.extract_strided_slice %40 {offsets = [0, 9, 0], sizes = [4, 32, 128], strides = [1, 1, 1]} : vector<4x42x128xf32> to vector<4x32x128xf32>
    %59 = vector.shape_cast %58 : vector<4x32x128xf32> to vector<128x128xf32>
    %c3_42 = arith.constant 3 : index
    %c0_43 = arith.constant 0 : index
    %c0_44 = arith.constant 0 : index
    %60 = vector.load %arg4[%c3_42, %c0_43, %c0_44] : memref<5x128x128xf32, #tpu.memory_space<vmem>>, vector<1x128x128xf32>
    %61 = vector.shape_cast %60 : vector<1x128x128xf32> to vector<128x128xf32>
    %cst_45 = arith.constant dense<0.000000e+00> : vector<128x128xf32>
    %62 = tpu.matmul %59, %61, %cst_45 {dimension_numbers = #tpu.dot_dimension_numbers<[1], [0], [0], [1], [0, 0, 1, 1], [], []>} : vector<128x128xf32>, vector<128x128xf32>, vector<128x128xf32> -> vector<128x128xf32>
    %63 = arith.addf %57, %62 : vector<128x128xf32>
    %64 = vector.extract_strided_slice %40 {offsets = [0, 10, 0], sizes = [4, 32, 128], strides = [1, 1, 1]} : vector<4x42x128xf32> to vector<4x32x128xf32>
    %65 = vector.shape_cast %64 : vector<4x32x128xf32> to vector<128x128xf32>
    %c4_46 = arith.constant 4 : index
    %c0_47 = arith.constant 0 : index
    %c0_48 = arith.constant 0 : index
    %66 = vector.load %arg4[%c4_46, %c0_47, %c0_48] : memref<5x128x128xf32, #tpu.memory_space<vmem>>, vector<1x128x128xf32>
    %67 = vector.shape_cast %66 : vector<1x128x128xf32> to vector<128x128xf32>
    %cst_49 = arith.constant dense<0.000000e+00> : vector<128x128xf32>
    %68 = tpu.matmul %65, %67, %cst_49 {dimension_numbers = #tpu.dot_dimension_numbers<[1], [0], [0], [1], [0, 0, 1, 1], [], []>} : vector<128x128xf32>, vector<128x128xf32>, vector<128x128xf32> -> vector<128x128xf32>
    %69 = arith.addf %63, %68 : vector<128x128xf32>
    %c0_50 = arith.constant 0 : index
    %c0_51 = arith.constant 0 : index
    %70 = vector.load %arg5[%c0_50, %c0_51] : memref<1x128xf32, #tpu.memory_space<vmem>>, vector<1x128xf32>
    %71 = vector.broadcast %70 : vector<1x128xf32> to vector<128x128xf32>
    %72 = arith.addf %69, %71 : vector<128x128xf32>
    %cst_52 = arith.constant 0.000000e+00 : f32
    %73 = vector.broadcast %cst_52 : f32 to vector<128x128xf32>
    %74 = arith.maximumf %72, %73 : vector<128x128xf32>
    %c0_53 = arith.constant 0 : index
    %c0_54 = arith.constant 0 : index
    %75 = vector.load %arg6[%c0_53, %c0_54] : memref<128x128xf32, #tpu.memory_space<vmem>>, vector<128x128xf32>
    %cst_55 = arith.constant dense<0.000000e+00> : vector<128x128xf32>
    %76 = tpu.matmul %74, %75, %cst_55 {dimension_numbers = #tpu.dot_dimension_numbers<[1], [0], [0], [1], [0, 0, 1, 1], [], []>} : vector<128x128xf32>, vector<128x128xf32>, vector<128x128xf32> -> vector<128x128xf32>
    %c0_56 = arith.constant 0 : index
    %c0_57 = arith.constant 0 : index
    %77 = vector.load %arg7[%c0_56, %c0_57] : memref<1x128xf32, #tpu.memory_space<vmem>>, vector<1x128xf32>
    %78 = vector.broadcast %77 : vector<1x128xf32> to vector<128x128xf32>
    %79 = arith.addf %76, %78 : vector<128x128xf32>
    %80 = vector.shape_cast %79 : vector<128x128xf32> to vector<4x32x128xf32>
    %c0_58 = arith.constant 0 : index
    %c0_59 = arith.constant 0 : index
    %c0_60 = arith.constant 0 : index
    %81 = vector.load %arg8[%c0_58, %c0_59, %c0_60] : memref<4x32x128xf32, #tpu.memory_space<vmem>>, vector<4x32x128xf32>
    tpu.vector_store %arg8[%c0_58, %c0_59, %c0_60], %80 {strides = array<i32>} : memref<4x32x128xf32, #tpu.memory_space<vmem>>, vector<4x32x128xf32>,
    return
  }
  func.func @transform_0(%arg0: i32) -> (i32, i32, i32) {
    %c0_i32 = arith.constant 0 : i32
    %c0_i32_0 = arith.constant 0 : i32
    %c0_i32_1 = arith.constant 0 : i32
    return %arg0, %c0_i32, %c0_i32_0 : i32, i32, i32
  }
  func.func @transform_1(%arg0: i32) -> (i32, i32, i32) {
    %c0_i32 = arith.constant 0 : i32
    %c0_i32_0 = arith.constant 0 : i32
    %c0_i32_1 = arith.constant 0 : i32
    %c0_i32_2 = arith.constant 0 : i32
    return %c0_i32, %c0_i32_0, %c0_i32_1 : i32, i32, i32
  }
  func.func @transform_2(%arg0: i32) -> (i32, i32) {
    %c0_i32 = arith.constant 0 : i32
    %c0_i32_0 = arith.constant 0 : i32
    %c0_i32_1 = arith.constant 0 : i32
    return %c0_i32, %c0_i32_0 : i32, i32
  }
  func.func @transform_3(%arg0: i32) -> (i32, i32, i32) {
    %c0_i32 = arith.constant 0 : i32
    %c0_i32_0 = arith.constant 0 : i32
    %c0_i32_1 = arith.constant 0 : i32
    %c0_i32_2 = arith.constant 0 : i32
    return %c0_i32, %c0_i32_0, %c0_i32_1 : i32, i32, i32
  }
  func.func @transform_4(%arg0: i32) -> (i32, i32) {
    %c0_i32 = arith.constant 0 : i32
    %c0_i32_0 = arith.constant 0 : i32
    %c0_i32_1 = arith.constant 0 : i32
    return %c0_i32, %c0_i32_0 : i32, i32
  }
  func.func @transform_5(%arg0: i32) -> (i32, i32) {
    %c0_i32 = arith.constant 0 : i32
    %c0_i32_0 = arith.constant 0 : i32
    %c0_i32_1 = arith.constant 0 : i32
    return %c0_i32, %c0_i32_0 : i32, i32
  }
  func.func @transform_6(%arg0: i32) -> (i32, i32) {
    %c0_i32 = arith.constant 0 : i32
    %c0_i32_0 = arith.constant 0 : i32
    %c0_i32_1 = arith.constant 0 : i32
    return %c0_i32, %c0_i32_0 : i32, i32
  }
  func.func @transform_7(%arg0: i32) -> (i32, i32, i32) {
    %c0_i32 = arith.constant 0 : i32
    %c0_i32_0 = arith.constant 0 : i32
    %c0_i32_1 = arith.constant 0 : i32
    return %arg0, %c0_i32, %c0_i32_0 : i32, i32, i32
  }
}

</mosaic_0001>

<llo_original>
// kernel: ner_forward.1
$region0: #{ner_forward.1}
  #allocation0 [shape = 'u32[]', space=smem, size = 0x4, offset = 0x4, fixed_abs, tag = 'smem constant byte address 0x4 - core index']
  #allocation1 [shape = 'u32[144,128]{1,0:T(1,128)}', space=vmem, size = 0x12000, scoped, tag = 'internal scratch']
  #allocation2 [shape = 'f32[4,42,128]{2,1,0:T(8,128)}', space=vmem, size = 0x18000, scoped, tag = 'scratch operand']
  %s0 = inlined_call_operand.vmem [shape: f32[8,36,128], index: 0, kind: input, shape index: {}]
  %s1 = inlined_call_operand.vmem [shape: f32[5,128,128], index: 1, kind: input, shape index: {}]
  %s2 = inlined_call_operand.vmem [shape: f32[1,128], index: 2, kind: input, shape index: {}]
  %s3 = inlined_call_operand.vmem [shape: f32[5,128,128], index: 3, kind: input, shape index: {}]
  %s4 = inlined_call_operand.vmem [shape: f32[1,128], index: 4, kind: input, shape index: {}]
  %s5 = inlined_call_operand.vmem [shape: f32[128,128], index: 5, kind: input, shape index: {}]
  %s6 = inlined_call_operand.vmem [shape: f32[1,128], index: 6, kind: input, shape index: {}]
  %s7 = inlined_call_operand.hbm [shape: f32[8,32,128], index: 7, kind: output, shape index: {}]
  %s8 = sld [smem:[#allocation0]]
  $region61: #{ner_forward.1} parent=0
    _
  %s10 = ssub.s32 1, %s8
  %s11 = scalar_select 0, %s10, %s8
  $region1: #{ner_forward.1} parent=0
    #allocation3 [shape = 'u8[131072]{0}', space=vmem, size = 0x20000, scoped, tag = 'output window, operand 0']
    #allocation4 [shape = 's32[2]{0}', space=sflag, size = 0x8, scoped, tag = 'scoped memory for ner_forward.1']
    %12 = vsyncpa [#allocation4], 0
    %s13 = scalar_lea.sflag [#allocation4], 1
    %14 = vsyncpa %s13, 0
    loop: start=0, step=1, limit=4
    $region2: #{ner_forward.1} parent=1 // loop_pre_header
      _
    $region3: #{ner_forward.1} parent=1 // loop_header
      %s16 = sphi 0, %s20
      %p17 = scmp.ge.s32.totalorder %s16, 4
      %s26 = sphi 0, %s28
      %s29 = sphi 0, %s26
      %s30 = sphi 0, %s29
      %s46 = sphi 0, %s30
      %s50 = sphi 0, %s50
      %s52 = sphi 0, %s50
      %s53 = sphi 0, %s52
      %s67 = sphi 0, %s53
      %s71 = sphi 0, %s71
      %s73 = sphi 0, %s71
      %s74 = sphi 0, %s73
      %s88 = sphi 0, %s74
      %s92 = sphi 0, %s92
      %s94 = sphi 0, %s92
      %s95 = sphi 0, %s94
      %s109 = sphi 0, %s95
      %s113 = sphi 0, %s113
      %s115 = sphi 0, %s113
      %s116 = sphi 0, %s115
      %s130 = sphi 0, %s116
      %s134 = sphi 0, %s134
      %s136 = sphi 0, %s134
      %s137 = sphi 0, %s136
      %s151 = sphi 0, %s137
      %s155 = sphi 0, %s155
      %s157 = sphi 0, %s155
      %s158 = sphi 0, %s157
      %s172 = sphi 0, %s158
      %s178 = sphi 0, %s180
      %s181 = sphi 0, %s178
      %s182 = sphi 0, %s181
      %s198 = sphi 0, %s182
    $region4: #{ner_forward.1} parent=1 // loop_header_branch
      %19 = sbr.rel (%p17) target = $region8
    $region5: #{ner_forward.1} parent=1 // loop_body
      %s21 = ssub.s32 %s16, 1
      %s22 = ssub.s32 %s16, 2
      %s23 = sadd.s32 %s16, 1
      %s24 = ssub.s32 %s16, %s23
      %p25 = scmp.eq.s32.totalorder %s24, 0
      %s27 = sadd.s32 %s26, 1
      %s28 = scalar_select %p25, %s26, %s27
      %p31 = pneg %p25
      %p32 = scmp.eq.s32.totalorder %s16, 1
      %p33 = por %p31, %p32
      %p34 = scmp.ne.s32.totalorder %s26, %s29
      %p35 = scmp.eq.s32.totalorder %s16, 0
      %p36 = por %p34, %p35
      %p37 = scmp.ne.s32.totalorder %s26, %s29
      %p38 = scmp.eq.s32.totalorder %s21, 1
      %p39 = por %p37, %p38
      %p40 = scmp.ne.s32.totalorder %s29, %s30
      %p41 = scmp.eq.s32.totalorder %s21, 0
      %p42 = por %p40, %p41
      %p43 = scmp.ne.s32.totalorder %s29, %s30
      %p44 = scmp.eq.s32.totalorder %s22, 1
      %p45 = por %p43, %p44
      %p47 = scmp.ne.s32.totalorder %s30, %s46
      %p48 = scmp.eq.s32.totalorder %s22, 0
      %p49 = por %p47, %p48
      %s51 = sadd.s32 %s50, 1
      %p54 = scmp.eq.s32.totalorder %s16, 1
      %p55 = scmp.ne.s32.totalorder %s50, %s52
      %p56 = scmp.eq.s32.totalorder %s16, 0
      %p57 = por %p55, %p56
      %p58 = scmp.ne.s32.totalorder %s50, %s52
      %p59 = scmp.eq.s32.totalorder %s21, 1
      %p60 = por %p58, %p59
      %p61 = scmp.ne.s32.totalorder %s52, %s53
      %p62 = scmp.eq.s32.totalorder %s21, 0
      %p63 = por %p61, %p62
      %p64 = scmp.ne.s32.totalorder %s52, %s53
      %p65 = scmp.eq.s32.totalorder %s22, 1
      %p66 = por %p64, %p65
      %p68 = scmp.ne.s32.totalorder %s53, %s67
      %p69 = scmp.eq.s32.totalorder %s22, 0
      %p70 = por %p68, %p69
      %s72 = sadd.s32 %s71, 1
      %p75 = scmp.eq.s32.totalorder %s16, 1
      %p76 = scmp.ne.s32.totalorder %s71, %s73
      %p77 = scmp.eq.s32.totalorder %s16, 0
      %p78 = por %p76, %p77
      %p79 = scmp.ne.s32.totalorder %s71, %s73
      %p80 = scmp.eq.s32.totalorder %s21, 1
      %p81 = por %p79, %p80
      %p82 = scmp.ne.s32.totalorder %s73, %s74
      %p83 = scmp.eq.s32.totalorder %s21, 0
      %p84 = por %p82, %p83
      %p85 = scmp.ne.s32.totalorder %s73, %s74
      %p86 = scmp.eq.s32.totalorder %s22, 1
      %p87 = por %p85, %p86
      %p89 = scmp.ne.s32.totalorder %s74, %s88
      %p90 = scmp.eq.s32.totalorder %s22, 0
      %p91 = por %p89, %p90
      %s93 = sadd.s32 %s92, 1
      %p96 = scmp.eq.s32.totalorder %s16, 1
      %p97 = scmp.ne.s32.totalorder %s92, %s94
      %p98 = scmp.eq.s32.totalorder %s16, 0
      %p99 = por %p97, %p98
      %p100 = scmp.ne.s32.totalorder %s92, %s94
      %p101 = scmp.eq.s32.totalorder %s21, 1
      %p102 = por %p100, %p101
      %p103 = scmp.ne.s32.totalorder %s94, %s95
      %p104 = scmp.eq.s32.totalorder %s21, 0
      %p105 = por %p103, %p104
      %p106 = scmp.ne.s32.totalorder %s94, %s95
      %p107 = scmp.eq.s32.totalorder %s22, 1
      %p108 = por %p106, %p107
      %p110 = scmp.ne.s32.totalorder %s95, %s109
      %p111 = scmp.eq.s32.totalorder %s22, 0
      %p112 = por %p110, %p111
      %s114 = sadd.s32 %s113, 1
      %p117 = scmp.eq.s32.totalorder %s16, 1
      %p118 = scmp.ne.s32.totalorder %s113, %s115
      %p119 = scmp.eq.s32.totalorder %s16, 0
      %p120 = por %p118, %p119
      %p121 = scmp.ne.s32.totalorder %s113, %s115
      %p122 = scmp.eq.s32.totalorder %s21, 1
      %p123 = por %p121, %p122
      %p124 = scmp.ne.s32.totalorder %s115, %s116
      %p125 = scmp.eq.s32.totalorder %s21, 0
      %p126 = por %p124, %p125
      %p127 = scmp.ne.s32.totalorder %s115, %s116
      %p128 = scmp.eq.s32.totalorder %s22, 1
      %p129 = por %p127, %p128
      %p131 = scmp.ne.s32.totalorder %s116, %s130
      %p132 = scmp.eq.s32.totalorder %s22, 0
      %p133 = por %p131, %p132
      %s135 = sadd.s32 %s134, 1
      %p138 = scmp.eq.s32.totalorder %s16, 1
      %p139 = scmp.ne.s32.totalorder %s134, %s136
      %p140 = scmp.eq.s32.totalorder %s16, 0
      %p141 = por %p139, %p140
      %p142 = scmp.ne.s32.totalorder %s134, %s136
      %p143 = scmp.eq.s32.totalorder %s21, 1
      %p144 = por %p142, %p143
      %p145 = scmp.ne.s32.totalorder %s136, %s137
      %p146 = scmp.eq.s32.totalorder %s21, 0
      %p147 = por %p145, %p146
      %p148 = scmp.ne.s32.totalorder %s136, %s137
      %p149 = scmp.eq.s32.totalorder %s22, 1
      %p150 = por %p148, %p149
      %p152 = scmp.ne.s32.totalorder %s137, %s151
      %p153 = scmp.eq.s32.totalorder %s22, 0
      %p154 = por %p152, %p153
      %s156 = sadd.s32 %s155, 1
      %p159 = scmp.eq.s32.totalorder %s16, 1
      %p160 = scmp.ne.s32.totalorder %s155, %s157
      %p161 = scmp.eq.s32.totalorder %s16, 0
      %p162 = por %p160, %p161
      %p163 = scmp.ne.s32.totalorder %s155, %s157
      %p164 = scmp.eq.s32.totalorder %s21, 1
      %p165 = por %p163, %p164
      %p166 = scmp.ne.s32.totalorder %s157, %s158
      %p167 = scmp.eq.s32.totalorder %s21, 0
      %p168 = por %p166, %p167
      %p169 = scmp.ne.s32.totalorder %s157, %s158
      %p170 = scmp.eq.s32.totalorder %s22, 1
      %p171 = por %p169, %p170
      %p173 = scmp.ne.s32.totalorder %s158, %s172
      %p174 = scmp.eq.s32.totalorder %s22, 0
      %p175 = por %p173, %p174
      %s176 = ssub.s32 %s16, %s23
      %p177 = scmp.eq.s32.totalorder %s176, 0
      %s179 = sadd.s32 %s178, 1
      %s180 = scalar_select %p177, %s178, %s179
      %p183 = pneg %p177
      %p184 = scmp.eq.s32.totalorder %s16, 1
      %p185 = por %p183, %p184
      %p186 = scmp.ne.s32.totalorder %s178, %s181
      %p187 = scmp.eq.s32.totalorder %s16, 0
      %p188 = por %p186, %p187
      %p189 = scmp.ne.s32.totalorder %s178, %s181
      %p190 = scmp.eq.s32.totalorder %s21, 1
      %p191 = por %p189, %p190
      %p192 = scmp.ne.s32.totalorder %s181, %s182
      %p193 = scmp.eq.s32.totalorder %s21, 0
      %p194 = por %p192, %p193
      %p195 = scmp.ne.s32.totalorder %s181, %s182
      %p196 = scmp.eq.s32.totalorder %s22, 1
      %p197 = por %p195, %p196
      %p199 = scmp.ne.s32.totalorder %s182, %s198
      %p200 = scmp.eq.s32.totalorder %s22, 0
      %p201 = por %p199, %p200
      %p202 = scmp.le.s32.totalorder 1, %s16
      %p203 = scmp.lt.s32.totalorder %s16, 3
      %p204 = pnand %p202, %p203
      %p205 = pneg %p204
      // Predicated region
      $region9: #{ner_forward.1} parent=5 // pred_check
        _
      $region10: #{ner_forward.1} parent=5 // pred_check_branch
        %207 = sbr.rel (%p204) target = $region12
      $region11: #{ner_forward.1} parent=5 // pred_region
        %s208 = ssub.s32 %s16, 1
        // Predicated region
        $region13: #{ner_forward.1} parent=11 // pred_check
          %p209 = pneg %p63
        $region14: #{ner_forward.1} parent=11 // pred_check_branch
          %211 = sbr.rel (%p209) target = $region16
        $region15: #{ner_forward.1} parent=11 // pred_region
          _
        $region16: #{ner_forward.1} parent=11 // pred_fallthru
          _
        // Predicated region
        $region17: #{ner_forward.1} parent=11 // pred_check
          %p212 = pneg %p84
        $region18: #{ner_forward.1} parent=11 // pred_check_branch
          %214 = sbr.rel (%p212) target = $region20
        $region19: #{ner_forward.1} parent=11 // pred_region
          _
        $region20: #{ner_forward.1} parent=11 // pred_fallthru
          _
        // Predicated region
        $region21: #{ner_forward.1} parent=11 // pred_check
          %p215 = pneg %p105
        $region22: #{ner_forward.1} parent=11 // pred_check_branch
          %217 = sbr.rel (%p215) target = $region24
        $region23: #{ner_forward.1} parent=11 // pred_region
          _
        $region24: #{ner_forward.1} parent=11 // pred_fallthru
          _
        // Predicated region
        $region25: #{ner_forward.1} parent=11 // pred_check
          %p218 = pneg %p126
        $region26: #{ner_forward.1} parent=11 // pred_check_branch
          %220 = sbr.rel (%p218) target = $region28
        $region27: #{ner_forward.1} parent=11 // pred_region
          _
        $region28: #{ner_forward.1} parent=11 // pred_fallthru
          _
        // Predicated region
        $region29: #{ner_forward.1} parent=11 // pred_check
          %p221 = pneg %p147
        $region30: #{ner_forward.1} parent=11 // pred_check_branch
          %223 = sbr.rel (%p221) target = $region32
        $region31: #{ner_forward.1} parent=11 // pred_region
          _
        $region32: #{ner_forward.1} parent=11 // pred_fallthru
          _
        // Predicated region
        $region33: #{ner_forward.1} parent=11 // pred_check
          %p224 = pneg %p168
        $region34: #{ner_forward.1} parent=11 // pred_check_branch
          %226 = sbr.rel (%p224) target = $region36
        $region35: #{ner_forward.1} parent=11 // pred_region
          _
        $region36: #{ner_forward.1} parent=11 // pred_fallthru
          _
      $region12: #{ner_forward.1} parent=5 // pred_fallthru
        _
      %p227 = scmp.lt.s32.totalorder %s16, 2
      // Predicated region
      $region37: #{ner_forward.1} parent=5 // pred_check
        %p228 = pneg %p227
      $region38: #{ner_forward.1} parent=5 // pred_check_branch
        %230 = sbr.rel (%p228) target = $region40
      $region39: #{ner_forward.1} parent=5 // pred_region
        // Predicated region
        $region41: #{ner_forward.1} parent=39 // pred_check
          %p231 = pneg %p36
        $region42: #{ner_forward.1} parent=39 // pred_check_branch
          %233 = sbr.rel (%p231) target = $region44
        $region43: #{ner_forward.1} parent=39 // pred_region
          %s234 = smul.u32 4, %s16
          %p235 = scmp.lt.s32.totalorder %s234, 7
          %s236 = scalar_select %p235, %s234, 7
          %s237 = smul.addr %s236, 5
          %s238 = smul.addr %s237, 8
          %s239 = scalar_lea.vmem %s0, %s238
          %s240 = smul.u32 4, %s16
        $region44: #{ner_forward.1} parent=39 // pred_fallthru
          _
      $region40: #{ner_forward.1} parent=5 // pred_fallthru
        _
      %p241 = scmp.le.s32.totalorder 1, %s16
      %p242 = scmp.lt.s32.totalorder %s16, 3
      %p243 = pnand %p241, %p242
      %p244 = pneg %p243
      // Predicated region
      $region45: #{ner_forward.1} parent=5 // pred_check
        _
      $region46: #{ner_forward.1} parent=5 // pred_check_branch
        %246 = sbr.rel (%p243) target = $region48
      $region47: #{ner_forward.1} parent=5 // pred_region
        %s247 = ssub.s32 %s16, 1
        %s248 = smul.u32 4, %s21
        %p249 = scmp.lt.s32.totalorder %s248, 7
        %s250 = scalar_select %p249, %s248, 7
        %s251 = smul.addr %s250, 5
        %s252 = smul.addr %s251, 8
        %s253 = scalar_lea.vmem %s0, %s252
        %p254 = pneg %p42
        %p255 = pneg %p39
        %p256 = pneg %p63
        %p257 = pneg %p60
        %p258 = pneg %p84
        %p259 = pneg %p81
        %p260 = pneg %p105
        %p261 = pneg %p102
        %p262 = pneg %p126
        %p263 = pneg %p123
        %p264 = pneg %p147
        %p265 = pneg %p144
        %p266 = pneg %p168
        %p267 = pneg %p165
        %p268 = pneg %p194
        %p269 = pneg %p191
        %s270 = sand.u32 %s181, 1
        %s271 = scalar_lea.sflag [#allocation4], %s270
        %s272 = sand.u32 %s181, 1
        %s273 = smul.addr %s272, 128
        %s274 = scalar_lea.vmem [#allocation3], %s273
        %s275 = smul.u32 4, %s21
        %p276 = scmp.lt.s32.totalorder %s275, 7
        %s277 = scalar_select %p276, %s275, 7
        %s278 = smul.addr %s277, 5
        %s279 = smul.addr %s278, 8
        %s280 = scalar_lea.vmem %s0, %s279
        %s281 = smul.u32 4, %s21
        %s282 = smul.u32 4, %s21
        %v283 = vld [vmem:[%s280] sm:$0xff]
        %v284 = vld [vmem:[%s280 + $0x8] sm:$0xff]
        %v285 = vld [vmem:[%s280 + $0x10] sm:$0xff]
        %v286 = vld [vmem:[%s280 + $0x18] sm:$0xff]
        %v287 = vld [vmem:[%s280 + $0x20] sm:$0xf]
        %v288 = vld [vmem:[%s280 + $0x28] sm:$0xff]
        %v289 = vld [vmem:[%s280 + $0x30] sm:$0xff]
        %v290 = vld [vmem:[%s280 + $0x38] sm:$0xff]
        %v291 = vld [vmem:[%s280 + $0x40] sm:$0xff]
        %v292 = vld [vmem:[%s280 + $0x48] sm:$0xf]
        %v293 = vld [vmem:[%s280 + $0x50] sm:$0xff]
        %v294 = vld [vmem:[%s280 + $0x58] sm:$0xff]
        %v295 = vld [vmem:[%s280 + $0x60] sm:$0xff]
        %v296 = vld [vmem:[%s280 + $0x68] sm:$0xff]
        %v297 = vld [vmem:[%s280 + $0x70] sm:$0xf]
        %v298 = vld [vmem:[%s280 + $0x78] sm:$0xff]
        %v299 = vld [vmem:[%s280 + $0x80] sm:$0xff]
        %v300 = vld [vmem:[%s280 + $0x88] sm:$0xff]
        %v301 = vld [vmem:[%s280 + $0x90] sm:$0xff]
        %v302 = vld [vmem:[%s280 + $0x98] sm:$0xf]
        %v303 = vld [vmem:[%s1] sm:$0xff]
        %v304 = vld [vmem:[%s1 + $0x8] sm:$0xff]
        %v305 = vld [vmem:[%s1 + $0x10] sm:$0xff]
        %v306 = vld [vmem:[%s1 + $0x18] sm:$0xff]
        %v307 = vld [vmem:[%s1 + $0x20] sm:$0xff]
        %v308 = vld [vmem:[%s1 + $0x28] sm:$0xff]
        %v309 = vld [vmem:[%s1 + $0x30] sm:$0xff]
        %v310 = vld [vmem:[%s1 + $0x38] sm:$0xff]
        %v311 = vld [vmem:[%s1 + $0x40] sm:$0xff]
        %v312 = vld [vmem:[%s1 + $0x48] sm:$0xff]
        %v313 = vld [vmem:[%s1 + $0x50] sm:$0xff]
        %v314 = vld [vmem:[%s1 + $0x58] sm:$0xff]
        %v315 = vld [vmem:[%s1 + $0x60] sm:$0xff]
        %v316 = vld [vmem:[%s1 + $0x68] sm:$0xff]
        %v317 = vld [vmem:[%s1 + $0x70] sm:$0xff]
        %v318 = vld [vmem:[%s1 + $0x78] sm:$0xff]
        %vm339 = vcmask 1046528
        %v340 = vrot.slane %v283, 1
        %v341 = vrot.slane %v284, 1
        %v342 = vsel %vm339, %v340, %v341
        %v343 = vrot.slane %v285, 1
        %v344 = vsel %vm339, %v341, %v343
        %v345 = vrot.slane %v286, 1
        %v346 = vsel %vm339, %v343, %v345
        %v347 = vrot.slane %v287, 1
        %v348 = vsel %vm339, %v345, %v347
        %v349 = vrot.slane %v288, 1
        %v350 = vrot.slane %v289, 1
        %v351 = vsel %vm339, %v349, %v350
        %v352 = vrot.slane %v290, 1
        %v353 = vsel %vm339, %v350, %v352
        %v354 = vrot.slane %v291, 1
        %v355 = vsel %vm339, %v352, %v354
        %v356 = vrot.slane %v292, 1
        %v357 = vsel %vm339, %v354, %v356
        %v358 = vrot.slane %v293, 1
        %v359 = vrot.slane %v294, 1
        %v360 = vsel %vm339, %v358, %v359
        %v361 = vrot.slane %v295, 1
        %v362 = vsel %vm339, %v359, %v361
        %v363 = vrot.slane %v296, 1
        %v364 = vsel %vm339, %v361, %v363
        %v365 = vrot.slane %v297, 1
        %v366 = vsel %vm339, %v363, %v365
        %v367 = vrot.slane %v298, 1
        %v368 = vrot.slane %v299, 1
        %v369 = vsel %vm339, %v367, %v368
        %v370 = vrot.slane %v300, 1
        %v371 = vsel %vm339, %v368, %v370
        %v372 = vrot.slane %v301, 1
        %v373 = vsel %vm339, %v370, %v372
        %v374 = vrot.slane %v302, 1
        %v375 = vsel %vm339, %v372, %v374
        %s392 = scalar_lea.vmem %s1, 128
        %v393 = vld [vmem:[%s392] sm:$0xff]
        %v394 = vld [vmem:[%s392 + $0x8] sm:$0xff]
        %v395 = vld [vmem:[%s392 + $0x10] sm:$0xff]
        %v396 = vld [vmem:[%s392 + $0x18] sm:$0xff]
        %v397 = vld [vmem:[%s392 + $0x20] sm:$0xff]
        %v398 = vld [vmem:[%s392 + $0x28] sm:$0xff]
        %v399 = vld [vmem:[%s392 + $0x30] sm:$0xff]
        %v400 = vld [vmem:[%s392 + $0x38] sm:$0xff]
        %v401 = vld [vmem:[%s392 + $0x40] sm:$0xff]
        %v402 = vld [vmem:[%s392 + $0x48] sm:$0xff]
        %v403 = vld [vmem:[%s392 + $0x50] sm:$0xff]
        %v404 = vld [vmem:[%s392 + $0x58] sm:$0xff]
        %v405 = vld [vmem:[%s392 + $0x60] sm:$0xff]
        %v406 = vld [vmem:[%s392 + $0x68] sm:$0xff]
        %v407 = vld [vmem:[%s392 + $0x70] sm:$0xff]
        %v408 = vld [vmem:[%s392 + $0x78] sm:$0xff]
        %409 = vmatprep.subr.mxu0 0.0
        %410 = vmatpush1.msra.mxu0 %v393
        %411 = vmatprep.subr.mxu0 0.0
        %412 = vmatpush1.msra.mxu0 %v394
        %413 = vmatprep.subr.mxu0 0.0
        %414 = vmatpush1.msra.mxu0 %v395
        %415 = vmatprep.subr.mxu0 0.0
        %416 = vmatpush1.msra.mxu0 %v396
        %417 = vmatprep.subr.mxu0 0.0
        %418 = vmatpush1.msra.mxu0 %v397
        %419 = vmatprep.subr.mxu0 0.0
        %420 = vmatpush1.msra.mxu0 %v398
        %421 = vmatprep.subr.mxu0 0.0
        %422 = vmatpush1.msra.mxu0 %v399
        %423 = vmatprep.subr.mxu0 0.0
        %424 = vmatpush1.msra.mxu0 %v400
        %425 = vmatprep.subr.mxu0 0.0
        %426 = vmatpush1.msra.mxu0 %v401
        %427 = vmatprep.subr.mxu0 0.0
        %428 = vmatpush1.msra.mxu0 %v402
        %429 = vmatprep.subr.mxu0 0.0
        %430 = vmatpush1.msra.mxu0 %v403
        %431 = vmatprep.subr.mxu0 0.0
        %432 = vmatpush1.msra.mxu0 %v404
        %433 = vmatprep.subr.mxu0 0.0
        %434 = vmatpush1.msra.mxu0 %v405
        %435 = vmatprep.subr.mxu0 0.0
        %436 = vmatpush1.msra.mxu0 %v406
        %437 = vmatprep.subr.mxu0 0.0
        %438 = vmatpush1.msra.mxu0 %v407
        %439 = vmatprep.subr.mxu0 0.0
        %440 = vmatpush1.msra.mxu0 %v408
        %441 = vmatprep.subr.mxu0 0.0
        %442 = vmatpush1.msra.mxu0 0.0
        %443 = vmatprep.subr.mxu0 0.0
        %444 = vmatpush1.msra.mxu0 0.0
        %445 = vmatprep.subr.mxu0 0.0
        %446 = vmatpush1.msra.mxu0 0.0
        %447 = vmatprep.subr.mxu0 0.0
        %448 = vmatpush1.msra.mxu0 0.0
        %449 = vmatprep.subr.mxu0 0.0
        %450 = vmatpush1.msra.mxu0 0.0
        %451 = vmatprep.subr.mxu0 0.0
        %452 = vmatpush1.msra.mxu0 0.0
        %453 = vmatprep.subr.mxu0 0.0
        %454 = vmatpush1.msra.mxu0 0.0
        %455 = vmatprep.subr.mxu0 0.0
        %456 = vmatpush1.msra.mxu0 0.0
        %457 = vmatprep.subr.mxu0 0.0
        %458 = vmatpush1.msra.mxu0 0.0
        %459 = vmatprep.subr.mxu0 0.0
        %460 = vmatpush1.msra.mxu0 0.0
        %461 = vmatprep.subr.mxu0 0.0
        %462 = vmatpush1.msra.mxu0 0.0
        %463 = vmatprep.subr.mxu0 0.0
        %464 = vmatpush1.msra.mxu0 0.0
        %465 = vmatprep.subr.mxu0 0.0
        %466 = vmatpush1.msra.mxu0 0.0
        %467 = vmatprep.subr.mxu0 0.0
        %468 = vmatpush1.msra.mxu0 0.0
        %469 = vmatprep.subr.mxu0 0.0
        %470 = vmatpush1.msra.mxu0 0.0
        %471 = vmatprep.subr.mxu0 0.0
        %472 = vmatpush1.msra.mxu0 0.0
        %473 = vmatprep.mubr.f32.mxu0 0.0
        %474 = vmatmul.mubr.f32.gmra.mrb[0].mxu0 %v342
        %v475 = vpop.f32.mrb[0].mxu0
        %v476 = vadd.f32 0.0, %v475
        %v477 = vpop.f32.mrb[0].mxu0
        %478 = vmatprep.mubr.f32.mxu0 0.0
        %479 = vmatmul.mubr.f32.gmra.mrb[0].mxu0 %v344
        %v480 = vpop.f32.mrb[0].mxu0
        %v481 = vadd.f32 0.0, %v480
        %v482 = vpop.f32.mrb[0].mxu0
        %483 = vmatprep.mubr.f32.mxu0 0.0
        %484 = vmatmul.mubr.f32.gmra.mrb[0].mxu0 %v346
        %v485 = vpop.f32.mrb[0].mxu0
        %v486 = vadd.f32 0.0, %v485
        %v487 = vpop.f32.mrb[0].mxu0
        %488 = vmatprep.mubr.f32.mxu0 0.0
        %489 = vmatmul.mubr.f32.gmra.mrb[0].mxu0 %v348
        %v490 = vpop.f32.mrb[0].mxu0
        %v491 = vadd.f32 0.0, %v490
        %v492 = vpop.f32.mrb[0].mxu0
        %493 = vmatprep.mubr.f32.mxu0 0.0
        %494 = vmatmul.mubr.f32.gmra.mrb[0].mxu0 %v351
        %v495 = vpop.f32.mrb[0].mxu0
        %v496 = vadd.f32 0.0, %v495
        %v497 = vpop.f32.mrb[0].mxu0
        %498 = vmatprep.mubr.f32.mxu0 0.0
        %499 = vmatmul.mubr.f32.gmra.mrb[0].mxu0 %v353
        %v500 = vpop.f32.mrb[0].mxu0
        %v501 = vadd.f32 0.0, %v500
        %v502 = vpop.f32.mrb[0].mxu0
        %503 = vmatprep.mubr.f32.mxu0 0.0
        %504 = vmatmul.mubr.f32.gmra.mrb[0].mxu0 %v355
        %v505 = vpop.f32.mrb[0].mxu0
        %v506 = vadd.f32 0.0, %v505
        %v507 = vpop.f32.mrb[0].mxu0
        %508 = vmatprep.mubr.f32.mxu0 0.0
        %509 = vmatmul.mubr.f32.gmra.mrb[0].mxu0 %v357
        %v510 = vpop.f32.mrb[0].mxu0
        %v511 = vadd.f32 0.0, %v510
        %v512 = vpop.f32.mrb[0].mxu0
        %513 = vmatprep.mubr.f32.mxu0 0.0
        %514 = vmatmul.mubr.f32.gmra.mrb[0].mxu0 %v360
        %v515 = vpop.f32.mrb[0].mxu0
        %v516 = vadd.f32 0.0, %v515
        %v517 = vpop.f32.mrb[0].mxu0
        %518 = vmatprep.mubr.f32.mxu0 0.0
        %519 = vmatmul.mubr.f32.gmra.mrb[0].mxu0 %v362
        %v520 = vpop.f32.mrb[0].mxu0
        %v521 = vadd.f32 0.0, %v520
        %v522 = vpop.f32.mrb[0].mxu0
        %523 = vmatprep.mubr.f32.mxu0 0.0
        %524 = vmatmul.mubr.f32.gmra.mrb[0].mxu0 %v364
        %v525 = vpop.f32.mrb[0].mxu0
        %v526 = vadd.f32 0.0, %v525
        %v527 = vpop.f32.mrb[0].mxu0
        %528 = vmatprep.mubr.f32.mxu0 0.0
        %529 = vmatmul.mubr.f32.gmra.mrb[0].mxu0 %v366
        %v530 = vpop.f32.mrb[0].mxu0
        %v531 = vadd.f32 0.0, %v530
        %v532 = vpop.f32.mrb[0].mxu0
        %533 = vmatprep.mubr.f32.mxu0 0.0
        %534 = vmatmul.mubr.f32.gmra.mrb[0].mxu0 %v369
        %v535 = vpop.f32.mrb[0].mxu0
        %v536 = vadd.f32 0.0, %v535
        %v537 = vpop.f32.mrb[0].mxu0
        %538 = vmatprep.mubr.f32.mxu0 0.0
        %539 = vmatmul.mubr.f32.gmra.mrb[0].mxu0 %v371
        %v540 = vpop.f32.mrb[0].mxu0
        %v541 = vadd.f32 0.0, %v540
        %v542 = vpop.f32.mrb[0].mxu0
        %543 = vmatprep.mubr.f32.mxu0 0.0
        %544 = vmatmul.mubr.f32.gmra.mrb[0].mxu0 %v373
        %v545 = vpop.f32.mrb[0].mxu0
        %v546 = vadd.f32 0.0, %v545
        %v547 = vpop.f32.mrb[0].mxu0
        %548 = vmatprep.mubr.f32.mxu0 0.0
        %549 = vmatmul.mubr.f32.gmra.mrb[0].mxu0 %v375
        %v550 = vpop.f32.mrb[0].mxu0
        %v551 = vadd.f32 0.0, %v550
        %v552 = vpop.f32.mrb[0].mxu0
        %553 = vdwg.mxu0
        %554 = vmatprep.subr.mxu0 0.0
        %555 = vmatpush1.msra.mxu0 %v303
        %556 = vmatprep.subr.mxu0 0.0
        %557 = vmatpush1.msra.mxu0 %v304
        %558 = vmatprep.subr.mxu0 0.0
        %559 = vmatpush1.msra.mxu0 %v305
        %560 = vmatprep.subr.mxu0 0.0
        %561 = vmatpush1.msra.mxu0 %v306
        %562 = vmatprep.subr.mxu0 0.0
        %563 = vmatpush1.msra.mxu0 %v307
        %564 = vmatprep.subr.mxu0 0.0
        %565 = vmatpush1.msra.mxu0 %v308
        %566 = vmatprep.subr.mxu0 0.0
        %567 = vmatpush1.msra.mxu0 %v309
        %568 = vmatprep.subr.mxu0 0.0
        %569 = vmatpush1.msra.mxu0 %v310
        %570 = vmatprep.subr.mxu0 0.0
        %571 = vmatpush1.msra.mxu0 %v311
        %572 = vmatprep.subr.mxu0 0.0
        %573 = vmatpush1.msra.mxu0 %v312
        %574 = vmatprep.subr.mxu0 0.0
        %575 = vmatpush1.msra.mxu0 %v313
        %576 = vmatprep.subr.mxu0 0.0
        %577 = vmatpush1.msra.mxu0 %v314
        %578 = vmatprep.subr.mxu0 0.0
        %579 = vmatpush1.msra.mxu0 %v315
        %580 = vmatprep.subr.mxu0 0.0
        %581 = vmatpush1.msra.mxu0 %v316
        %582 = vmatprep.subr.mxu0 0.0
        %583 = vmatpush1.msra.mxu0 %v317
        %584 = vmatprep.subr.mxu0 0.0
        %585 = vmatpush1.msra.mxu0 %v318
        %586 = vmatprep.subr.mxu0 0.0
        %587 = vmatpush1.msra.mxu0 0.0
        %588 = vmatprep.subr.mxu0 0.0
        %589 = vmatpush1.msra.mxu0 0.0
        %590 = vmatprep.subr.mxu0 0.0
        %591 = vmatpush1.msra.mxu0 0.0
        %592 = vmatprep.subr.mxu0 0.0
        %593 = vmatpush1.msra.mxu0 0.0
        %594 = vmatprep.subr.mxu0 0.0
        %595 = vmatpush1.msra.mxu0 0.0
        %596 = vmatprep.subr.mxu0 0.0
        %597 = vmatpush1.msra.mxu0 0.0
        %598 = vmatprep.subr.mxu0 0.0
        %599 = vmatpush1.msra.mxu0 0.0
        %600 = vmatprep.subr.mxu0 0.0
        %601 = vmatpush1.msra.mxu0 0.0
        %602 = vmatprep.subr.mxu0 0.0
        %603 = vmatpush1.msra.mxu0 0.0
        %604 = vmatprep.subr.mxu0 0.0
        %605 = vmatpush1.msra.mxu0 0.0
        %606 = vmatprep.subr.mxu0 0.0
        %607 = vmatpush1.msra.mxu0 0.0
        %608 = vmatprep.subr.mxu0 0.0
        %609 = vmatpush1.msra.mxu0 0.0
        %610 = vmatprep.subr.mxu0 0.0
        %611 = vmatpush1.msra.mxu0 0.0
        %612 = vmatprep.subr.mxu0 0.0
        %613 = vmatpush1.msra.mxu0 0.0
        %614 = vmatprep.subr.mxu0 0.0
        %615 = vmatpush1.msra.mxu0 0.0
        %616 = vmatprep.subr.mxu0 0.0
        %617 = vmatpush1.msra.mxu0 0.0
        %618 = vmatprep.mubr.f32.mxu0 0.0
        %619 = vmatmul.mubr.f32.gmra.mrb[0].mxu0 %v283
        %v620 = vpop.f32.mrb[0].mxu0
        %v621 = vadd.f32 %v476, %v620
        %v622 = vpop.f32.mrb[0].mxu0
        %623 = vmatprep.mubr.f32.mxu0 0.0
        %624 = vmatmul.mubr.f32.gmra.mrb[0].mxu0 %v284
        %v625 = vpop.f32.mrb[0].mxu0
        %v626 = vadd.f32 %v481, %v625
        %v627 = vpop.f32.mrb[0].mxu0
        %628 = vmatprep.mubr.f32.mxu0 0.0
        %629 = vmatmul.mubr.f32.gmra.mrb[0].mxu0 %v285
        %v630 = vpop.f32.mrb[0].mxu0
        %v631 = vadd.f32 %v486, %v630
        %v632 = vpop.f32.mrb[0].mxu0
        %633 = vmatprep.mubr.f32.mxu0 0.0
        %634 = vmatmul.mubr.f32.gmra.mrb[0].mxu0 %v286
        %v635 = vpop.f32.mrb[0].mxu0
        %v636 = vadd.f32 %v491, %v635
        %v637 = vpop.f32.mrb[0].mxu0
        %638 = vmatprep.mubr.f32.mxu0 0.0
        %639 = vmatmul.mubr.f32.gmra.mrb[0].mxu0 %v288
        %v640 = vpop.f32.mrb[0].mxu0
        %v641 = vadd.f32 %v496, %v640
        %v642 = vpop.f32.mrb[0].mxu0
        %643 = vmatprep.mubr.f32.mxu0 0.0
        %644 = vmatmul.mubr.f32.gmra.mrb[0].mxu0 %v289
        %v645 = vpop.f32.mrb[0].mxu0
        %v646 = vadd.f32 %v501, %v645
        %v647 = vpop.f32.mrb[0].mxu0
        %648 = vmatprep.mubr.f32.mxu0 0.0
        %649 = vmatmul.mubr.f32.gmra.mrb[0].mxu0 %v290
        %v650 = vpop.f32.mrb[0].mxu0
        %v651 = vadd.f32 %v506, %v650
        %v652 = vpop.f32.mrb[0].mxu0
        %653 = vmatprep.mubr.f32.mxu0 0.0
        %654 = vmatmul.mubr.f32.gmra.mrb[0].mxu0 %v291
        %v655 = vpop.f32.mrb[0].mxu0
        %v656 = vadd.f32 %v511, %v655
        %v657 = vpop.f32.mrb[0].mxu0
        %658 = vmatprep.mubr.f32.mxu0 0.0
        %659 = vmatmul.mubr.f32.gmra.mrb[0].mxu0 %v293
        %v660 = vpop.f32.mrb[0].mxu0
        %v661 = vadd.f32 %v516, %v660
        %v662 = vpop.f32.mrb[0].mxu0
        %663 = vmatprep.mubr.f32.mxu0 0.0
        %664 = vmatmul.mubr.f32.gmra.mrb[0].mxu0 %v294
        %v665 = vpop.f32.mrb[0].mxu0
        %v666 = vadd.f32 %v521, %v665
        %v667 = vpop.f32.mrb[0].mxu0
        %668 = vmatprep.mubr.f32.mxu0 0.0
        %669 = vmatmul.mubr.f32.gmra.mrb[0].mxu0 %v295
        %v670 = vpop.f32.mrb[0].mxu0
        %v671 = vadd.f32 %v526, %v670
        %v672 = vpop.f32.mrb[0].mxu0
        %673 = vmatprep.mubr.f32.mxu0 0.0
        %674 = vmatmul.mubr.f32.gmra.mrb[0].mxu0 %v296
        %v675 = vpop.f32.mrb[0].mxu0
        %v676 = vadd.f32 %v531, %v675
        %v677 = vpop.f32.mrb[0].mxu0
        %678 = vmatprep.mubr.f32.mxu0 0.0
        %679 = vmatmul.mubr.f32.gmra.mrb[0].mxu0 %v298
        %v680 = vpop.f32.mrb[0].mxu0
        %v681 = vadd.f32 %v536, %v680
        %v682 = vpop.f32.mrb[0].mxu0
        %683 = vmatprep.mubr.f32.mxu0 0.0
        %684 = vmatmul.mubr.f32.gmra.mrb[0].mxu0 %v299
        %v685 = vpop.f32.mrb[0].mxu0
        %v686 = vadd.f32 %v541, %v685
        %v687 = vpop.f32.mrb[0].mxu0
        %688 = vmatprep.mubr.f32.mxu0 0.0
        %689 = vmatmul.mubr.f32.gmra.mrb[0].mxu0 %v300
        %v690 = vpop.f32.mrb[0].mxu0
        %v691 = vadd.f32 %v546, %v690
        %v692 = vpop.f32.mrb[0].mxu0
        %693 = vmatprep.mubr.f32.mxu0 0.0
        %694 = vmatmul.mubr.f32.gmra.mrb[0].mxu0 %v301
        %v695 = vpop.f32.mrb[0].mxu0
        %v696 = vadd.f32 %v551, %v695
        %v697 = vpop.f32.mrb[0].mxu0
        %698 = vdwg.mxu0
        %vm699 = vcmask 1045504
        %v700 = vrot.slane %v283, 2
        %v701 = vrot.slane %v284, 2
        %v702 = vsel %vm699, %v700, %v701
        %v703 = vrot.slane %v285, 2
        %v704 = vsel %vm699, %v701, %v703
        %v705 = vrot.slane %v286, 2
        %v706 = vsel %vm699, %v703, %v705
        %v707 = vrot.slane %v287, 2
        %v708 = vsel %vm699, %v705, %v707
        %v709 = vrot.slane %v288, 2
        %v710 = vrot.slane %v289, 2
        %v711 = vsel %vm699, %v709, %v710
        %v712 = vrot.slane %v290, 2
        %v713 = vsel %vm699, %v710, %v712
        %v714 = vrot.slane %v291, 2
        %v715 = vsel %vm699, %v712, %v714
        %v716 = vrot.slane %v292, 2
        %v717 = vsel %vm699, %v714, %v716
        %v718 = vrot.slane %v293, 2
        %v719 = vrot.slane %v294, 2
        %v720 = vsel %vm699, %v718, %v719
        %v721 = vrot.slane %v295, 2
        %v722 = vsel %vm699, %v719, %v721
        %v723 = vrot.slane %v296, 2
        %v724 = vsel %vm699, %v721, %v723
        %v725 = vrot.slane %v297, 2
        %v726 = vsel %vm699, %v723, %v725
        %v727 = vrot.slane %v298, 2
        %v728 = vrot.slane %v299, 2
        %v729 = vsel %vm699, %v727, %v728
        %v730 = vrot.slane %v300, 2
        %v731 = vsel %vm699, %v728, %v730
        %v732 = vrot.slane %v301, 2
        %v733 = vsel %vm699, %v730, %v732
        %v734 = vrot.slane %v302, 2
        %v735 = vsel %vm699, %v732, %v734
        %s752 = scalar_lea.vmem %s1, 256
        %v753 = vld [vmem:[%s752] sm:$0xff]
        %v754 = vld [vmem:[%s752 + $0x8] sm:$0xff]
        %v755 = vld [vmem:[%s752 + $0x10] sm:$0xff]
        %v756 = vld [vmem:[%s752 + $0x18] sm:$0xff]
        %v757 = vld [vmem:[%s752 + $0x20] sm:$0xff]
        %v758 = vld [vmem:[%s752 + $0x28] sm:$0xff]
        %v759 = vld [vmem:[%s752 + $0x30] sm:$0xff]
        %v760 = vld [vmem:[%s752 + $0x38] sm:$0xff]
        %v761 = vld [vmem:[%s752 + $0x40] sm:$0xff]
        %v762 = vld [vmem:[%s752 + $0x48] sm:$0xff]
        %v763 = vld [vmem:[%s752 + $0x50] sm:$0xff]
        %v764 = vld [vmem:[%s752 + $0x58] sm:$0xff]
        %v765 = vld [vmem:[%s752 + $0x60] sm:$0xff]
        %v766 = vld [vmem:[%s752 + $0x68] sm:$0xff]
        %v767 = vld [vmem:[%s752 + $0x70] sm:$0xff]
        %v768 = vld [vmem:[%s752 + $0x78] sm:$0xff]
        %769 = vmatprep.subr.mxu0 0.0
        %770 = vmatpush1.msra.mxu0 %v753
        %771 = vmatprep.subr.mxu0 0.0
        %772 = vmatpush1.msra.mxu0 %v754
        %773 = vmatprep.subr.mxu0 0.0
        %774 = vmatpush1.msra.mxu0 %v755
        %775 = vmatprep.subr.mxu0 0.0
        %776 = vmatpush1.msra.mxu0 %v756
        %777 = vmatprep.subr.mxu0 0.0
        %778 = vmatpush1.msra.mxu0 %v757
        %779 = vmatprep.subr.mxu0 0.0
        %780 = vmatpush1.msra.mxu0 %v758
        %781 = vmatprep.subr.mxu0 0.0
        %782 = vmatpush1.msra.mxu0 %v759
        %783 = vmatprep.subr.mxu0 0.0
        %784 = vmatpush1.msra.mxu0 %v760
        %785 = vmatprep.subr.mxu0 0.0
        %786 = vmatpush1.msra.mxu0 %v761
        %787 = vmatprep.subr.mxu0 0.0
        %788 = vmatpush1.msra.mxu0 %v762
        %789 = vmatprep.subr.mxu0 0.0
        %790 = vmatpush1.msra.mxu0 %v763
        %791 = vmatprep.subr.mxu0 0.0
        %792 = vmatpush1.msra.mxu0 %v764
        %793 = vmatprep.subr.mxu0 0.0
        %794 = vmatpush1.msra.mxu0 %v765
        %795 = vmatprep.subr.mxu0 0.0
        %796 = vmatpush1.msra.mxu0 %v766
        %797 = vmatprep.subr.mxu0 0.0
        %798 = vmatpush1.msra.mxu0 %v767
        %799 = vmatprep.subr.mxu0 0.0
        %800 = vmatpush1.msra.mxu0 %v768
        %801 = vmatprep.subr.mxu0 0.0
        %802 = vmatpush1.msra.mxu0 0.0
        %803 = vmatprep.subr.mxu0 0.0
        %804 = vmatpush1.msra.mxu0 0.0
        %805 = vmatprep.subr.mxu0 0.0
        %806 = vmatpush1.msra.mxu0 0.0
        %807 = vmatprep.subr.mxu0 0.0
        %808 = vmatpush1.msra.mxu0 0.0
        %809 = vmatprep.subr.mxu0 0.0
        %810 = vmatpush1.msra.mxu0 0.0
        %811 = vmatprep.subr.mxu0 0.0
        %812 = vmatpush1.msra.mxu0 0.0
        %813 = vmatprep.subr.mxu0 0.0
        %814 = vmatpush1.msra.mxu0 0.0
        %815 = vmatprep.subr.mxu0 0.0
        %816 = vmatpush1.msra.mxu0 0.0
        %817 = vmatprep.subr.mxu0 0.0
        %818 = vmatpush1.msra.mxu0 0.0
        %819 = vmatprep.subr.mxu0 0.0
        %820 = vmatpush1.msra.mxu0 0.0
        %821 = vmatprep.subr.mxu0 0.0
        %822 = vmatpush1.msra.mxu0 0.0
        %823 = vmatprep.subr.mxu0 0.0
        %824 = vmatpush1.msra.mxu0 0.0
        %825 = vmatprep.subr.mxu0 0.0
        %826 = vmatpush1.msra.mxu0 0.0
        %827 = vmatprep.subr.mxu0 0.0
        %828 = vmatpush1.msra.mxu0 0.0
        %829 = vmatprep.subr.mxu0 0.0
        %830 = vmatpush1.msra.mxu0 0.0
        %831 = vmatprep.subr.mxu0 0.0
        %832 = vmatpush1.msra.mxu0 0.0
        %833 = vmatprep.mubr.f32.mxu0 0.0
        %834 = vmatmul.mubr.f32.gmra.mrb[0].mxu0 %v702
        %v835 = vpop.f32.mrb[0].mxu0
        %v836 = vadd.f32 0.0, %v835
        %v837 = vpop.f32.mrb[0].mxu0
        %838 = vmatprep.mubr.f32.mxu0 0.0
        %839 = vmatmul.mubr.f32.gmra.mrb[0].mxu0 %v704
        %v840 = vpop.f32.mrb[0].mxu0
        %v841 = vadd.f32 0.0, %v840
        %v842 = vpop.f32.mrb[0].mxu0
        %843 = vmatprep.mubr.f32.mxu0 0.0
        %844 = vmatmul.mubr.f32.gmra.mrb[0].mxu0 %v706
        %v845 = vpop.f32.mrb[0].mxu0
        %v846 = vadd.f32 0.0, %v845
        %v847 = vpop.f32.mrb[0].mxu0
        %848 = vmatprep.mubr.f32.mxu0 0.0
        %849 = vmatmul.mubr.f32.gmra.mrb[0].mxu0 %v708
        %v850 = vpop.f32.mrb[0].mxu0
        %v851 = vadd.f32 0.0, %v850
        %v852 = vpop.f32.mrb[0].mxu0
        %853 = vmatprep.mubr.f32.mxu0 0.0
        %854 = vmatmul.mubr.f32.gmra.mrb[0].mxu0 %v711
        %v855 = vpop.f32.mrb[0].mxu0
        %v856 = vadd.f32 0.0, %v855
        %v857 = vpop.f32.mrb[0].mxu0
        %858 = vmatprep.mubr.f32.mxu0 0.0
        %859 = vmatmul.mubr.f32.gmra.mrb[0].mxu0 %v713
        %v860 = vpop.f32.mrb[0].mxu0
        %v861 = vadd.f32 0.0, %v860
        %v862 = vpop.f32.mrb[0].mxu0
        %863 = vmatprep.mubr.f32.mxu0 0.0
        %864 = vmatmul.mubr.f32.gmra.mrb[0].mxu0 %v715
        %v865 = vpop.f32.mrb[0].mxu0
        %v866 = vadd.f32 0.0, %v865
        %v867 = vpop.f32.mrb[0].mxu0
        %868 = vmatprep.mubr.f32.mxu0 0.0
        %869 = vmatmul.mubr.f32.gmra.mrb[0].mxu0 %v717
        %v870 = vpop.f32.mrb[0].mxu0
        %v871 = vadd.f32 0.0, %v870
        %v872 = vpop.f32.mrb[0].mxu0
        %873 = vmatprep.mubr.f32.mxu0 0.0
        %874 = vmatmul.mubr.f32.gmra.mrb[0].mxu0 %v720
        %v875 = vpop.f32.mrb[0].mxu0
        %v876 = vadd.f32 0.0, %v875
        %v877 = vpop.f32.mrb[0].mxu0
        %878 = vmatprep.mubr.f32.mxu0 0.0
        %879 = vmatmul.mubr.f32.gmra.mrb[0].mxu0 %v722
        %v880 = vpop.f32.mrb[0].mxu0
        %v881 = vadd.f32 0.0, %v880
        %v882 = vpop.f32.mrb[0].mxu0
        %883 = vmatprep.mubr.f32.mxu0 0.0
        %884 = vmatmul.mubr.f32.gmra.mrb[0].mxu0 %v724
        %v885 = vpop.f32.mrb[0].mxu0
        %v886 = vadd.f32 0.0, %v885
        %v887 = vpop.f32.mrb[0].mxu0
        %888 = vmatprep.mubr.f32.mxu0 0.0
        %889 = vmatmul.mubr.f32.gmra.mrb[0].mxu0 %v726
        %v890 = vpop.f32.mrb[0].mxu0
        %v891 = vadd.f32 0.0, %v890
        %v892 = vpop.f32.mrb[0].mxu0
        %893 = vmatprep.mubr.f32.mxu0 0.0
        %894 = vmatmul.mubr.f32.gmra.mrb[0].mxu0 %v729
        %v895 = vpop.f32.mrb[0].mxu0
        %v896 = vadd.f32 0.0, %v895
        %v897 = vpop.f32.mrb[0].mxu0
        %898 = vmatprep.mubr.f32.mxu0 0.0
        %899 = vmatmul.mubr.f32.gmra.mrb[0].mxu0 %v731
        %v900 = vpop.f32.mrb[0].mxu0
        %v901 = vadd.f32 0.0, %v900
        %v902 = vpop.f32.mrb[0].mxu0
        %903 = vmatprep.mubr.f32.mxu0 0.0
        %904 = vmatmul.mubr.f32.gmra.mrb[0].mxu0 %v733
        %v905 = vpop.f32.mrb[0].mxu0
        %v906 = vadd.f32 0.0, %v905
        %v907 = vpop.f32.mrb[0].mxu0
        %908 = vmatprep.mubr.f32.mxu0 0.0
        %909 = vmatmul.mubr.f32.gmra.mrb[0].mxu0 %v735
        %v910 = vpop.f32.mrb[0].mxu0
        %v911 = vadd.f32 0.0, %v910
        %v912 = vpop.f32.mrb[0].mxu0
        %913 = vdwg.mxu0
        %v914 = vadd.f32 %v621, %v836
        %v915 = vadd.f32 %v626, %v841
        %v916 = vadd.f32 %v631, %v846
        %v917 = vadd.f32 %v636, %v851
        %v918 = vadd.f32 %v641, %v856
        %v919 = vadd.f32 %v646, %v861
        %v920 = vadd.f32 %v651, %v866
        %v921 = vadd.f32 %v656, %v871
        %v922 = vadd.f32 %v661, %v876
        %v923 = vadd.f32 %v666, %v881
        %v924 = vadd.f32 %v671, %v886
        %v925 = vadd.f32 %v676, %v891
        %v926 = vadd.f32 %v681, %v896
        %v927 = vadd.f32 %v686, %v901
        %v928 = vadd.f32 %v691, %v906
        %v929 = vadd.f32 %v696, %v911
        %vm930 = vcmask 1044480
        %v931 = vrot.slane %v283, 3
        %v932 = vrot.slane %v284, 3
        %v933 = vsel %vm930, %v931, %v932
        %v934 = vrot.slane %v285, 3
        %v935 = vsel %vm930, %v932, %v934
        %v936 = vrot.slane %v286, 3
        %v937 = vsel %vm930, %v934, %v936
        %v938 = vrot.slane %v287, 3
        %v939 = vsel %vm930, %v936, %v938
        %v940 = vrot.slane %v288, 3
        %v941 = vrot.slane %v289, 3
        %v942 = vsel %vm930, %v940, %v941
        %v943 = vrot.slane %v290, 3
        %v944 = vsel %vm930, %v941, %v943
        %v945 = vrot.slane %v291, 3
        %v946 = vsel %vm930, %v943, %v945
        %v947 = vrot.slane %v292, 3
        %v948 = vsel %vm930, %v945, %v947
        %v949 = vrot.slane %v293, 3
        %v950 = vrot.slane %v294, 3
        %v951 = vsel %vm930, %v949, %v950
        %v952 = vrot.slane %v295, 3
        %v953 = vsel %vm930, %v950, %v952
        %v954 = vrot.slane %v296, 3
        %v955 = vsel %vm930, %v952, %v954
        %v956 = vrot.slane %v297, 3
        %v957 = vsel %vm930, %v954, %v956
        %v958 = vrot.slane %v298, 3
        %v959 = vrot.slane %v299, 3
        %v960 = vsel %vm930, %v958, %v959
        %v961 = vrot.slane %v300, 3
        %v962 = vsel %vm930, %v959, %v961
        %v963 = vrot.slane %v301, 3
        %v964 = vsel %vm930, %v961, %v963
        %v965 = vrot.slane %v302, 3
        %v966 = vsel %vm930, %v963, %v965
        %s983 = scalar_lea.vmem %s1, 384
        %v984 = vld [vmem:[%s983] sm:$0xff]
        %v985 = vld [vmem:[%s983 + $0x8] sm:$0xff]
        %v986 = vld [vmem:[%s983 + $0x10] sm:$0xff]
        %v987 = vld [vmem:[%s983 + $0x18] sm:$0xff]
        %v988 = vld [vmem:[%s983 + $0x20] sm:$0xff]
        %v989 = vld [vmem:[%s983 + $0x28] sm:$0xff]
        %v990 = vld [vmem:[%s983 + $0x30] sm:$0xff]
        %v991 = vld [vmem:[%s983 + $0x38] sm:$0xff]
        %v992 = vld [vmem:[%s983 + $0x40] sm:$0xff]
        %v993 = vld [vmem:[%s983 + $0x48] sm:$0xff]
        %v994 = vld [vmem:[%s983 + $0x50] sm:$0xff]
        %v995 = vld [vmem:[%s983 + $0x58] sm:$0xff]
        %v996 = vld [vmem:[%s983 + $0x60] sm:$0xff]
        %v997 = vld [vmem:[%s983 + $0x68] sm:$0xff]
        %v998 = vld [vmem:[%s983 + $0x70] sm:$0xff]
        %v999 = vld [vmem:[%s983 + $0x78] sm:$0xff]
        %1000 = vmatprep.subr.mxu0 0.0
        %1001 = vmatpush1.msra.mxu0 %v984
        %1002 = vmatprep.subr.mxu0 0.0
        %1003 = vmatpush1.msra.mxu0 %v985
        %1004 = vmatprep.subr.mxu0 0.0
        %1005 = vmatpush1.msra.mxu0 %v986
        %1006 = vmatprep.subr.mxu0 0.0
        %1007 = vmatpush1.msra.mxu0 %v987
        %1008 = vmatprep.subr.mxu0 0.0
        %1009 = vmatpush1.msra.mxu0 %v988
        %1010 = vmatprep.subr.mxu0 0.0
        %1011 = vmatpush1.msra.mxu0 %v989
        %1012 = vmatprep.subr.mxu0 0.0
        %1013 = vmatpush1.msra.mxu0 %v990
        %1014 = vmatprep.subr.mxu0 0.0
        %1015 = vmatpush1.msra.mxu0 %v991
        %1016 = vmatprep.subr.mxu0 0.0
        %1017 = vmatpush1.msra.mxu0 %v992
        %1018 = vmatprep.subr.mxu0 0.0
        %1019 = vmatpush1.msra.mxu0 %v993
        %1020 = vmatprep.subr.mxu0 0.0
        %1021 = vmatpush1.msra.mxu0 %v994
        %1022 = vmatprep.subr.mxu0 0.0
        %1023 = vmatpush1.msra.mxu0 %v995
        %1024 = vmatprep.subr.mxu0 0.0
        %1025 = vmatpush1.msra.mxu0 %v996
        %1026 = vmatprep.subr.mxu0 0.0
        %1027 = vmatpush1.msra.mxu0 %v997
        %1028 = vmatprep.subr.mxu0 0.0
        %1029 = vmatpush1.msra.mxu0 %v998
        %1030 = vmatprep.subr.mxu0 0.0
        %1031 = vmatpush1.msra.mxu0 %v999
        %1032 = vmatprep.subr.mxu0 0.0
        %1033 = vmatpush1.msra.mxu0 0.0
        %1034 = vmatprep.subr.mxu0 0.0
        %1035 = vmatpush1.msra.mxu0 0.0
        %1036 = vmatprep.subr.mxu0 0.0
        %1037 = vmatpush1.msra.mxu0 0.0
        %1038 = vmatprep.subr.mxu0 0.0
        %1039 = vmatpush1.msra.mxu0 0.0
        %1040 = vmatprep.subr.mxu0 0.0
        %1041 = vmatpush1.msra.mxu0 0.0
        %1042 = vmatprep.subr.mxu0 0.0
        %1043 = vmatpush1.msra.mxu0 0.0
        %1044 = vmatprep.subr.mxu0 0.0
        %1045 = vmatpush1.msra.mxu0 0.0
        %1046 = vmatprep.subr.mxu0 0.0
        %1047 = vmatpush1.msra.mxu0 0.0
        %1048 = vmatprep.subr.mxu0 0.0
        %1049 = vmatpush1.msra.mxu0 0.0
        %1050 = vmatprep.subr.mxu0 0.0
        %1051 = vmatpush1.msra.mxu0 0.0
        %1052 = vmatprep.subr.mxu0 0.0
        %1053 = vmatpush1.msra.mxu0 0.0
        %1054 = vmatprep.subr.mxu0 0.0
        %1055 = vmatpush1.msra.mxu0 0.0
        %1056 = vmatprep.subr.mxu0 0.0
        %1057 = vmatpush1.msra.mxu0 0.0
        %1058 = vmatprep.subr.mxu0 0.0
        %1059 = vmatpush1.msra.mxu0 0.0
        %1060 = vmatprep.subr.mxu0 0.0
        %1061 = vmatpush1.msra.mxu0 0.0
        %1062 = vmatprep.subr.mxu0 0.0
        %1063 = vmatpush1.msra.mxu0 0.0
        %1064 = vmatprep.mubr.f32.mxu0 0.0
        %1065 = vmatmul.mubr.f32.gmra.mrb[0].mxu0 %v933
        %v1066 = vpop.f32.mrb[0].mxu0
        %v1067 = vadd.f32 0.0, %v1066
        %v1068 = vpop.f32.mrb[0].mxu0
        %1069 = vmatprep.mubr.f32.mxu0 0.0
        %1070 = vmatmul.mubr.f32.gmra.mrb[0].mxu0 %v935
        %v1071 = vpop.f32.mrb[0].mxu0
        %v1072 = vadd.f32 0.0, %v1071
        %v1073 = vpop.f32.mrb[0].mxu0
        %1074 = vmatprep.mubr.f32.mxu0 0.0
        %1075 = vmatmul.mubr.f32.gmra.mrb[0].mxu0 %v937
        %v1076 = vpop.f32.mrb[0].mxu0
        %v1077 = vadd.f32 0.0, %v1076
        %v1078 = vpop.f32.mrb[0].mxu0
        %1079 = vmatprep.mubr.f32.mxu0 0.0
        %1080 = vmatmul.mubr.f32.gmra.mrb[0].mxu0 %v939
        %v1081 = vpop.f32.mrb[0].mxu0
        %v1082 = vadd.f32 0.0, %v1081
        %v1083 = vpop.f32.mrb[0].mxu0
        %1084 = vmatprep.mubr.f32.mxu0 0.0
        %1085 = vmatmul.mubr.f32.gmra.mrb[0].mxu0 %v942
        %v1086 = vpop.f32.mrb[0].mxu0
        %v1087 = vadd.f32 0.0, %v1086
        %v1088 = vpop.f32.mrb[0].mxu0
        %1089 = vmatprep.mubr.f32.mxu0 0.0
        %1090 = vmatmul.mubr.f32.gmra.mrb[0].mxu0 %v944
        %v1091 = vpop.f32.mrb[0].mxu0
        %v1092 = vadd.f32 0.0, %v1091
        %v1093 = vpop.f32.mrb[0].mxu0
        %1094 = vmatprep.mubr.f32.mxu0 0.0
        %1095 = vmatmul.mubr.f32.gmra.mrb[0].mxu0 %v946
        %v1096 = vpop.f32.mrb[0].mxu0
        %v1097 = vadd.f32 0.0, %v1096
        %v1098 = vpop.f32.mrb[0].mxu0
        %1099 = vmatprep.mubr.f32.mxu0 0.0
        %1100 = vmatmul.mubr.f32.gmra.mrb[0].mxu0 %v948
        %v1101 = vpop.f32.mrb[0].mxu0
        %v1102 = vadd.f32 0.0, %v1101
        %v1103 = vpop.f32.mrb[0].mxu0
        %1104 = vmatprep.mubr.f32.mxu0 0.0
        %1105 = vmatmul.mubr.f32.gmra.mrb[0].mxu0 %v951
        %v1106 = vpop.f32.mrb[0].mxu0
        %v1107 = vadd.f32 0.0, %v1106
        %v1108 = vpop.f32.mrb[0].mxu0
        %1109 = vmatprep.mubr.f32.mxu0 0.0
        %1110 = vmatmul.mubr.f32.gmra.mrb[0].mxu0 %v953
        %v1111 = vpop.f32.mrb[0].mxu0
        %v1112 = vadd.f32 0.0, %v1111
        %v1113 = vpop.f32.mrb[0].mxu0
        %1114 = vmatprep.mubr.f32.mxu0 0.0
        %1115 = vmatmul.mubr.f32.gmra.mrb[0].mxu0 %v955
        %v1116 = vpop.f32.mrb[0].mxu0
        %v1117 = vadd.f32 0.0, %v1116
        %v1118 = vpop.f32.mrb[0].mxu0
        %1119 = vmatprep.mubr.f32.mxu0 0.0
        %1120 = vmatmul.mubr.f32.gmra.mrb[0].mxu0 %v957
        %v1121 = vpop.f32.mrb[0].mxu0
        %v1122 = vadd.f32 0.0, %v1121
        %v1123 = vpop.f32.mrb[0].mxu0
        %1124 = vmatprep.mubr.f32.mxu0 0.0
        %1125 = vmatmul.mubr.f32.gmra.mrb[0].mxu0 %v960
        %v1126 = vpop.f32.mrb[0].mxu0
        %v1127 = vadd.f32 0.0, %v1126
        %v1128 = vpop.f32.mrb[0].mxu0
        %1129 = vmatprep.mubr.f32.mxu0 0.0
        %1130 = vmatmul.mubr.f32.gmra.mrb[0].mxu0 %v962
        %v1131 = vpop.f32.mrb[0].mxu0
        %v1132 = vadd.f32 0.0, %v1131
        %v1133 = vpop.f32.mrb[0].mxu0
        %1134 = vmatprep.mubr.f32.mxu0 0.0
        %1135 = vmatmul.mubr.f32.gmra.mrb[0].mxu0 %v964
        %v1136 = vpop.f32.mrb[0].mxu0
        %v1137 = vadd.f32 0.0, %v1136
        %v1138 = vpop.f32.mrb[0].mxu0
        %1139 = vmatprep.mubr.f32.mxu0 0.0
        %1140 = vmatmul.mubr.f32.gmra.mrb[0].mxu0 %v966
        %v1141 = vpop.f32.mrb[0].mxu0
        %v1142 = vadd.f32 0.0, %v1141
        %v1143 = vpop.f32.mrb[0].mxu0
        %1144 = vdwg.mxu0
        %v1145 = vadd.f32 %v914, %v1067
        %v1146 = vadd.f32 %v915, %v1072
        %v1147 = vadd.f32 %v916, %v1077
        %v1148 = vadd.f32 %v917, %v1082
        %v1149 = vadd.f32 %v918, %v1087
        %v1150 = vadd.f32 %v919, %v1092
        %v1151 = vadd.f32 %v920, %v1097
        %v1152 = vadd.f32 %v921, %v1102
        %v1153 = vadd.f32 %v922, %v1107
        %v1154 = vadd.f32 %v923, %v1112
        %v1155 = vadd.f32 %v924, %v1117
        %v1156 = vadd.f32 %v925, %v1122
        %v1157 = vadd.f32 %v926, %v1127
        %v1158 = vadd.f32 %v927, %v1132
        %v1159 = vadd.f32 %v928, %v1137
        %v1160 = vadd.f32 %v929, %v1142
        %vm1161 = vcmask 1043456
        %v1162 = vrot.slane %v283, 4
        %v1163 = vrot.slane %v284, 4
        %v1164 = vsel %vm1161, %v1162, %v1163
        %v1165 = vrot.slane %v285, 4
        %v1166 = vsel %vm1161, %v1163, %v1165
        %v1167 = vrot.slane %v286, 4
        %v1168 = vsel %vm1161, %v1165, %v1167
        %v1169 = vrot.slane %v287, 4
        %v1170 = vsel %vm1161, %v1167, %v1169
        %v1171 = vrot.slane %v288, 4
        %v1172 = vrot.slane %v289, 4
        %v1173 = vsel %vm1161, %v1171, %v1172
        %v1174 = vrot.slane %v290, 4
        %v1175 = vsel %vm1161, %v1172, %v1174
        %v1176 = vrot.slane %v291, 4
        %v1177 = vsel %vm1161, %v1174, %v1176
        %v1178 = vrot.slane %v292, 4
        %v1179 = vsel %vm1161, %v1176, %v1178
        %v1180 = vrot.slane %v293, 4
        %v1181 = vrot.slane %v294, 4
        %v1182 = vsel %vm1161, %v1180, %v1181
        %v1183 = vrot.slane %v295, 4
        %v1184 = vsel %vm1161, %v1181, %v1183
        %v1185 = vrot.slane %v296, 4
        %v1186 = vsel %vm1161, %v1183, %v1185
        %v1187 = vrot.slane %v297, 4
        %v1188 = vsel %vm1161, %v1185, %v1187
        %v1189 = vrot.slane %v298, 4
        %v1190 = vrot.slane %v299, 4
        %v1191 = vsel %vm1161, %v1189, %v1190
        %v1192 = vrot.slane %v300, 4
        %v1193 = vsel %vm1161, %v1190, %v1192
        %v1194 = vrot.slane %v301, 4
        %v1195 = vsel %vm1161, %v1192, %v1194
        %v1196 = vrot.slane %v302, 4
        %v1197 = vsel %vm1161, %v1194, %v1196
        %s1214 = scalar_lea.vmem %s1, 512
        %v1215 = vld [vmem:[%s1214] sm:$0xff]
        %v1216 = vld [vmem:[%s1214 + $0x8] sm:$0xff]
        %v1217 = vld [vmem:[%s1214 + $0x10] sm:$0xff]
        %v1218 = vld [vmem:[%s1214 + $0x18] sm:$0xff]
        %v1219 = vld [vmem:[%s1214 + $0x20] sm:$0xff]
        %v1220 = vld [vmem:[%s1214 + $0x28] sm:$0xff]
        %v1221 = vld [vmem:[%s1214 + $0x30] sm:$0xff]
        %v1222 = vld [vmem:[%s1214 + $0x38] sm:$0xff]
        %v1223 = vld [vmem:[%s1214 + $0x40] sm:$0xff]
        %v1224 = vld [vmem:[%s1214 + $0x48] sm:$0xff]
        %v1225 = vld [vmem:[%s1214 + $0x50] sm:$0xff]
        %v1226 = vld [vmem:[%s1214 + $0x58] sm:$0xff]
        %v1227 = vld [vmem:[%s1214 + $0x60] sm:$0xff]
        %v1228 = vld [vmem:[%s1214 + $0x68] sm:$0xff]
        %v1229 = vld [vmem:[%s1214 + $0x70] sm:$0xff]
        %v1230 = vld [vmem:[%s1214 + $0x78] sm:$0xff]
        %1231 = vmatprep.subr.mxu0 0.0
        %1232 = vmatpush1.msra.mxu0 %v1215
        %1233 = vmatprep.subr.mxu0 0.0
        %1234 = vmatpush1.msra.mxu0 %v1216
        %1235 = vmatprep.subr.mxu0 0.0
        %1236 = vmatpush1.msra.mxu0 %v1217
        %1237 = vmatprep.subr.mxu0 0.0
        %1238 = vmatpush1.msra.mxu0 %v1218
        %1239 = vmatprep.subr.mxu0 0.0
        %1240 = vmatpush1.msra.mxu0 %v1219
        %1241 = vmatprep.subr.mxu0 0.0
        %1242 = vmatpush1.msra.mxu0 %v1220
        %1243 = vmatprep.subr.mxu0 0.0
        %1244 = vmatpush1.msra.mxu0 %v1221
        %1245 = vmatprep.subr.mxu0 0.0
        %1246 = vmatpush1.msra.mxu0 %v1222
        %1247 = vmatprep.subr.mxu0 0.0
        %1248 = vmatpush1.msra.mxu0 %v1223
        %1249 = vmatprep.subr.mxu0 0.0
        %1250 = vmatpush1.msra.mxu0 %v1224
        %1251 = vmatprep.subr.mxu0 0.0
        %1252 = vmatpush1.msra.mxu0 %v1225
        %1253 = vmatprep.subr.mxu0 0.0
        %1254 = vmatpush1.msra.mxu0 %v1226
        %1255 = vmatprep.subr.mxu0 0.0
        %1256 = vmatpush1.msra.mxu0 %v1227
        %1257 = vmatprep.subr.mxu0 0.0
        %1258 = vmatpush1.msra.mxu0 %v1228
        %1259 = vmatprep.subr.mxu0 0.0
        %1260 = vmatpush1.msra.mxu0 %v1229
        %1261 = vmatprep.subr.mxu0 0.0
        %1262 = vmatpush1.msra.mxu0 %v1230
        %1263 = vmatprep.subr.mxu0 0.0
        %1264 = vmatpush1.msra.mxu0 0.0
        %1265 = vmatprep.subr.mxu0 0.0
        %1266 = vmatpush1.msra.mxu0 0.0
        %1267 = vmatprep.subr.mxu0 0.0
        %1268 = vmatpush1.msra.mxu0 0.0
        %1269 = vmatprep.subr.mxu0 0.0
        %1270 = vmatpush1.msra.mxu0 0.0
        %1271 = vmatprep.subr.mxu0 0.0
        %1272 = vmatpush1.msra.mxu0 0.0
        %1273 = vmatprep.subr.mxu0 0.0
        %1274 = vmatpush1.msra.mxu0 0.0
        %1275 = vmatprep.subr.mxu0 0.0
        %1276 = vmatpush1.msra.mxu0 0.0
        %1277 = vmatprep.subr.mxu0 0.0
        %1278 = vmatpush1.msra.mxu0 0.0
        %1279 = vmatprep.subr.mxu0 0.0
        %1280 = vmatpush1.msra.mxu0 0.0
        %1281 = vmatprep.subr.mxu0 0.0
        %1282 = vmatpush1.msra.mxu0 0.0
        %1283 = vmatprep.subr.mxu0 0.0
        %1284 = vmatpush1.msra.mxu0 0.0
        %1285 = vmatprep.subr.mxu0 0.0
        %1286 = vmatpush1.msra.mxu0 0.0
        %1287 = vmatprep.subr.mxu0 0.0
        %1288 = vmatpush1.msra.mxu0 0.0
        %1289 = vmatprep.subr.mxu0 0.0
        %1290 = vmatpush1.msra.mxu0 0.0
        %1291 = vmatprep.subr.mxu0 0.0
        %1292 = vmatpush1.msra.mxu0 0.0
        %1293 = vmatprep.subr.mxu0 0.0
        %1294 = vmatpush1.msra.mxu0 0.0
        %1295 = vmatprep.mubr.f32.mxu0 0.0
        %1296 = vmatmul.mubr.f32.gmra.mrb[0].mxu0 %v1164
        %v1297 = vpop.f32.mrb[0].mxu0
        %v1298 = vadd.f32 0.0, %v1297
        %v1299 = vpop.f32.mrb[0].mxu0
        %1300 = vmatprep.mubr.f32.mxu0 0.0
        %1301 = vmatmul.mubr.f32.gmra.mrb[0].mxu0 %v1166
        %v1302 = vpop.f32.mrb[0].mxu0
        %v1303 = vadd.f32 0.0, %v1302
        %v1304 = vpop.f32.mrb[0].mxu0
        %1305 = vmatprep.mubr.f32.mxu0 0.0
        %1306 = vmatmul.mubr.f32.gmra.mrb[0].mxu0 %v1168
        %v1307 = vpop.f32.mrb[0].mxu0
        %v1308 = vadd.f32 0.0, %v1307
        %v1309 = vpop.f32.mrb[0].mxu0
        %1310 = vmatprep.mubr.f32.mxu0 0.0
        %1311 = vmatmul.mubr.f32.gmra.mrb[0].mxu0 %v1170
        %v1312 = vpop.f32.mrb[0].mxu0
        %v1313 = vadd.f32 0.0, %v1312
        %v1314 = vpop.f32.mrb[0].mxu0
        %1315 = vmatprep.mubr.f32.mxu0 0.0
        %1316 = vmatmul.mubr.f32.gmra.mrb[0].mxu0 %v1173
        %v1317 = vpop.f32.mrb[0].mxu0
        %v1318 = vadd.f32 0.0, %v1317
        %v1319 = vpop.f32.mrb[0].mxu0
        %1320 = vmatprep.mubr.f32.mxu0 0.0
        %1321 = vmatmul.mubr.f32.gmra.mrb[0].mxu0 %v1175
        %v1322 = vpop.f32.mrb[0].mxu0
        %v1323 = vadd.f32 0.0, %v1322
        %v1324 = vpop.f32.mrb[0].mxu0
        %1325 = vmatprep.mubr.f32.mxu0 0.0
        %1326 = vmatmul.mubr.f32.gmra.mrb[0].mxu0 %v1177
        %v1327 = vpop.f32.mrb[0].mxu0
        %v1328 = vadd.f32 0.0, %v1327
        %v1329 = vpop.f32.mrb[0].mxu0
        %1330 = vmatprep.mubr.f32.mxu0 0.0
        %1331 = vmatmul.mubr.f32.gmra.mrb[0].mxu0 %v1179
        %v1332 = vpop.f32.mrb[0].mxu0
        %v1333 = vadd.f32 0.0, %v1332
        %v1334 = vpop.f32.mrb[0].mxu0
        %1335 = vmatprep.mubr.f32.mxu0 0.0
        %1336 = vmatmul.mubr.f32.gmra.mrb[0].mxu0 %v1182
        %v1337 = vpop.f32.mrb[0].mxu0
        %v1338 = vadd.f32 0.0, %v1337
        %v1339 = vpop.f32.mrb[0].mxu0
        %1340 = vmatprep.mubr.f32.mxu0 0.0
        %1341 = vmatmul.mubr.f32.gmra.mrb[0].mxu0 %v1184
        %v1342 = vpop.f32.mrb[0].mxu0
        %v1343 = vadd.f32 0.0, %v1342
        %v1344 = vpop.f32.mrb[0].mxu0
        %1345 = vmatprep.mubr.f32.mxu0 0.0
        %1346 = vmatmul.mubr.f32.gmra.mrb[0].mxu0 %v1186
        %v1347 = vpop.f32.mrb[0].mxu0
        %v1348 = vadd.f32 0.0, %v1347
        %v1349 = vpop.f32.mrb[0].mxu0
        %1350 = vmatprep.mubr.f32.mxu0 0.0
        %1351 = vmatmul.mubr.f32.gmra.mrb[0].mxu0 %v1188
        %v1352 = vpop.f32.mrb[0].mxu0
        %v1353 = vadd.f32 0.0, %v1352
        %v1354 = vpop.f32.mrb[0].mxu0
        %1355 = vmatprep.mubr.f32.mxu0 0.0
        %1356 = vmatmul.mubr.f32.gmra.mrb[0].mxu0 %v1191
        %v1357 = vpop.f32.mrb[0].mxu0
        %v1358 = vadd.f32 0.0, %v1357
        %v1359 = vpop.f32.mrb[0].mxu0
        %1360 = vmatprep.mubr.f32.mxu0 0.0
        %1361 = vmatmul.mubr.f32.gmra.mrb[0].mxu0 %v1193
        %v1362 = vpop.f32.mrb[0].mxu0
        %v1363 = vadd.f32 0.0, %v1362
        %v1364 = vpop.f32.mrb[0].mxu0
        %1365 = vmatprep.mubr.f32.mxu0 0.0
        %1366 = vmatmul.mubr.f32.gmra.mrb[0].mxu0 %v1195
        %v1367 = vpop.f32.mrb[0].mxu0
        %v1368 = vadd.f32 0.0, %v1367
        %v1369 = vpop.f32.mrb[0].mxu0
        %1370 = vmatprep.mubr.f32.mxu0 0.0
        %1371 = vmatmul.mubr.f32.gmra.mrb[0].mxu0 %v1197
        %v1372 = vpop.f32.mrb[0].mxu0
        %v1373 = vadd.f32 0.0, %v1372
        %v1374 = vpop.f32.mrb[0].mxu0
        %1375 = vdwg.mxu0
        %v1376 = vadd.f32 %v1145, %v1298
        %v1377 = vadd.f32 %v1146, %v1303
        %v1378 = vadd.f32 %v1147, %v1308
        %v1379 = vadd.f32 %v1148, %v1313
        %v1380 = vadd.f32 %v1149, %v1318
        %v1381 = vadd.f32 %v1150, %v1323
        %v1382 = vadd.f32 %v1151, %v1328
        %v1383 = vadd.f32 %v1152, %v1333
        %v1384 = vadd.f32 %v1153, %v1338
        %v1385 = vadd.f32 %v1154, %v1343
        %v1386 = vadd.f32 %v1155, %v1348
        %v1387 = vadd.f32 %v1156, %v1353
        %v1388 = vadd.f32 %v1157, %v1358
        %v1389 = vadd.f32 %v1158, %v1363
        %v1390 = vadd.f32 %v1159, %v1368
        %v1391 = vadd.f32 %v1160, %v1373
        %v1392 = vld [vmem:[%s2] sm:$0x1]
        %v1394 = vlaneseq
        %v1395 = vshrl.u32 %v1394, 7
        %v1396 = vsub.s32 0, %v1395
        %v1397 = vrot.slane %v1392, %v1396
        %v1399 = vadd.f32 %v1376, %v1397
        %v1400 = vadd.f32 %v1377, %v1397
        %v1401 = vadd.f32 %v1378, %v1397
        %v1402 = vadd.f32 %v1379, %v1397
        %v1403 = vadd.f32 %v1380, %v1397
        %v1404 = vadd.f32 %v1381, %v1397
        %v1405 = vadd.f32 %v1382, %v1397
        %v1406 = vadd.f32 %v1383, %v1397
        %v1407 = vadd.f32 %v1384, %v1397
        %v1408 = vadd.f32 %v1385, %v1397
        %v1409 = vadd.f32 %v1386, %v1397
        %v1410 = vadd.f32 %v1387, %v1397
        %v1411 = vadd.f32 %v1388, %v1397
        %v1412 = vadd.f32 %v1389, %v1397
        %v1413 = vadd.f32 %v1390, %v1397
        %v1414 = vadd.f32 %v1391, %v1397
        %v1415 = vmax.f32 %v1399, 0.0
        %v1416 = vmax.f32 %v1400, 0.0
        %v1417 = vmax.f32 %v1401, 0.0
        %v1418 = vmax.f32 %v1402, 0.0
        %v1419 = vmax.f32 %v1403, 0.0
        %v1420 = vmax.f32 %v1404, 0.0
        %v1421 = vmax.f32 %v1405, 0.0
        %v1422 = vmax.f32 %v1406, 0.0
        %v1423 = vmax.f32 %v1407, 0.0
        %v1424 = vmax.f32 %v1408, 0.0
        %v1425 = vmax.f32 %v1409, 0.0
        %v1426 = vmax.f32 %v1410, 0.0
        %v1427 = vmax.f32 %v1411, 0.0
        %v1428 = vmax.f32 %v1412, 0.0
        %v1429 = vmax.f32 %v1413, 0.0
        %v1430 = vmax.f32 %v1414, 0.0
        %1431 = vst [vmem:[#allocation2 + $0x6] sm:$0x3] 0.0
        %1432 = vst [vmem:[#allocation2 + $0x36] sm:$0x3] 0.0
        %1433 = vst [vmem:[#allocation2 + $0x66] sm:$0x3] 0.0
        %1434 = vst [vmem:[#allocation2 + $0x96] sm:$0x3] 0.0
        %1435 = vst [vmem:[#allocation2 + $0x28] sm:$0x3] 0.0
        %1436 = vst [vmem:[#allocation2 + $0x58] sm:$0x3] 0.0
        %1437 = vst [vmem:[#allocation2 + $0x88] sm:$0x3] 0.0
        %1438 = vst [vmem:[#allocation2 + $0xb8] sm:$0x3] 0.0
        %1439 = vst [vmem:[#allocation2 + $0x8] sm:$0xff] %v1415
        %1440 = vst [vmem:[#allocation2 + $0x10] sm:$0xff] %v1416
        %1441 = vst [vmem:[#allocation2 + $0x18] sm:$0xff] %v1417
        %1442 = vst [vmem:[#allocation2 + $0x20] sm:$0xff] %v1418
        %1443 = vst [vmem:[#allocation2 + $0x38] sm:$0xff] %v1419
        %1444 = vst [vmem:[#allocation2 + $0x40] sm:$0xff] %v1420
        %1445 = vst [vmem:[#allocation2 + $0x48] sm:$0xff] %v1421
        %1446 = vst [vmem:[#allocation2 + $0x50] sm:$0xff] %v1422
        %1447 = vst [vmem:[#allocation2 + $0x68] sm:$0xff] %v1423
        %1448 = vst [vmem:[#allocation2 + $0x70] sm:$0xff] %v1424
        %1449 = vst [vmem:[#allocation2 + $0x78] sm:$0xff] %v1425
        %1450 = vst [vmem:[#allocation2 + $0x80] sm:$0xff] %v1426
        %1451 = vst [vmem:[#allocation2 + $0x98] sm:$0xff] %v1427
        %1452 = vst [vmem:[#allocation2 + $0xa0] sm:$0xff] %v1428
        %1453 = vst [vmem:[#allocation2 + $0xa8] sm:$0xff] %v1429
        %1454 = vst [vmem:[#allocation2 + $0xb0] sm:$0xff] %v1430
        %v1455 = vld [vmem:[#allocation2] sm:$0xff]
        %v1456 = vld [vmem:[#allocation2 + $0x8] sm:$0xff]
        %v1457 = vld [vmem:[#allocation2 + $0x10] sm:$0xff]
        %v1458 = vld [vmem:[#allocation2 + $0x18] sm:$0xff]
        %v1459 = vld [vmem:[#allocation2 + $0x20] sm:$0xff]
        %v1460 = vld [vmem:[#allocation2 + $0x28] sm:$0x3]
        %v1461 = vld [vmem:[#allocation2 + $0x30] sm:$0xff]
        %v1462 = vld [vmem:[#allocation2 + $0x38] sm:$0xff]
        %v1463 = vld [vmem:[#allocation2 + $0x40] sm:$0xff]
        %v1464 = vld [vmem:[#allocation2 + $0x48] sm:$0xff]
        %v1465 = vld [vmem:[#allocation2 + $0x50] sm:$0xff]
        %v1466 = vld [vmem:[#allocation2 + $0x58] sm:$0x3]
        %v1467 = vld [vmem:[#allocation2 + $0x60] sm:$0xff]
        %v1468 = vld [vmem:[#allocation2 + $0x68] sm:$0xff]
        %v1469 = vld [vmem:[#allocation2 + $0x70] sm:$0xff]
        %v1470 = vld [vmem:[#allocation2 + $0x78] sm:$0xff]
        %v1471 = vld [vmem:[#allocation2 + $0x80] sm:$0xff]
        %v1472 = vld [vmem:[#allocation2 + $0x88] sm:$0x3]
        %v1473 = vld [vmem:[#allocation2 + $0x90] sm:$0xff]
        %v1474 = vld [vmem:[#allocation2 + $0x98] sm:$0xff]
        %v1475 = vld [vmem:[#allocation2 + $0xa0] sm:$0xff]
        %v1476 = vld [vmem:[#allocation2 + $0xa8] sm:$0xff]
        %v1477 = vld [vmem:[#allocation2 + $0xb0] sm:$0xff]
        %v1478 = vld [vmem:[#allocation2 + $0xb8] sm:$0x3]
        %vm1499 = vcmask 1041408
        %v1500 = vrot.slane %v1455, 6
        %v1501 = vrot.slane %v1456, 6
        %v1502 = vsel %vm1499, %v1500, %v1501
        %v1503 = vrot.slane %v1457, 6
        %v1504 = vsel %vm1499, %v1501, %v1503
        %v1505 = vrot.slane %v1458, 6
        %v1506 = vsel %vm1499, %v1503, %v1505
        %v1507 = vrot.slane %v1459, 6
        %v1508 = vsel %vm1499, %v1505, %v1507
        %v1509 = vrot.slane %v1461, 6
        %v1510 = vrot.slane %v1462, 6
        %v1511 = vsel %vm1499, %v1509, %v1510
        %v1512 = vrot.slane %v1463, 6
        %v1513 = vsel %vm1499, %v1510, %v1512
        %v1514 = vrot.slane %v1464, 6
        %v1515 = vsel %vm1499, %v1512, %v1514
        %v1516 = vrot.slane %v1465, 6
        %v1517 = vsel %vm1499, %v1514, %v1516
        %v1518 = vrot.slane %v1467, 6
        %v1519 = vrot.slane %v1468, 6
        %v1520 = vsel %vm1499, %v1518, %v1519
        %v1521 = vrot.slane %v1469, 6
        %v1522 = vsel %vm1499, %v1519, %v1521
        %v1523 = vrot.slane %v1470, 6
        %v1524 = vsel %vm1499, %v1521, %v1523
        %v1525 = vrot.slane %v1471, 6
        %v1526 = vsel %vm1499, %v1523, %v1525
        %v1527 = vrot.slane %v1473, 6
        %v1528 = vrot.slane %v1474, 6
        %v1529 = vsel %vm1499, %v1527, %v1528
        %v1530 = vrot.slane %v1475, 6
        %v1531 = vsel %vm1499, %v1528, %v1530
        %v1532 = vrot.slane %v1476, 6
        %v1533 = vsel %vm1499, %v1530, %v1532
        %v1534 = vrot.slane %v1477, 6
        %v1535 = vsel %vm1499, %v1532, %v1534
        %v1552 = vld [vmem:[%s3] sm:$0xff]
        %v1553 = vld [vmem:[%s3 + $0x8] sm:$0xff]
        %v1554 = vld [vmem:[%s3 + $0x10] sm:$0xff]
        %v1555 = vld [vmem:[%s3 + $0x18] sm:$0xff]
        %v1556 = vld [vmem:[%s3 + $0x20] sm:$0xff]
        %v1557 = vld [vmem:[%s3 + $0x28] sm:$0xff]
        %v1558 = vld [vmem:[%s3 + $0x30] sm:$0xff]
        %v1559 = vld [vmem:[%s3 + $0x38] sm:$0xff]
        %v1560 = vld [vmem:[%s3 + $0x40] sm:$0xff]
        %v1561 = vld [vmem:[%s3 + $0x48] sm:$0xff]
        %v1562 = vld [vmem:[%s3 + $0x50] sm:$0xff]
        %v1563 = vld [vmem:[%s3 + $0x58] sm:$0xff]
        %v1564 = vld [vmem:[%s3 + $0x60] sm:$0xff]
        %v1565 = vld [vmem:[%s3 + $0x68] sm:$0xff]
        %v1566 = vld [vmem:[%s3 + $0x70] sm:$0xff]
        %v1567 = vld [vmem:[%s3 + $0x78] sm:$0xff]
        %vm1568 = vcmask 1040384
        %v1569 = vrot.slane %v1455, 7
        %v1570 = vrot.slane %v1456, 7
        %v1571 = vsel %vm1568, %v1569, %v1570
        %v1572 = vrot.slane %v1457, 7
        %v1573 = vsel %vm1568, %v1570, %v1572
        %v1574 = vrot.slane %v1458, 7
        %v1575 = vsel %vm1568, %v1572, %v1574
        %v1576 = vrot.slane %v1459, 7
        %v1577 = vsel %vm1568, %v1574, %v1576
        %v1578 = vrot.slane %v1461, 7
        %v1579 = vrot.slane %v1462, 7
        %v1580 = vsel %vm1568, %v1578, %v1579
        %v1581 = vrot.slane %v1463, 7
        %v1582 = vsel %vm1568, %v1579, %v1581
        %v1583 = vrot.slane %v1464, 7
        %v1584 = vsel %vm1568, %v1581, %v1583
        %v1585 = vrot.slane %v1465, 7
        %v1586 = vsel %vm1568, %v1583, %v1585
        %v1587 = vrot.slane %v1467, 7
        %v1588 = vrot.slane %v1468, 7
        %v1589 = vsel %vm1568, %v1587, %v1588
        %v1590 = vrot.slane %v1469, 7
        %v1591 = vsel %vm1568, %v1588, %v1590
        %v1592 = vrot.slane %v1470, 7
        %v1593 = vsel %vm1568, %v1590, %v1592
        %v1594 = vrot.slane %v1471, 7
        %v1595 = vsel %vm1568, %v1592, %v1594
        %v1596 = vrot.slane %v1473, 7
        %v1597 = vrot.slane %v1474, 7
        %v1598 = vsel %vm1568, %v1596, %v1597
        %v1599 = vrot.slane %v1475, 7
        %v1600 = vsel %vm1568, %v1597, %v1599
        %v1601 = vrot.slane %v1476, 7
        %v1602 = vsel %vm1568, %v1599, %v1601
        %v1603 = vrot.slane %v1477, 7
        %v1604 = vsel %vm1568, %v1601, %v1603
        %s1621 = scalar_lea.vmem %s3, 128
        %v1622 = vld [vmem:[%s1621] sm:$0xff]
        %v1623 = vld [vmem:[%s1621 + $0x8] sm:$0xff]
        %v1624 = vld [vmem:[%s1621 + $0x10] sm:$0xff]
        %v1625 = vld [vmem:[%s1621 + $0x18] sm:$0xff]
        %v1626 = vld [vmem:[%s1621 + $0x20] sm:$0xff]
        %v1627 = vld [vmem:[%s1621 + $0x28] sm:$0xff]
        %v1628 = vld [vmem:[%s1621 + $0x30] sm:$0xff]
        %v1629 = vld [vmem:[%s1621 + $0x38] sm:$0xff]
        %v1630 = vld [vmem:[%s1621 + $0x40] sm:$0xff]
        %v1631 = vld [vmem:[%s1621 + $0x48] sm:$0xff]
        %v1632 = vld [vmem:[%s1621 + $0x50] sm:$0xff]
        %v1633 = vld [vmem:[%s1621 + $0x58] sm:$0xff]
        %v1634 = vld [vmem:[%s1621 + $0x60] sm:$0xff]
        %v1635 = vld [vmem:[%s1621 + $0x68] sm:$0xff]
        %v1636 = vld [vmem:[%s1621 + $0x70] sm:$0xff]
        %v1637 = vld [vmem:[%s1621 + $0x78] sm:$0xff]
        %1638 = vmatprep.subr.mxu0 0.0
        %1639 = vmatpush1.msra.mxu0 %v1622
        %1640 = vmatprep.subr.mxu0 0.0
        %1641 = vmatpush1.msra.mxu0 %v1623
        %1642 = vmatprep.subr.mxu0 0.0
        %1643 = vmatpush1.msra.mxu0 %v1624
        %1644 = vmatprep.subr.mxu0 0.0
        %1645 = vmatpush1.msra.mxu0 %v1625
        %1646 = vmatprep.subr.mxu0 0.0
        %1647 = vmatpush1.msra.mxu0 %v1626
        %1648 = vmatprep.subr.mxu0 0.0
        %1649 = vmatpush1.msra.mxu0 %v1627
        %1650 = vmatprep.subr.mxu0 0.0
        %1651 = vmatpush1.msra.mxu0 %v1628
        %1652 = vmatprep.subr.mxu0 0.0
        %1653 = vmatpush1.msra.mxu0 %v1629
        %1654 = vmatprep.subr.mxu0 0.0
        %1655 = vmatpush1.msra.mxu0 %v1630
        %1656 = vmatprep.subr.mxu0 0.0
        %1657 = vmatpush1.msra.mxu0 %v1631
        %1658 = vmatprep.subr.mxu0 0.0
        %1659 = vmatpush1.msra.mxu0 %v1632
        %1660 = vmatprep.subr.mxu0 0.0
        %1661 = vmatpush1.msra.mxu0 %v1633
        %1662 = vmatprep.subr.mxu0 0.0
        %1663 = vmatpush1.msra.mxu0 %v1634
        %1664 = vmatprep.subr.mxu0 0.0
        %1665 = vmatpush1.msra.mxu0 %v1635
        %1666 = vmatprep.subr.mxu0 0.0
        %1667 = vmatpush1.msra.mxu0 %v1636
        %1668 = vmatprep.subr.mxu0 0.0
        %1669 = vmatpush1.msra.mxu0 %v1637
        %1670 = vmatprep.subr.mxu0 0.0
        %1671 = vmatpush1.msra.mxu0 0.0
        %1672 = vmatprep.subr.mxu0 0.0
        %1673 = vmatpush1.msra.mxu0 0.0
        %1674 = vmatprep.subr.mxu0 0.0
        %1675 = vmatpush1.msra.mxu0 0.0
        %1676 = vmatprep.subr.mxu0 0.0
        %1677 = vmatpush1.msra.mxu0 0.0
        %1678 = vmatprep.subr.mxu0 0.0
        %1679 = vmatpush1.msra.mxu0 0.0
        %1680 = vmatprep.subr.mxu0 0.0
        %1681 = vmatpush1.msra.mxu0 0.0
        %1682 = vmatprep.subr.mxu0 0.0
        %1683 = vmatpush1.msra.mxu0 0.0
        %1684 = vmatprep.subr.mxu0 0.0
        %1685 = vmatpush1.msra.mxu0 0.0
        %1686 = vmatprep.subr.mxu0 0.0
        %1687 = vmatpush1.msra.mxu0 0.0
        %1688 = vmatprep.subr.mxu0 0.0
        %1689 = vmatpush1.msra.mxu0 0.0
        %1690 = vmatprep.subr.mxu0 0.0
        %1691 = vmatpush1.msra.mxu0 0.0
        %1692 = vmatprep.subr.mxu0 0.0
        %1693 = vmatpush1.msra.mxu0 0.0
        %1694 = vmatprep.subr.mxu0 0.0
        %1695 = vmatpush1.msra.mxu0 0.0
        %1696 = vmatprep.subr.mxu0 0.0
        %1697 = vmatpush1.msra.mxu0 0.0
        %1698 = vmatprep.subr.mxu0 0.0
        %1699 = vmatpush1.msra.mxu0 0.0
        %1700 = vmatprep.subr.mxu0 0.0
        %1701 = vmatpush1.msra.mxu0 0.0
        %1702 = vmatprep.mubr.f32.mxu0 0.0
        %1703 = vmatmul.mubr.f32.gmra.mrb[0].mxu0 %v1571
        %v1704 = vpop.f32.mrb[0].mxu0
        %v1705 = vadd.f32 0.0, %v1704
        %v1706 = vpop.f32.mrb[0].mxu0
        %1707 = vmatprep.mubr.f32.mxu0 0.0
        %1708 = vmatmul.mubr.f32.gmra.mrb[0].mxu0 %v1573
        %v1709 = vpop.f32.mrb[0].mxu0
        %v1710 = vadd.f32 0.0, %v1709
        %v1711 = vpop.f32.mrb[0].mxu0
        %1712 = vmatprep.mubr.f32.mxu0 0.0
        %1713 = vmatmul.mubr.f32.gmra.mrb[0].mxu0 %v1575
        %v1714 = vpop.f32.mrb[0].mxu0
        %v1715 = vadd.f32 0.0, %v1714
        %v1716 = vpop.f32.mrb[0].mxu0
        %1717 = vmatprep.mubr.f32.mxu0 0.0
        %1718 = vmatmul.mubr.f32.gmra.mrb[0].mxu0 %v1577
        %v1719 = vpop.f32.mrb[0].mxu0
        %v1720 = vadd.f32 0.0, %v1719
        %v1721 = vpop.f32.mrb[0].mxu0
        %1722 = vmatprep.mubr.f32.mxu0 0.0
        %1723 = vmatmul.mubr.f32.gmra.mrb[0].mxu0 %v1580
        %v1724 = vpop.f32.mrb[0].mxu0
        %v1725 = vadd.f32 0.0, %v1724
        %v1726 = vpop.f32.mrb[0].mxu0
        %1727 = vmatprep.mubr.f32.mxu0 0.0
        %1728 = vmatmul.mubr.f32.gmra.mrb[0].mxu0 %v1582
        %v1729 = vpop.f32.mrb[0].mxu0
        %v1730 = vadd.f32 0.0, %v1729
        %v1731 = vpop.f32.mrb[0].mxu0
        %1732 = vmatprep.mubr.f32.mxu0 0.0
        %1733 = vmatmul.mubr.f32.gmra.mrb[0].mxu0 %v1584
        %v1734 = vpop.f32.mrb[0].mxu0
        %v1735 = vadd.f32 0.0, %v1734
        %v1736 = vpop.f32.mrb[0].mxu0
        %1737 = vmatprep.mubr.f32.mxu0 0.0
        %1738 = vmatmul.mubr.f32.gmra.mrb[0].mxu0 %v1586
        %v1739 = vpop.f32.mrb[0].mxu0
        %v1740 = vadd.f32 0.0, %v1739
        %v1741 = vpop.f32.mrb[0].mxu0
        %1742 = vmatprep.mubr.f32.mxu0 0.0
        %1743 = vmatmul.mubr.f32.gmra.mrb[0].mxu0 %v1589
        %v1744 = vpop.f32.mrb[0].mxu0
        %v1745 = vadd.f32 0.0, %v1744
        %v1746 = vpop.f32.mrb[0].mxu0
        %1747 = vmatprep.mubr.f32.mxu0 0.0
        %1748 = vmatmul.mubr.f32.gmra.mrb[0].mxu0 %v1591
        %v1749 = vpop.f32.mrb[0].mxu0
        %v1750 = vadd.f32 0.0, %v1749
        %v1751 = vpop.f32.mrb[0].mxu0
        %1752 = vmatprep.mubr.f32.mxu0 0.0
        %1753 = vmatmul.mubr.f32.gmra.mrb[0].mxu0 %v1593
        %v1754 = vpop.f32.mrb[0].mxu0
        %v1755 = vadd.f32 0.0, %v1754
        %v1756 = vpop.f32.mrb[0].mxu0
        %1757 = vmatprep.mubr.f32.mxu0 0.0
        %1758 = vmatmul.mubr.f32.gmra.mrb[0].mxu0 %v1595
        %v1759 = vpop.f32.mrb[0].mxu0
        %v1760 = vadd.f32 0.0, %v1759
        %v1761 = vpop.f32.mrb[0].mxu0
        %1762 = vmatprep.mubr.f32.mxu0 0.0
        %1763 = vmatmul.mubr.f32.gmra.mrb[0].mxu0 %v1598
        %v1764 = vpop.f32.mrb[0].mxu0
        %v1765 = vadd.f32 0.0, %v1764
        %v1766 = vpop.f32.mrb[0].mxu0
        %1767 = vmatprep.mubr.f32.mxu0 0.0
        %1768 = vmatmul.mubr.f32.gmra.mrb[0].mxu0 %v1600
        %v1769 = vpop.f32.mrb[0].mxu0
        %v1770 = vadd.f32 0.0, %v1769
        %v1771 = vpop.f32.mrb[0].mxu0
        %1772 = vmatprep.mubr.f32.mxu0 0.0
        %1773 = vmatmul.mubr.f32.gmra.mrb[0].mxu0 %v1602
        %v1774 = vpop.f32.mrb[0].mxu0
        %v1775 = vadd.f32 0.0, %v1774
        %v1776 = vpop.f32.mrb[0].mxu0
        %1777 = vmatprep.mubr.f32.mxu0 0.0
        %1778 = vmatmul.mubr.f32.gmra.mrb[0].mxu0 %v1604
        %v1779 = vpop.f32.mrb[0].mxu0
        %v1780 = vadd.f32 0.0, %v1779
        %v1781 = vpop.f32.mrb[0].mxu0
        %1782 = vdwg.mxu0
        %1783 = vmatprep.subr.mxu0 0.0
        %1784 = vmatpush1.msra.mxu0 %v1552
        %1785 = vmatprep.subr.mxu0 0.0
        %1786 = vmatpush1.msra.mxu0 %v1553
        %1787 = vmatprep.subr.mxu0 0.0
        %1788 = vmatpush1.msra.mxu0 %v1554
        %1789 = vmatprep.subr.mxu0 0.0
        %1790 = vmatpush1.msra.mxu0 %v1555
        %1791 = vmatprep.subr.mxu0 0.0
        %1792 = vmatpush1.msra.mxu0 %v1556
        %1793 = vmatprep.subr.mxu0 0.0
        %1794 = vmatpush1.msra.mxu0 %v1557
        %1795 = vmatprep.subr.mxu0 0.0
        %1796 = vmatpush1.msra.mxu0 %v1558
        %1797 = vmatprep.subr.mxu0 0.0
        %1798 = vmatpush1.msra.mxu0 %v1559
        %1799 = vmatprep.subr.mxu0 0.0
        %1800 = vmatpush1.msra.mxu0 %v1560
        %1801 = vmatprep.subr.mxu0 0.0
        %1802 = vmatpush1.msra.mxu0 %v1561
        %1803 = vmatprep.subr.mxu0 0.0
        %1804 = vmatpush1.msra.mxu0 %v1562
        %1805 = vmatprep.subr.mxu0 0.0
        %1806 = vmatpush1.msra.mxu0 %v1563
        %1807 = vmatprep.subr.mxu0 0.0
        %1808 = vmatpush1.msra.mxu0 %v1564
        %1809 = vmatprep.subr.mxu0 0.0
        %1810 = vmatpush1.msra.mxu0 %v1565
        %1811 = vmatprep.subr.mxu0 0.0
        %1812 = vmatpush1.msra.mxu0 %v1566
        %1813 = vmatprep.subr.mxu0 0.0
        %1814 = vmatpush1.msra.mxu0 %v1567
        %1815 = vmatprep.subr.mxu0 0.0
        %1816 = vmatpush1.msra.mxu0 0.0
        %1817 = vmatprep.subr.mxu0 0.0
        %1818 = vmatpush1.msra.mxu0 0.0
        %1819 = vmatprep.subr.mxu0 0.0
        %1820 = vmatpush1.msra.mxu0 0.0
        %1821 = vmatprep.subr.mxu0 0.0
        %1822 = vmatpush1.msra.mxu0 0.0
        %1823 = vmatprep.subr.mxu0 0.0
        %1824 = vmatpush1.msra.mxu0 0.0
        %1825 = vmatprep.subr.mxu0 0.0
        %1826 = vmatpush1.msra.mxu0 0.0
        %1827 = vmatprep.subr.mxu0 0.0
        %1828 = vmatpush1.msra.mxu0 0.0
        %1829 = vmatprep.subr.mxu0 0.0
        %1830 = vmatpush1.msra.mxu0 0.0
        %1831 = vmatprep.subr.mxu0 0.0
        %1832 = vmatpush1.msra.mxu0 0.0
        %1833 = vmatprep.subr.mxu0 0.0
        %1834 = vmatpush1.msra.mxu0 0.0
        %1835 = vmatprep.subr.mxu0 0.0
        %1836 = vmatpush1.msra.mxu0 0.0
        %1837 = vmatprep.subr.mxu0 0.0
        %1838 = vmatpush1.msra.mxu0 0.0
        %1839 = vmatprep.subr.mxu0 0.0
        %1840 = vmatpush1.msra.mxu0 0.0
        %1841 = vmatprep.subr.mxu0 0.0
        %1842 = vmatpush1.msra.mxu0 0.0
        %1843 = vmatprep.subr.mxu0 0.0
        %1844 = vmatpush1.msra.mxu0 0.0
        %1845 = vmatprep.subr.mxu0 0.0
        %1846 = vmatpush1.msra.mxu0 0.0
        %1847 = vmatprep.mubr.f32.mxu0 0.0
        %1848 = vmatmul.mubr.f32.gmra.mrb[0].mxu0 %v1502
        %v1849 = vpop.f32.mrb[0].mxu0
        %v1850 = vadd.f32 %v1705, %v1849
        %v1851 = vpop.f32.mrb[0].mxu0
        %1852 = vmatprep.mubr.f32.mxu0 0.0
        %1853 = vmatmul.mubr.f32.gmra.mrb[0].mxu0 %v1504
        %v1854 = vpop.f32.mrb[0].mxu0
        %v1855 = vadd.f32 %v1710, %v1854
        %v1856 = vpop.f32.mrb[0].mxu0
        %1857 = vmatprep.mubr.f32.mxu0 0.0
        %1858 = vmatmul.mubr.f32.gmra.mrb[0].mxu0 %v1506
        %v1859 = vpop.f32.mrb[0].mxu0
        %v1860 = vadd.f32 %v1715, %v1859
        %v1861 = vpop.f32.mrb[0].mxu0
        %1862 = vmatprep.mubr.f32.mxu0 0.0
        %1863 = vmatmul.mubr.f32.gmra.mrb[0].mxu0 %v1508
        %v1864 = vpop.f32.mrb[0].mxu0
        %v1865 = vadd.f32 %v1720, %v1864
        %v1866 = vpop.f32.mrb[0].mxu0
        %1867 = vmatprep.mubr.f32.mxu0 0.0
        %1868 = vmatmul.mubr.f32.gmra.mrb[0].mxu0 %v1511
        %v1869 = vpop.f32.mrb[0].mxu0
        %v1870 = vadd.f32 %v1725, %v1869
        %v1871 = vpop.f32.mrb[0].mxu0
        %1872 = vmatprep.mubr.f32.mxu0 0.0
        %1873 = vmatmul.mubr.f32.gmra.mrb[0].mxu0 %v1513
        %v1874 = vpop.f32.mrb[0].mxu0
        %v1875 = vadd.f32 %v1730, %v1874
        %v1876 = vpop.f32.mrb[0].mxu0
        %1877 = vmatprep.mubr.f32.mxu0 0.0
        %1878 = vmatmul.mubr.f32.gmra.mrb[0].mxu0 %v1515
        %v1879 = vpop.f32.mrb[0].mxu0
        %v1880 = vadd.f32 %v1735, %v1879
        %v1881 = vpop.f32.mrb[0].mxu0
        %1882 = vmatprep.mubr.f32.mxu0 0.0
        %1883 = vmatmul.mubr.f32.gmra.mrb[0].mxu0 %v1517
        %v1884 = vpop.f32.mrb[0].mxu0
        %v1885 = vadd.f32 %v1740, %v1884
        %v1886 = vpop.f32.mrb[0].mxu0
        %1887 = vmatprep.mubr.f32.mxu0 0.0
        %1888 = vmatmul.mubr.f32.gmra.mrb[0].mxu0 %v1520
        %v1889 = vpop.f32.mrb[0].mxu0
        %v1890 = vadd.f32 %v1745, %v1889
        %v1891 = vpop.f32.mrb[0].mxu0
        %1892 = vmatprep.mubr.f32.mxu0 0.0
        %1893 = vmatmul.mubr.f32.gmra.mrb[0].mxu0 %v1522
        %v1894 = vpop.f32.mrb[0].mxu0
        %v1895 = vadd.f32 %v1750, %v1894
        %v1896 = vpop.f32.mrb[0].mxu0
        %1897 = vmatprep.mubr.f32.mxu0 0.0
        %1898 = vmatmul.mubr.f32.gmra.mrb[0].mxu0 %v1524
        %v1899 = vpop.f32.mrb[0].mxu0
        %v1900 = vadd.f32 %v1755, %v1899
        %v1901 = vpop.f32.mrb[0].mxu0
        %1902 = vmatprep.mubr.f32.mxu0 0.0
        %1903 = vmatmul.mubr.f32.gmra.mrb[0].mxu0 %v1526
        %v1904 = vpop.f32.mrb[0].mxu0
        %v1905 = vadd.f32 %v1760, %v1904
        %v1906 = vpop.f32.mrb[0].mxu0
        %1907 = vmatprep.mubr.f32.mxu0 0.0
        %1908 = vmatmul.mubr.f32.gmra.mrb[0].mxu0 %v1529
        %v1909 = vpop.f32.mrb[0].mxu0
        %v1910 = vadd.f32 %v1765, %v1909
        %v1911 = vpop.f32.mrb[0].mxu0
        %1912 = vmatprep.mubr.f32.mxu0 0.0
        %1913 = vmatmul.mubr.f32.gmra.mrb[0].mxu0 %v1531
        %v1914 = vpop.f32.mrb[0].mxu0
        %v1915 = vadd.f32 %v1770, %v1914
        %v1916 = vpop.f32.mrb[0].mxu0
        %1917 = vmatprep.mubr.f32.mxu0 0.0
        %1918 = vmatmul.mubr.f32.gmra.mrb[0].mxu0 %v1533
        %v1919 = vpop.f32.mrb[0].mxu0
        %v1920 = vadd.f32 %v1775, %v1919
        %v1921 = vpop.f32.mrb[0].mxu0
        %1922 = vmatprep.mubr.f32.mxu0 0.0
        %1923 = vmatmul.mubr.f32.gmra.mrb[0].mxu0 %v1535
        %v1924 = vpop.f32.mrb[0].mxu0
        %v1925 = vadd.f32 %v1780, %v1924
        %v1926 = vpop.f32.mrb[0].mxu0
        %1927 = vdwg.mxu0
        %s1928 = scalar_lea.vmem %s3, 256
        %v1929 = vld [vmem:[%s1928] sm:$0xff]
        %v1930 = vld [vmem:[%s1928 + $0x8] sm:$0xff]
        %v1931 = vld [vmem:[%s1928 + $0x10] sm:$0xff]
        %v1932 = vld [vmem:[%s1928 + $0x18] sm:$0xff]
        %v1933 = vld [vmem:[%s1928 + $0x20] sm:$0xff]
        %v1934 = vld [vmem:[%s1928 + $0x28] sm:$0xff]
        %v1935 = vld [vmem:[%s1928 + $0x30] sm:$0xff]
        %v1936 = vld [vmem:[%s1928 + $0x38] sm:$0xff]
        %v1937 = vld [vmem:[%s1928 + $0x40] sm:$0xff]
        %v1938 = vld [vmem:[%s1928 + $0x48] sm:$0xff]
        %v1939 = vld [vmem:[%s1928 + $0x50] sm:$0xff]
        %v1940 = vld [vmem:[%s1928 + $0x58] sm:$0xff]
        %v1941 = vld [vmem:[%s1928 + $0x60] sm:$0xff]
        %v1942 = vld [vmem:[%s1928 + $0x68] sm:$0xff]
        %v1943 = vld [vmem:[%s1928 + $0x70] sm:$0xff]
        %v1944 = vld [vmem:[%s1928 + $0x78] sm:$0xff]
        %1945 = vmatprep.subr.mxu0 0.0
        %1946 = vmatpush1.msra.mxu0 %v1929
        %1947 = vmatprep.subr.mxu0 0.0
        %1948 = vmatpush1.msra.mxu0 %v1930
        %1949 = vmatprep.subr.mxu0 0.0
        %1950 = vmatpush1.msra.mxu0 %v1931
        %1951 = vmatprep.subr.mxu0 0.0
        %1952 = vmatpush1.msra.mxu0 %v1932
        %1953 = vmatprep.subr.mxu0 0.0
        %1954 = vmatpush1.msra.mxu0 %v1933
        %1955 = vmatprep.subr.mxu0 0.0
        %1956 = vmatpush1.msra.mxu0 %v1934
        %1957 = vmatprep.subr.mxu0 0.0
        %1958 = vmatpush1.msra.mxu0 %v1935
        %1959 = vmatprep.subr.mxu0 0.0
        %1960 = vmatpush1.msra.mxu0 %v1936
        %1961 = vmatprep.subr.mxu0 0.0
        %1962 = vmatpush1.msra.mxu0 %v1937
        %1963 = vmatprep.subr.mxu0 0.0
        %1964 = vmatpush1.msra.mxu0 %v1938
        %1965 = vmatprep.subr.mxu0 0.0
        %1966 = vmatpush1.msra.mxu0 %v1939
        %1967 = vmatprep.subr.mxu0 0.0
        %1968 = vmatpush1.msra.mxu0 %v1940
        %1969 = vmatprep.subr.mxu0 0.0
        %1970 = vmatpush1.msra.mxu0 %v1941
        %1971 = vmatprep.subr.mxu0 0.0
        %1972 = vmatpush1.msra.mxu0 %v1942
        %1973 = vmatprep.subr.mxu0 0.0
        %1974 = vmatpush1.msra.mxu0 %v1943
        %1975 = vmatprep.subr.mxu0 0.0
        %1976 = vmatpush1.msra.mxu0 %v1944
        %1977 = vmatprep.subr.mxu0 0.0
        %1978 = vmatpush1.msra.mxu0 0.0
        %1979 = vmatprep.subr.mxu0 0.0
        %1980 = vmatpush1.msra.mxu0 0.0
        %1981 = vmatprep.subr.mxu0 0.0
        %1982 = vmatpush1.msra.mxu0 0.0
        %1983 = vmatprep.subr.mxu0 0.0
        %1984 = vmatpush1.msra.mxu0 0.0
        %1985 = vmatprep.subr.mxu0 0.0
        %1986 = vmatpush1.msra.mxu0 0.0
        %1987 = vmatprep.subr.mxu0 0.0
        %1988 = vmatpush1.msra.mxu0 0.0
        %1989 = vmatprep.subr.mxu0 0.0
        %1990 = vmatpush1.msra.mxu0 0.0
        %1991 = vmatprep.subr.mxu0 0.0
        %1992 = vmatpush1.msra.mxu0 0.0
        %1993 = vmatprep.subr.mxu0 0.0
        %1994 = vmatpush1.msra.mxu0 0.0
        %1995 = vmatprep.subr.mxu0 0.0
        %1996 = vmatpush1.msra.mxu0 0.0
        %1997 = vmatprep.subr.mxu0 0.0
        %1998 = vmatpush1.msra.mxu0 0.0
        %1999 = vmatprep.subr.mxu0 0.0
        %2000 = vmatpush1.msra.mxu0 0.0
        %2001 = vmatprep.subr.mxu0 0.0
        %2002 = vmatpush1.msra.mxu0 0.0
        %2003 = vmatprep.subr.mxu0 0.0
        %2004 = vmatpush1.msra.mxu0 0.0
        %2005 = vmatprep.subr.mxu0 0.0
        %2006 = vmatpush1.msra.mxu0 0.0
        %2007 = vmatprep.subr.mxu0 0.0
        %2008 = vmatpush1.msra.mxu0 0.0
        %2009 = vmatprep.mubr.f32.mxu0 0.0
        %2010 = vmatmul.mubr.f32.gmra.mrb[0].mxu0 %v1456
        %v2011 = vpop.f32.mrb[0].mxu0
        %v2012 = vadd.f32 0.0, %v2011
        %v2013 = vpop.f32.mrb[0].mxu0
        %2014 = vmatprep.mubr.f32.mxu0 0.0
        %2015 = vmatmul.mubr.f32.gmra.mrb[0].mxu0 %v1457
        %v2016 = vpop.f32.mrb[0].mxu0
        %v2017 = vadd.f32 0.0, %v2016
        %v2018 = vpop.f32.mrb[0].mxu0
        %2019 = vmatprep.mubr.f32.mxu0 0.0
        %2020 = vmatmul.mubr.f32.gmra.mrb[0].mxu0 %v1458
        %v2021 = vpop.f32.mrb[0].mxu0
        %v2022 = vadd.f32 0.0, %v2021
        %v2023 = vpop.f32.mrb[0].mxu0
        %2024 = vmatprep.mubr.f32.mxu0 0.0
        %2025 = vmatmul.mubr.f32.gmra.mrb[0].mxu0 %v1459
        %v2026 = vpop.f32.mrb[0].mxu0
        %v2027 = vadd.f32 0.0, %v2026
        %v2028 = vpop.f32.mrb[0].mxu0
        %2029 = vmatprep.mubr.f32.mxu0 0.0
        %2030 = vmatmul.mubr.f32.gmra.mrb[0].mxu0 %v1462
        %v2031 = vpop.f32.mrb[0].mxu0
        %v2032 = vadd.f32 0.0, %v2031
        %v2033 = vpop.f32.mrb[0].mxu0
        %2034 = vmatprep.mubr.f32.mxu0 0.0
        %2035 = vmatmul.mubr.f32.gmra.mrb[0].mxu0 %v1463
        %v2036 = vpop.f32.mrb[0].mxu0
        %v2037 = vadd.f32 0.0, %v2036
        %v2038 = vpop.f32.mrb[0].mxu0
        %2039 = vmatprep.mubr.f32.mxu0 0.0
        %2040 = vmatmul.mubr.f32.gmra.mrb[0].mxu0 %v1464
        %v2041 = vpop.f32.mrb[0].mxu0
        %v2042 = vadd.f32 0.0, %v2041
        %v2043 = vpop.f32.mrb[0].mxu0
        %2044 = vmatprep.mubr.f32.mxu0 0.0
        %2045 = vmatmul.mubr.f32.gmra.mrb[0].mxu0 %v1465
        %v2046 = vpop.f32.mrb[0].mxu0
        %v2047 = vadd.f32 0.0, %v2046
        %v2048 = vpop.f32.mrb[0].mxu0
        %2049 = vmatprep.mubr.f32.mxu0 0.0
        %2050 = vmatmul.mubr.f32.gmra.mrb[0].mxu0 %v1468
        %v2051 = vpop.f32.mrb[0].mxu0
        %v2052 = vadd.f32 0.0, %v2051
        %v2053 = vpop.f32.mrb[0].mxu0
        %2054 = vmatprep.mubr.f32.mxu0 0.0
        %2055 = vmatmul.mubr.f32.gmra.mrb[0].mxu0 %v1469
        %v2056 = vpop.f32.mrb[0].mxu0
        %v2057 = vadd.f32 0.0, %v2056
        %v2058 = vpop.f32.mrb[0].mxu0
        %2059 = vmatprep.mubr.f32.mxu0 0.0
        %2060 = vmatmul.mubr.f32.gmra.mrb[0].mxu0 %v1470
        %v2061 = vpop.f32.mrb[0].mxu0
        %v2062 = vadd.f32 0.0, %v2061
        %v2063 = vpop.f32.mrb[0].mxu0
        %2064 = vmatprep.mubr.f32.mxu0 0.0
        %2065 = vmatmul.mubr.f32.gmra.mrb[0].mxu0 %v1471
        %v2066 = vpop.f32.mrb[0].mxu0
        %v2067 = vadd.f32 0.0, %v2066
        %v2068 = vpop.f32.mrb[0].mxu0
        %2069 = vmatprep.mubr.f32.mxu0 0.0
        %2070 = vmatmul.mubr.f32.gmra.mrb[0].mxu0 %v1474
        %v2071 = vpop.f32.mrb[0].mxu0
        %v2072 = vadd.f32 0.0, %v2071
        %v2073 = vpop.f32.mrb[0].mxu0
        %2074 = vmatprep.mubr.f32.mxu0 0.0
        %2075 = vmatmul.mubr.f32.gmra.mrb[0].mxu0 %v1475
        %v2076 = vpop.f32.mrb[0].mxu0
        %v2077 = vadd.f32 0.0, %v2076
        %v2078 = vpop.f32.mrb[0].mxu0
        %2079 = vmatprep.mubr.f32.mxu0 0.0
        %2080 = vmatmul.mubr.f32.gmra.mrb[0].mxu0 %v1476
        %v2081 = vpop.f32.mrb[0].mxu0
        %v2082 = vadd.f32 0.0, %v2081
        %v2083 = vpop.f32.mrb[0].mxu0
        %2084 = vmatprep.mubr.f32.mxu0 0.0
        %2085 = vmatmul.mubr.f32.gmra.mrb[0].mxu0 %v1477
        %v2086 = vpop.f32.mrb[0].mxu0
        %v2087 = vadd.f32 0.0, %v2086
        %v2088 = vpop.f32.mrb[0].mxu0
        %2089 = vdwg.mxu0
        %v2090 = vadd.f32 %v1850, %v2012
        %v2091 = vadd.f32 %v1855, %v2017
        %v2092 = vadd.f32 %v1860, %v2022
        %v2093 = vadd.f32 %v1865, %v2027
        %v2094 = vadd.f32 %v1870, %v2032
        %v2095 = vadd.f32 %v1875, %v2037
        %v2096 = vadd.f32 %v1880, %v2042
        %v2097 = vadd.f32 %v1885, %v2047
        %v2098 = vadd.f32 %v1890, %v2052
        %v2099 = vadd.f32 %v1895, %v2057
        %v2100 = vadd.f32 %v1900, %v2062
        %v2101 = vadd.f32 %v1905, %v2067
        %v2102 = vadd.f32 %v1910, %v2072
        %v2103 = vadd.f32 %v1915, %v2077
        %v2104 = vadd.f32 %v1920, %v2082
        %v2105 = vadd.f32 %v1925, %v2087
        %v2110 = vrot.slane %v1456, 1
        %v2111 = vrot.slane %v1457, 1
        %v2112 = vsel %vm339, %v2110, %v2111
        %v2113 = vrot.slane %v1458, 1
        %v2114 = vsel %vm339, %v2111, %v2113
        %v2115 = vrot.slane %v1459, 1
        %v2116 = vsel %vm339, %v2113, %v2115
        %v2117 = vrot.slane %v1460, 1
        %v2118 = vsel %vm339, %v2115, %v2117
        %v2119 = vrot.slane %v1462, 1
        %v2120 = vrot.slane %v1463, 1
        %v2121 = vsel %vm339, %v2119, %v2120
        %v2122 = vrot.slane %v1464, 1
        %v2123 = vsel %vm339, %v2120, %v2122
        %v2124 = vrot.slane %v1465, 1
        %v2125 = vsel %vm339, %v2122, %v2124
        %v2126 = vrot.slane %v1466, 1
        %v2127 = vsel %vm339, %v2124, %v2126
        %v2128 = vrot.slane %v1468, 1
        %v2129 = vrot.slane %v1469, 1
        %v2130 = vsel %vm339, %v2128, %v2129
        %v2131 = vrot.slane %v1470, 1
        %v2132 = vsel %vm339, %v2129, %v2131
        %v2133 = vrot.slane %v1471, 1
        %v2134 = vsel %vm339, %v2131, %v2133
        %v2135 = vrot.slane %v1472, 1
        %v2136 = vsel %vm339, %v2133, %v2135
        %v2137 = vrot.slane %v1474, 1
        %v2138 = vrot.slane %v1475, 1
        %v2139 = vsel %vm339, %v2137, %v2138
        %v2140 = vrot.slane %v1476, 1
        %v2141 = vsel %vm339, %v2138, %v2140
        %v2142 = vrot.slane %v1477, 1
        %v2143 = vsel %vm339, %v2140, %v2142
        %v2144 = vrot.slane %v1478, 1
        %v2145 = vsel %vm339, %v2142, %v2144
        %s2162 = scalar_lea.vmem %s3, 384
        %v2163 = vld [vmem:[%s2162] sm:$0xff]
        %v2164 = vld [vmem:[%s2162 + $0x8] sm:$0xff]
        %v2165 = vld [vmem:[%s2162 + $0x10] sm:$0xff]
        %v2166 = vld [vmem:[%s2162 + $0x18] sm:$0xff]
        %v2167 = vld [vmem:[%s2162 + $0x20] sm:$0xff]
        %v2168 = vld [vmem:[%s2162 + $0x28] sm:$0xff]
        %v2169 = vld [vmem:[%s2162 + $0x30] sm:$0xff]
        %v2170 = vld [vmem:[%s2162 + $0x38] sm:$0xff]
        %v2171 = vld [vmem:[%s2162 + $0x40] sm:$0xff]
        %v2172 = vld [vmem:[%s2162 + $0x48] sm:$0xff]
        %v2173 = vld [vmem:[%s2162 + $0x50] sm:$0xff]
        %v2174 = vld [vmem:[%s2162 + $0x58] sm:$0xff]
        %v2175 = vld [vmem:[%s2162 + $0x60] sm:$0xff]
        %v2176 = vld [vmem:[%s2162 + $0x68] sm:$0xff]
        %v2177 = vld [vmem:[%s2162 + $0x70] sm:$0xff]
        %v2178 = vld [vmem:[%s2162 + $0x78] sm:$0xff]
        %2179 = vmatprep.subr.mxu0 0.0
        %2180 = vmatpush1.msra.mxu0 %v2163
        %2181 = vmatprep.subr.mxu0 0.0
        %2182 = vmatpush1.msra.mxu0 %v2164
        %2183 = vmatprep.subr.mxu0 0.0
        %2184 = vmatpush1.msra.mxu0 %v2165
        %2185 = vmatprep.subr.mxu0 0.0
        %2186 = vmatpush1.msra.mxu0 %v2166
        %2187 = vmatprep.subr.mxu0 0.0
        %2188 = vmatpush1.msra.mxu0 %v2167
        %2189 = vmatprep.subr.mxu0 0.0
        %2190 = vmatpush1.msra.mxu0 %v2168
        %2191 = vmatprep.subr.mxu0 0.0
        %2192 = vmatpush1.msra.mxu0 %v2169
        %2193 = vmatprep.subr.mxu0 0.0
        %2194 = vmatpush1.msra.mxu0 %v2170
        %2195 = vmatprep.subr.mxu0 0.0
        %2196 = vmatpush1.msra.mxu0 %v2171
        %2197 = vmatprep.subr.mxu0 0.0
        %2198 = vmatpush1.msra.mxu0 %v2172
        %2199 = vmatprep.subr.mxu0 0.0
        %2200 = vmatpush1.msra.mxu0 %v2173
        %2201 = vmatprep.subr.mxu0 0.0
        %2202 = vmatpush1.msra.mxu0 %v2174
        %2203 = vmatprep.subr.mxu0 0.0
        %2204 = vmatpush1.msra.mxu0 %v2175
        %2205 = vmatprep.subr.mxu0 0.0
        %2206 = vmatpush1.msra.mxu0 %v2176
        %2207 = vmatprep.subr.mxu0 0.0
        %2208 = vmatpush1.msra.mxu0 %v2177
        %2209 = vmatprep.subr.mxu0 0.0
        %2210 = vmatpush1.msra.mxu0 %v2178
        %2211 = vmatprep.subr.mxu0 0.0
        %2212 = vmatpush1.msra.mxu0 0.0
        %2213 = vmatprep.subr.mxu0 0.0
        %2214 = vmatpush1.msra.mxu0 0.0
        %2215 = vmatprep.subr.mxu0 0.0
        %2216 = vmatpush1.msra.mxu0 0.0
        %2217 = vmatprep.subr.mxu0 0.0
        %2218 = vmatpush1.msra.mxu0 0.0
        %2219 = vmatprep.subr.mxu0 0.0
        %2220 = vmatpush1.msra.mxu0 0.0
        %2221 = vmatprep.subr.mxu0 0.0
        %2222 = vmatpush1.msra.mxu0 0.0
        %2223 = vmatprep.subr.mxu0 0.0
        %2224 = vmatpush1.msra.mxu0 0.0
        %2225 = vmatprep.subr.mxu0 0.0
        %2226 = vmatpush1.msra.mxu0 0.0
        %2227 = vmatprep.subr.mxu0 0.0
        %2228 = vmatpush1.msra.mxu0 0.0
        %2229 = vmatprep.subr.mxu0 0.0
        %2230 = vmatpush1.msra.mxu0 0.0
        %2231 = vmatprep.subr.mxu0 0.0
        %2232 = vmatpush1.msra.mxu0 0.0
        %2233 = vmatprep.subr.mxu0 0.0
        %2234 = vmatpush1.msra.mxu0 0.0
        %2235 = vmatprep.subr.mxu0 0.0
        %2236 = vmatpush1.msra.mxu0 0.0
        %2237 = vmatprep.subr.mxu0 0.0
        %2238 = vmatpush1.msra.mxu0 0.0
        %2239 = vmatprep.subr.mxu0 0.0
        %2240 = vmatpush1.msra.mxu0 0.0
        %2241 = vmatprep.subr.mxu0 0.0
        %2242 = vmatpush1.msra.mxu0 0.0
        %2243 = vmatprep.mubr.f32.mxu0 0.0
        %2244 = vmatmul.mubr.f32.gmra.mrb[0].mxu0 %v2112
        %v2245 = vpop.f32.mrb[0].mxu0
        %v2246 = vadd.f32 0.0, %v2245
        %v2247 = vpop.f32.mrb[0].mxu0
        %2248 = vmatprep.mubr.f32.mxu0 0.0
        %2249 = vmatmul.mubr.f32.gmra.mrb[0].mxu0 %v2114
        %v2250 = vpop.f32.mrb[0].mxu0
        %v2251 = vadd.f32 0.0, %v2250
        %v2252 = vpop.f32.mrb[0].mxu0
        %2253 = vmatprep.mubr.f32.mxu0 0.0
        %2254 = vmatmul.mubr.f32.gmra.mrb[0].mxu0 %v2116
        %v2255 = vpop.f32.mrb[0].mxu0
        %v2256 = vadd.f32 0.0, %v2255
        %v2257 = vpop.f32.mrb[0].mxu0
        %2258 = vmatprep.mubr.f32.mxu0 0.0
        %2259 = vmatmul.mubr.f32.gmra.mrb[0].mxu0 %v2118
        %v2260 = vpop.f32.mrb[0].mxu0
        %v2261 = vadd.f32 0.0, %v2260
        %v2262 = vpop.f32.mrb[0].mxu0
        %2263 = vmatprep.mubr.f32.mxu0 0.0
        %2264 = vmatmul.mubr.f32.gmra.mrb[0].mxu0 %v2121
        %v2265 = vpop.f32.mrb[0].mxu0
        %v2266 = vadd.f32 0.0, %v2265
        %v2267 = vpop.f32.mrb[0].mxu0
        %2268 = vmatprep.mubr.f32.mxu0 0.0
        %2269 = vmatmul.mubr.f32.gmra.mrb[0].mxu0 %v2123
        %v2270 = vpop.f32.mrb[0].mxu0
        %v2271 = vadd.f32 0.0, %v2270
        %v2272 = vpop.f32.mrb[0].mxu0
        %2273 = vmatprep.mubr.f32.mxu0 0.0
        %2274 = vmatmul.mubr.f32.gmra.mrb[0].mxu0 %v2125
        %v2275 = vpop.f32.mrb[0].mxu0
        %v2276 = vadd.f32 0.0, %v2275
        %v2277 = vpop.f32.mrb[0].mxu0
        %2278 = vmatprep.mubr.f32.mxu0 0.0
        %2279 = vmatmul.mubr.f32.gmra.mrb[0].mxu0 %v2127
        %v2280 = vpop.f32.mrb[0].mxu0
        %v2281 = vadd.f32 0.0, %v2280
        %v2282 = vpop.f32.mrb[0].mxu0
        %2283 = vmatprep.mubr.f32.mxu0 0.0
        %2284 = vmatmul.mubr.f32.gmra.mrb[0].mxu0 %v2130
        %v2285 = vpop.f32.mrb[0].mxu0
        %v2286 = vadd.f32 0.0, %v2285
        %v2287 = vpop.f32.mrb[0].mxu0
        %2288 = vmatprep.mubr.f32.mxu0 0.0
        %2289 = vmatmul.mubr.f32.gmra.mrb[0].mxu0 %v2132
        %v2290 = vpop.f32.mrb[0].mxu0
        %v2291 = vadd.f32 0.0, %v2290
        %v2292 = vpop.f32.mrb[0].mxu0
        %2293 = vmatprep.mubr.f32.mxu0 0.0
        %2294 = vmatmul.mubr.f32.gmra.mrb[0].mxu0 %v2134
        %v2295 = vpop.f32.mrb[0].mxu0
        %v2296 = vadd.f32 0.0, %v2295
        %v2297 = vpop.f32.mrb[0].mxu0
        %2298 = vmatprep.mubr.f32.mxu0 0.0
        %2299 = vmatmul.mubr.f32.gmra.mrb[0].mxu0 %v2136
        %v2300 = vpop.f32.mrb[0].mxu0
        %v2301 = vadd.f32 0.0, %v2300
        %v2302 = vpop.f32.mrb[0].mxu0
        %2303 = vmatprep.mubr.f32.mxu0 0.0
        %2304 = vmatmul.mubr.f32.gmra.mrb[0].mxu0 %v2139
        %v2305 = vpop.f32.mrb[0].mxu0
        %v2306 = vadd.f32 0.0, %v2305
        %v2307 = vpop.f32.mrb[0].mxu0
        %2308 = vmatprep.mubr.f32.mxu0 0.0
        %2309 = vmatmul.mubr.f32.gmra.mrb[0].mxu0 %v2141
        %v2310 = vpop.f32.mrb[0].mxu0
        %v2311 = vadd.f32 0.0, %v2310
        %v2312 = vpop.f32.mrb[0].mxu0
        %2313 = vmatprep.mubr.f32.mxu0 0.0
        %2314 = vmatmul.mubr.f32.gmra.mrb[0].mxu0 %v2143
        %v2315 = vpop.f32.mrb[0].mxu0
        %v2316 = vadd.f32 0.0, %v2315
        %v2317 = vpop.f32.mrb[0].mxu0
        %2318 = vmatprep.mubr.f32.mxu0 0.0
        %2319 = vmatmul.mubr.f32.gmra.mrb[0].mxu0 %v2145
        %v2320 = vpop.f32.mrb[0].mxu0
        %v2321 = vadd.f32 0.0, %v2320
        %v2322 = vpop.f32.mrb[0].mxu0
        %2323 = vdwg.mxu0
        %v2324 = vadd.f32 %v2090, %v2246
        %v2325 = vadd.f32 %v2091, %v2251
        %v2326 = vadd.f32 %v2092, %v2256
        %v2327 = vadd.f32 %v2093, %v2261
        %v2328 = vadd.f32 %v2094, %v2266
        %v2329 = vadd.f32 %v2095, %v2271
        %v2330 = vadd.f32 %v2096, %v2276
        %v2331 = vadd.f32 %v2097, %v2281
        %v2332 = vadd.f32 %v2098, %v2286
        %v2333 = vadd.f32 %v2099, %v2291
        %v2334 = vadd.f32 %v2100, %v2296
        %v2335 = vadd.f32 %v2101, %v2301
        %v2336 = vadd.f32 %v2102, %v2306
        %v2337 = vadd.f32 %v2103, %v2311
        %v2338 = vadd.f32 %v2104, %v2316
        %v2339 = vadd.f32 %v2105, %v2321
        %v2340 = vrot.slane %v1456, 2
        %v2341 = vrot.slane %v1457, 2
        %v2342 = vsel %vm699, %v2340, %v2341
        %v2343 = vrot.slane %v1458, 2
        %v2344 = vsel %vm699, %v2341, %v2343
        %v2345 = vrot.slane %v1459, 2
        %v2346 = vsel %vm699, %v2343, %v2345
        %v2347 = vrot.slane %v1460, 2
        %v2348 = vsel %vm699, %v2345, %v2347
        %v2349 = vrot.slane %v1462, 2
        %v2350 = vrot.slane %v1463, 2
        %v2351 = vsel %vm699, %v2349, %v2350
        %v2352 = vrot.slane %v1464, 2
        %v2353 = vsel %vm699, %v2350, %v2352
        %v2354 = vrot.slane %v1465, 2
        %v2355 = vsel %vm699, %v2352, %v2354
        %v2356 = vrot.slane %v1466, 2
        %v2357 = vsel %vm699, %v2354, %v2356
        %v2358 = vrot.slane %v1468, 2
        %v2359 = vrot.slane %v1469, 2
        %v2360 = vsel %vm699, %v2358, %v2359
        %v2361 = vrot.slane %v1470, 2
        %v2362 = vsel %vm699, %v2359, %v2361
        %v2363 = vrot.slane %v1471, 2
        %v2364 = vsel %vm699, %v2361, %v2363
        %v2365 = vrot.slane %v1472, 2
        %v2366 = vsel %vm699, %v2363, %v2365
        %v2367 = vrot.slane %v1474, 2
        %v2368 = vrot.slane %v1475, 2
        %v2369 = vsel %vm699, %v2367, %v2368
        %v2370 = vrot.slane %v1476, 2
        %v2371 = vsel %vm699, %v2368, %v2370
        %v2372 = vrot.slane %v1477, 2
        %v2373 = vsel %vm699, %v2370, %v2372
        %v2374 = vrot.slane %v1478, 2
        %v2375 = vsel %vm699, %v2372, %v2374
        %s2392 = scalar_lea.vmem %s3, 512
        %v2393 = vld [vmem:[%s2392] sm:$0xff]
        %v2394 = vld [vmem:[%s2392 + $0x8] sm:$0xff]
        %v2395 = vld [vmem:[%s2392 + $0x10] sm:$0xff]
        %v2396 = vld [vmem:[%s2392 + $0x18] sm:$0xff]
        %v2397 = vld [vmem:[%s2392 + $0x20] sm:$0xff]
        %v2398 = vld [vmem:[%s2392 + $0x28] sm:$0xff]
        %v2399 = vld [vmem:[%s2392 + $0x30] sm:$0xff]
        %v2400 = vld [vmem:[%s2392 + $0x38] sm:$0xff]
        %v2401 = vld [vmem:[%s2392 + $0x40] sm:$0xff]
        %v2402 = vld [vmem:[%s2392 + $0x48] sm:$0xff]
        %v2403 = vld [vmem:[%s2392 + $0x50] sm:$0xff]
        %v2404 = vld [vmem:[%s2392 + $0x58] sm:$0xff]
        %v2405 = vld [vmem:[%s2392 + $0x60] sm:$0xff]
        %v2406 = vld [vmem:[%s2392 + $0x68] sm:$0xff]
        %v2407 = vld [vmem:[%s2392 + $0x70] sm:$0xff]
        %v2408 = vld [vmem:[%s2392 + $0x78] sm:$0xff]
        %2409 = vmatprep.subr.mxu0 0.0
        %2410 = vmatpush1.msra.mxu0 %v2393
        %2411 = vmatprep.subr.mxu0 0.0
        %2412 = vmatpush1.msra.mxu0 %v2394
        %2413 = vmatprep.subr.mxu0 0.0
        %2414 = vmatpush1.msra.mxu0 %v2395
        %2415 = vmatprep.subr.mxu0 0.0
        %2416 = vmatpush1.msra.mxu0 %v2396
        %2417 = vmatprep.subr.mxu0 0.0
        %2418 = vmatpush1.msra.mxu0 %v2397
        %2419 = vmatprep.subr.mxu0 0.0
        %2420 = vmatpush1.msra.mxu0 %v2398
        %2421 = vmatprep.subr.mxu0 0.0
        %2422 = vmatpush1.msra.mxu0 %v2399
        %2423 = vmatprep.subr.mxu0 0.0
        %2424 = vmatpush1.msra.mxu0 %v2400
        %2425 = vmatprep.subr.mxu0 0.0
        %2426 = vmatpush1.msra.mxu0 %v2401
        %2427 = vmatprep.subr.mxu0 0.0
        %2428 = vmatpush1.msra.mxu0 %v2402
        %2429 = vmatprep.subr.mxu0 0.0
        %2430 = vmatpush1.msra.mxu0 %v2403
        %2431 = vmatprep.subr.mxu0 0.0
        %2432 = vmatpush1.msra.mxu0 %v2404
        %2433 = vmatprep.subr.mxu0 0.0
        %2434 = vmatpush1.msra.mxu0 %v2405
        %2435 = vmatprep.subr.mxu0 0.0
        %2436 = vmatpush1.msra.mxu0 %v2406
        %2437 = vmatprep.subr.mxu0 0.0
        %2438 = vmatpush1.msra.mxu0 %v2407
        %2439 = vmatprep.subr.mxu0 0.0
        %2440 = vmatpush1.msra.mxu0 %v2408
        %2441 = vmatprep.subr.mxu0 0.0
        %2442 = vmatpush1.msra.mxu0 0.0
        %2443 = vmatprep.subr.mxu0 0.0
        %2444 = vmatpush1.msra.mxu0 0.0
        %2445 = vmatprep.subr.mxu0 0.0
        %2446 = vmatpush1.msra.mxu0 0.0
        %2447 = vmatprep.subr.mxu0 0.0
        %2448 = vmatpush1.msra.mxu0 0.0
        %2449 = vmatprep.subr.mxu0 0.0
        %2450 = vmatpush1.msra.mxu0 0.0
        %2451 = vmatprep.subr.mxu0 0.0
        %2452 = vmatpush1.msra.mxu0 0.0
        %2453 = vmatprep.subr.mxu0 0.0
        %2454 = vmatpush1.msra.mxu0 0.0
        %2455 = vmatprep.subr.mxu0 0.0
        %2456 = vmatpush1.msra.mxu0 0.0
        %2457 = vmatprep.subr.mxu0 0.0
        %2458 = vmatpush1.msra.mxu0 0.0
        %2459 = vmatprep.subr.mxu0 0.0
        %2460 = vmatpush1.msra.mxu0 0.0
        %2461 = vmatprep.subr.mxu0 0.0
        %2462 = vmatpush1.msra.mxu0 0.0
        %2463 = vmatprep.subr.mxu0 0.0
        %2464 = vmatpush1.msra.mxu0 0.0
        %2465 = vmatprep.subr.mxu0 0.0
        %2466 = vmatpush1.msra.mxu0 0.0
        %2467 = vmatprep.subr.mxu0 0.0
        %2468 = vmatpush1.msra.mxu0 0.0
        %2469 = vmatprep.subr.mxu0 0.0
        %2470 = vmatpush1.msra.mxu0 0.0
        %2471 = vmatprep.subr.mxu0 0.0
        %2472 = vmatpush1.msra.mxu0 0.0
        %2473 = vmatprep.mubr.f32.mxu0 0.0
        %2474 = vmatmul.mubr.f32.gmra.mrb[0].mxu0 %v2342
        %v2475 = vpop.f32.mrb[0].mxu0
        %v2476 = vadd.f32 0.0, %v2475
        %v2477 = vpop.f32.mrb[0].mxu0
        %2478 = vmatprep.mubr.f32.mxu0 0.0
        %2479 = vmatmul.mubr.f32.gmra.mrb[0].mxu0 %v2344
        %v2480 = vpop.f32.mrb[0].mxu0
        %v2481 = vadd.f32 0.0, %v2480
        %v2482 = vpop.f32.mrb[0].mxu0
        %2483 = vmatprep.mubr.f32.mxu0 0.0
        %2484 = vmatmul.mubr.f32.gmra.mrb[0].mxu0 %v2346
        %v2485 = vpop.f32.mrb[0].mxu0
        %v2486 = vadd.f32 0.0, %v2485
        %v2487 = vpop.f32.mrb[0].mxu0
        %2488 = vmatprep.mubr.f32.mxu0 0.0
        %2489 = vmatmul.mubr.f32.gmra.mrb[0].mxu0 %v2348
        %v2490 = vpop.f32.mrb[0].mxu0
        %v2491 = vadd.f32 0.0, %v2490
        %v2492 = vpop.f32.mrb[0].mxu0
        %2493 = vmatprep.mubr.f32.mxu0 0.0
        %2494 = vmatmul.mubr.f32.gmra.mrb[0].mxu0 %v2351
        %v2495 = vpop.f32.mrb[0].mxu0
        %v2496 = vadd.f32 0.0, %v2495
        %v2497 = vpop.f32.mrb[0].mxu0
        %2498 = vmatprep.mubr.f32.mxu0 0.0
        %2499 = vmatmul.mubr.f32.gmra.mrb[0].mxu0 %v2353
        %v2500 = vpop.f32.mrb[0].mxu0
        %v2501 = vadd.f32 0.0, %v2500
        %v2502 = vpop.f32.mrb[0].mxu0
        %2503 = vmatprep.mubr.f32.mxu0 0.0
        %2504 = vmatmul.mubr.f32.gmra.mrb[0].mxu0 %v2355
        %v2505 = vpop.f32.mrb[0].mxu0
        %v2506 = vadd.f32 0.0, %v2505
        %v2507 = vpop.f32.mrb[0].mxu0
        %2508 = vmatprep.mubr.f32.mxu0 0.0
        %2509 = vmatmul.mubr.f32.gmra.mrb[0].mxu0 %v2357
        %v2510 = vpop.f32.mrb[0].mxu0
        %v2511 = vadd.f32 0.0, %v2510
        %v2512 = vpop.f32.mrb[0].mxu0
        %2513 = vmatprep.mubr.f32.mxu0 0.0
        %2514 = vmatmul.mubr.f32.gmra.mrb[0].mxu0 %v2360
        %v2515 = vpop.f32.mrb[0].mxu0
        %v2516 = vadd.f32 0.0, %v2515
        %v2517 = vpop.f32.mrb[0].mxu0
        %2518 = vmatprep.mubr.f32.mxu0 0.0
        %2519 = vmatmul.mubr.f32.gmra.mrb[0].mxu0 %v2362
        %v2520 = vpop.f32.mrb[0].mxu0
        %v2521 = vadd.f32 0.0, %v2520
        %v2522 = vpop.f32.mrb[0].mxu0
        %2523 = vmatprep.mubr.f32.mxu0 0.0
        %2524 = vmatmul.mubr.f32.gmra.mrb[0].mxu0 %v2364
        %v2525 = vpop.f32.mrb[0].mxu0
        %v2526 = vadd.f32 0.0, %v2525
        %v2527 = vpop.f32.mrb[0].mxu0
        %2528 = vmatprep.mubr.f32.mxu0 0.0
        %2529 = vmatmul.mubr.f32.gmra.mrb[0].mxu0 %v2366
        %v2530 = vpop.f32.mrb[0].mxu0
        %v2531 = vadd.f32 0.0, %v2530
        %v2532 = vpop.f32.mrb[0].mxu0
        %2533 = vmatprep.mubr.f32.mxu0 0.0
        %2534 = vmatmul.mubr.f32.gmra.mrb[0].mxu0 %v2369
        %v2535 = vpop.f32.mrb[0].mxu0
        %v2536 = vadd.f32 0.0, %v2535
        %v2537 = vpop.f32.mrb[0].mxu0
        %2538 = vmatprep.mubr.f32.mxu0 0.0
        %2539 = vmatmul.mubr.f32.gmra.mrb[0].mxu0 %v2371
        %v2540 = vpop.f32.mrb[0].mxu0
        %v2541 = vadd.f32 0.0, %v2540
        %v2542 = vpop.f32.mrb[0].mxu0
        %2543 = vmatprep.mubr.f32.mxu0 0.0
        %2544 = vmatmul.mubr.f32.gmra.mrb[0].mxu0 %v2373
        %v2545 = vpop.f32.mrb[0].mxu0
        %v2546 = vadd.f32 0.0, %v2545
        %v2547 = vpop.f32.mrb[0].mxu0
        %2548 = vmatprep.mubr.f32.mxu0 0.0
        %2549 = vmatmul.mubr.f32.gmra.mrb[0].mxu0 %v2375
        %v2550 = vpop.f32.mrb[0].mxu0
        %v2551 = vadd.f32 0.0, %v2550
        %v2552 = vpop.f32.mrb[0].mxu0
        %2553 = vdwg.mxu0
        %v2554 = vadd.f32 %v2324, %v2476
        %v2555 = vadd.f32 %v2325, %v2481
        %v2556 = vadd.f32 %v2326, %v2486
        %v2557 = vadd.f32 %v2327, %v2491
        %v2558 = vadd.f32 %v2328, %v2496
        %v2559 = vadd.f32 %v2329, %v2501
        %v2560 = vadd.f32 %v2330, %v2506
        %v2561 = vadd.f32 %v2331, %v2511
        %v2562 = vadd.f32 %v2332, %v2516
        %v2563 = vadd.f32 %v2333, %v2521
        %v2564 = vadd.f32 %v2334, %v2526
        %v2565 = vadd.f32 %v2335, %v2531
        %v2566 = vadd.f32 %v2336, %v2536
        %v2567 = vadd.f32 %v2337, %v2541
        %v2568 = vadd.f32 %v2338, %v2546
        %v2569 = vadd.f32 %v2339, %v2551
        %v2570 = vld [vmem:[%s4] sm:$0x1]
        %v2572 = vlaneseq
        %v2573 = vshrl.u32 %v2572, 7
        %v2574 = vsub.s32 0, %v2573
        %v2575 = vrot.slane %v2570, %v2574
        %v2577 = vadd.f32 %v2554, %v2575
        %v2578 = vadd.f32 %v2555, %v2575
        %v2579 = vadd.f32 %v2556, %v2575
        %v2580 = vadd.f32 %v2557, %v2575
        %v2581 = vadd.f32 %v2558, %v2575
        %v2582 = vadd.f32 %v2559, %v2575
        %v2583 = vadd.f32 %v2560, %v2575
        %v2584 = vadd.f32 %v2561, %v2575
        %v2585 = vadd.f32 %v2562, %v2575
        %v2586 = vadd.f32 %v2563, %v2575
        %v2587 = vadd.f32 %v2564, %v2575
        %v2588 = vadd.f32 %v2565, %v2575
        %v2589 = vadd.f32 %v2566, %v2575
        %v2590 = vadd.f32 %v2567, %v2575
        %v2591 = vadd.f32 %v2568, %v2575
        %v2592 = vadd.f32 %v2569, %v2575
        %v2593 = vmax.f32 %v2577, 0.0
        %v2594 = vmax.f32 %v2578, 0.0
        %v2595 = vmax.f32 %v2579, 0.0
        %v2596 = vmax.f32 %v2580, 0.0
        %v2597 = vmax.f32 %v2581, 0.0
        %v2598 = vmax.f32 %v2582, 0.0
        %v2599 = vmax.f32 %v2583, 0.0
        %v2600 = vmax.f32 %v2584, 0.0
        %v2601 = vmax.f32 %v2585, 0.0
        %v2602 = vmax.f32 %v2586, 0.0
        %v2603 = vmax.f32 %v2587, 0.0
        %v2604 = vmax.f32 %v2588, 0.0
        %v2605 = vmax.f32 %v2589, 0.0
        %v2606 = vmax.f32 %v2590, 0.0
        %v2607 = vmax.f32 %v2591, 0.0
        %v2608 = vmax.f32 %v2592, 0.0
        %v2609 = vld [vmem:[%s5] sm:$0xff]
        %v2610 = vld [vmem:[%s5 + $0x8] sm:$0xff]
        %v2611 = vld [vmem:[%s5 + $0x10] sm:$0xff]
        %v2612 = vld [vmem:[%s5 + $0x18] sm:$0xff]
        %v2613 = vld [vmem:[%s5 + $0x20] sm:$0xff]
        %v2614 = vld [vmem:[%s5 + $0x28] sm:$0xff]
        %v2615 = vld [vmem:[%s5 + $0x30] sm:$0xff]
        %v2616 = vld [vmem:[%s5 + $0x38] sm:$0xff]
        %v2617 = vld [vmem:[%s5 + $0x40] sm:$0xff]
        %v2618 = vld [vmem:[%s5 + $0x48] sm:$0xff]
        %v2619 = vld [vmem:[%s5 + $0x50] sm:$0xff]
        %v2620 = vld [vmem:[%s5 + $0x58] sm:$0xff]
        %v2621 = vld [vmem:[%s5 + $0x60] sm:$0xff]
        %v2622 = vld [vmem:[%s5 + $0x68] sm:$0xff]
        %v2623 = vld [vmem:[%s5 + $0x70] sm:$0xff]
        %v2624 = vld [vmem:[%s5 + $0x78] sm:$0xff]
        %v2625 = vld [vmem:[%s6] sm:$0x1]
        %v2627 = vlaneseq
        %v2628 = vshrl.u32 %v2627, 7
        %v2629 = vsub.s32 0, %v2628
        %v2630 = vrot.slane %v2625, %v2629
        %2632 = vmatprep.subr.mxu0 0.0
        %2633 = vmatpush1.msra.mxu0 %v2609
        %2634 = vmatprep.subr.mxu0 0.0
        %2635 = vmatpush1.msra.mxu0 %v2610
        %2636 = vmatprep.subr.mxu0 0.0
        %2637 = vmatpush1.msra.mxu0 %v2611
        %2638 = vmatprep.subr.mxu0 0.0
        %2639 = vmatpush1.msra.mxu0 %v2612
        %2640 = vmatprep.subr.mxu0 0.0
        %2641 = vmatpush1.msra.mxu0 %v2613
        %2642 = vmatprep.subr.mxu0 0.0
        %2643 = vmatpush1.msra.mxu0 %v2614
        %2644 = vmatprep.subr.mxu0 0.0
        %2645 = vmatpush1.msra.mxu0 %v2615
        %2646 = vmatprep.subr.mxu0 0.0
        %2647 = vmatpush1.msra.mxu0 %v2616
        %2648 = vmatprep.subr.mxu0 0.0
        %2649 = vmatpush1.msra.mxu0 %v2617
        %2650 = vmatprep.subr.mxu0 0.0
        %2651 = vmatpush1.msra.mxu0 %v2618
        %2652 = vmatprep.subr.mxu0 0.0
        %2653 = vmatpush1.msra.mxu0 %v2619
        %2654 = vmatprep.subr.mxu0 0.0
        %2655 = vmatpush1.msra.mxu0 %v2620
        %2656 = vmatprep.subr.mxu0 0.0
        %2657 = vmatpush1.msra.mxu0 %v2621
        %2658 = vmatprep.subr.mxu0 0.0
        %2659 = vmatpush1.msra.mxu0 %v2622
        %2660 = vmatprep.subr.mxu0 0.0
        %2661 = vmatpush1.msra.mxu0 %v2623
        %2662 = vmatprep.subr.mxu0 0.0
        %2663 = vmatpush1.msra.mxu0 %v2624
        %2664 = vmatprep.subr.mxu0 0.0
        %2665 = vmatpush1.msra.mxu0 0.0
        %2666 = vmatprep.subr.mxu0 0.0
        %2667 = vmatpush1.msra.mxu0 0.0
        %2668 = vmatprep.subr.mxu0 0.0
        %2669 = vmatpush1.msra.mxu0 0.0
        %2670 = vmatprep.subr.mxu0 0.0
        %2671 = vmatpush1.msra.mxu0 0.0
        %2672 = vmatprep.subr.mxu0 0.0
        %2673 = vmatpush1.msra.mxu0 0.0
        %2674 = vmatprep.subr.mxu0 0.0
        %2675 = vmatpush1.msra.mxu0 0.0
        %2676 = vmatprep.subr.mxu0 0.0
        %2677 = vmatpush1.msra.mxu0 0.0
        %2678 = vmatprep.subr.mxu0 0.0
        %2679 = vmatpush1.msra.mxu0 0.0
        %2680 = vmatprep.subr.mxu0 0.0
        %2681 = vmatpush1.msra.mxu0 0.0
        %2682 = vmatprep.subr.mxu0 0.0
        %2683 = vmatpush1.msra.mxu0 0.0
        %2684 = vmatprep.subr.mxu0 0.0
        %2685 = vmatpush1.msra.mxu0 0.0
        %2686 = vmatprep.subr.mxu0 0.0
        %2687 = vmatpush1.msra.mxu0 0.0
        %2688 = vmatprep.subr.mxu0 0.0
        %2689 = vmatpush1.msra.mxu0 0.0
        %2690 = vmatprep.subr.mxu0 0.0
        %2691 = vmatpush1.msra.mxu0 0.0
        %2692 = vmatprep.subr.mxu0 0.0
        %2693 = vmatpush1.msra.mxu0 0.0
        %2694 = vmatprep.subr.mxu0 0.0
        %2695 = vmatpush1.msra.mxu0 0.0
        %2696 = vmatprep.mubr.f32.mxu0 0.0
        %2697 = vmatmul.mubr.f32.gmra.mrb[0].mxu0 %v2593
        %v2698 = vpop.f32.mrb[0].mxu0
        %v2699 = vadd.f32 %v2630, %v2698
        %v2700 = vpop.f32.mrb[0].mxu0
        %2701 = vmatprep.mubr.f32.mxu0 0.0
        %2702 = vmatmul.mubr.f32.gmra.mrb[0].mxu0 %v2594
        %v2703 = vpop.f32.mrb[0].mxu0
        %v2704 = vadd.f32 %v2630, %v2703
        %v2705 = vpop.f32.mrb[0].mxu0
        %2706 = vmatprep.mubr.f32.mxu0 0.0
        %2707 = vmatmul.mubr.f32.gmra.mrb[0].mxu0 %v2595
        %v2708 = vpop.f32.mrb[0].mxu0
        %v2709 = vadd.f32 %v2630, %v2708
        %v2710 = vpop.f32.mrb[0].mxu0
        %2711 = vmatprep.mubr.f32.mxu0 0.0
        %2712 = vmatmul.mubr.f32.gmra.mrb[0].mxu0 %v2596
        %v2713 = vpop.f32.mrb[0].mxu0
        %v2714 = vadd.f32 %v2630, %v2713
        %v2715 = vpop.f32.mrb[0].mxu0
        %2716 = vmatprep.mubr.f32.mxu0 0.0
        %2717 = vmatmul.mubr.f32.gmra.mrb[0].mxu0 %v2597
        %v2718 = vpop.f32.mrb[0].mxu0
        %v2719 = vadd.f32 %v2630, %v2718
        %v2720 = vpop.f32.mrb[0].mxu0
        %2721 = vmatprep.mubr.f32.mxu0 0.0
        %2722 = vmatmul.mubr.f32.gmra.mrb[0].mxu0 %v2598
        %v2723 = vpop.f32.mrb[0].mxu0
        %v2724 = vadd.f32 %v2630, %v2723
        %v2725 = vpop.f32.mrb[0].mxu0
        %2726 = vmatprep.mubr.f32.mxu0 0.0
        %2727 = vmatmul.mubr.f32.gmra.mrb[0].mxu0 %v2599
        %v2728 = vpop.f32.mrb[0].mxu0
        %v2729 = vadd.f32 %v2630, %v2728
        %v2730 = vpop.f32.mrb[0].mxu0
        %2731 = vmatprep.mubr.f32.mxu0 0.0
        %2732 = vmatmul.mubr.f32.gmra.mrb[0].mxu0 %v2600
        %v2733 = vpop.f32.mrb[0].mxu0
        %v2734 = vadd.f32 %v2630, %v2733
        %v2735 = vpop.f32.mrb[0].mxu0
        %2736 = vmatprep.mubr.f32.mxu0 0.0
        %2737 = vmatmul.mubr.f32.gmra.mrb[0].mxu0 %v2601
        %v2738 = vpop.f32.mrb[0].mxu0
        %v2739 = vadd.f32 %v2630, %v2738
        %v2740 = vpop.f32.mrb[0].mxu0
        %2741 = vmatprep.mubr.f32.mxu0 0.0
        %2742 = vmatmul.mubr.f32.gmra.mrb[0].mxu0 %v2602
        %v2743 = vpop.f32.mrb[0].mxu0
        %v2744 = vadd.f32 %v2630, %v2743
        %v2745 = vpop.f32.mrb[0].mxu0
        %2746 = vmatprep.mubr.f32.mxu0 0.0
        %2747 = vmatmul.mubr.f32.gmra.mrb[0].mxu0 %v2603
        %v2748 = vpop.f32.mrb[0].mxu0
        %v2749 = vadd.f32 %v2630, %v2748
        %v2750 = vpop.f32.mrb[0].mxu0
        %2751 = vmatprep.mubr.f32.mxu0 0.0
        %2752 = vmatmul.mubr.f32.gmra.mrb[0].mxu0 %v2604
        %v2753 = vpop.f32.mrb[0].mxu0
        %v2754 = vadd.f32 %v2630, %v2753
        %v2755 = vpop.f32.mrb[0].mxu0
        %2756 = vmatprep.mubr.f32.mxu0 0.0
        %2757 = vmatmul.mubr.f32.gmra.mrb[0].mxu0 %v2605
        %v2758 = vpop.f32.mrb[0].mxu0
        %v2759 = vadd.f32 %v2630, %v2758
        %v2760 = vpop.f32.mrb[0].mxu0
        %2761 = vmatprep.mubr.f32.mxu0 0.0
        %2762 = vmatmul.mubr.f32.gmra.mrb[0].mxu0 %v2606
        %v2763 = vpop.f32.mrb[0].mxu0
        %v2764 = vadd.f32 %v2630, %v2763
        %v2765 = vpop.f32.mrb[0].mxu0
        %2766 = vmatprep.mubr.f32.mxu0 0.0
        %2767 = vmatmul.mubr.f32.gmra.mrb[0].mxu0 %v2607
        %v2768 = vpop.f32.mrb[0].mxu0
        %v2769 = vadd.f32 %v2630, %v2768
        %v2770 = vpop.f32.mrb[0].mxu0
        %2771 = vmatprep.mubr.f32.mxu0 0.0
        %2772 = vmatmul.mubr.f32.gmra.mrb[0].mxu0 %v2608
        %v2773 = vpop.f32.mrb[0].mxu0
        %v2774 = vadd.f32 %v2630, %v2773
        %v2775 = vpop.f32.mrb[0].mxu0
        %2776 = vdwg.mxu0
        %2777 = vst [vmem:[%s274] sm:$0xff] %v2699
        %2778 = vst [vmem:[%s274 + $0x8] sm:$0xff] %v2704
        %2779 = vst [vmem:[%s274 + $0x10] sm:$0xff] %v2709
        %2780 = vst [vmem:[%s274 + $0x18] sm:$0xff] %v2714
        %2781 = vst [vmem:[%s274 + $0x20] sm:$0xff] %v2719
        %2782 = vst [vmem:[%s274 + $0x28] sm:$0xff] %v2724
        %2783 = vst [vmem:[%s274 + $0x30] sm:$0xff] %v2729
        %2784 = vst [vmem:[%s274 + $0x38] sm:$0xff] %v2734
        %2785 = vst [vmem:[%s274 + $0x40] sm:$0xff] %v2739
        %2786 = vst [vmem:[%s274 + $0x48] sm:$0xff] %v2744
        %2787 = vst [vmem:[%s274 + $0x50] sm:$0xff] %v2749
        %2788 = vst [vmem:[%s274 + $0x58] sm:$0xff] %v2754
        %2789 = vst [vmem:[%s274 + $0x60] sm:$0xff] %v2759
        %2790 = vst [vmem:[%s274 + $0x68] sm:$0xff] %v2764
        %2791 = vst [vmem:[%s274 + $0x70] sm:$0xff] %v2769
        %2792 = vst [vmem:[%s274 + $0x78] sm:$0xff] %v2774
        %s2793 = sand.u32 %s181, 1
        %s2794 = scalar_lea.sflag [#allocation4], %s2793
        %s2795 = sand.u32 %s181, 1
        %s2796 = smul.addr %s2795, 128
        %s2797 = scalar_lea.vmem [#allocation3], %s2796
        // Predicated region
        $region49: #{ner_forward.1} parent=47 // pred_check
          %p2798 = pneg %p191
        $region50: #{ner_forward.1} parent=47 // pred_check_branch
          %2800 = sbr.rel (%p2798) target = $region52
        $region51: #{ner_forward.1} parent=47 // pred_region
          %s2801 = smul.u32 4, %s21
          %s2803 = ssub.s32 2048, 2048
          %2804 = vsyncadd %s2794, %s2803
          %s2805 = smul.addr %s2801, 4
          %s2806 = smul.addr %s2805, 128
          %s2807 = scalar_lea.hbm %s7, %s2806
          %s2808 = sshll.u32 %s2797, 4
          %s2809 = int_to_ptr.vmem [resolvable:$true] %s2808
          %2814 = dma.vmem_to_hbm [thread:$0]  %s2809, 2048, %s2807, %s2794, 128, 128, 8
        $region52: #{ner_forward.1} parent=47 // pred_fallthru
          _
      $region48: #{ner_forward.1} parent=5 // pred_fallthru
        _
      %p2815 = scmp.le.s32.totalorder 2, %s16
      // Predicated region
      $region53: #{ner_forward.1} parent=5 // pred_check
        %p2816 = pneg %p2815
      $region54: #{ner_forward.1} parent=5 // pred_check_branch
        %2818 = sbr.rel (%p2816) target = $region56
      $region55: #{ner_forward.1} parent=5 // pred_region
        %s2819 = ssub.s32 %s16, 2
        // Predicated region
        $region57: #{ner_forward.1} parent=55 // pred_check
          %p2820 = pneg %p197
        $region58: #{ner_forward.1} parent=55 // pred_check_branch
          %2822 = sbr.rel (%p2820) target = $region60
        $region59: #{ner_forward.1} parent=55 // pred_region
          %s2823 = sand.u32 %s182, 1
          %s2824 = scalar_lea.sflag [#allocation4], %s2823
          %s2825 = sand.u32 %s182, 1
          %s2826 = smul.addr %s2825, 128
          %s2827 = scalar_lea.vmem [#allocation3], %s2826
          %2828 = dma.done %s2824, 2048
        $region60: #{ner_forward.1} parent=55 // pred_fallthru
          _
      $region56: #{ner_forward.1} parent=5 // pred_fallthru
        _
    $region6: #{ner_forward.1} parent=1 // loop_footer
      %s20 = sadd.s32 1, %s16
    $region7: #{ner_forward.1} parent=1 // loop_footer_branch
      %15 = sbr.rel target = $region3
    $region8: #{ner_forward.1} parent=1 // loop_exit
      _
    %2829 = vsyncpa [#allocation4], 1
    %s2830 = scalar_lea.sflag [#allocation4], 1
    %2831 = vsyncpa %s2830, 1

</llo_original>
